<compile_context>
chip_gen: v7x
topology: tpu7x:2x2x1
jax: 0.10.0
libtpu: 0.0.40
codegen_flags: <defaults>
</compile_context>

<pallas_src>
from functools import partial

import jax
import jax.numpy as jnp
from jax.experimental import pallas as pl
from jax.experimental.pallas import tpu as pltpu

EPS = 1e-5      # PyTorch BatchNorm2d default eps
SLOPE = 0.2     # leaky_relu negative slope
LANE = 128


def _round_up(v, m):
    return (v + m - 1) // m * m


def _vmem_capacity_bytes():
    # Generation-aware budget: v5e/v6e have 128 MiB VMEM, v7x has 64 MiB.
    # Fall back to the most conservative (v7x) figure if the query fails.
    try:
        info = pltpu.get_tpu_info()
        cap = int(getattr(info, "vmem_capacity_bytes", 64 << 20))
        return cap if cap > 0 else (64 << 20)
    except Exception:
        return 64 << 20


def _compiler_params(block_bytes):
    cap = _vmem_capacity_bytes()
    ceiling = min((cap * 3) // 4, 96 << 20)          # ~48 MiB v7x, ~96 MiB v5e/v6e
    limit = int(min(ceiling, max(16 << 20, 3 * block_bytes)))
    return pltpu.CompilerParams(
        dimension_semantics=("parallel",),
        vmem_limit_bytes=limit,
    )


def _choose_m_tile(m):
    # Big tiles first (mem-bound roofline: 512-1024 rows ~ 85% of HBM BW),
    # then split so the "parallel" M axis has >=2 steps for v7x's 2 TCs.
    tm = min(1024, _round_up(m, 16))                 # multiple of 16 (bf16 packing)
    if _round_up(m, tm) == tm and m > 16:
        tm = _round_up(-(-m // 2), 16)
    mp = _round_up(m, tm)
    return tm, mp, mp // tm


# ----------------------------- Pallas kernels -------------------------------
def _gemm_act_kernel(p_ref, w_ref, b_ref, o_ref, *, act):
    # (TM, K) bf16 @ (K, Coutp) bf16 -> f32 ; + bias ; activation ; store
    x = jnp.dot(p_ref[...], w_ref[...], preferred_element_type=jnp.float32)
    x = x + b_ref[...]
    if act == "leaky":
        x = jnp.maximum(x, SLOPE * x)
    else:  # "sigmoid"
        x = jax.nn.sigmoid(x)
    o_ref[...] = x.astype(o_ref.dtype)


def _gemm_stats_kernel(p_ref, w_ref, b_ref, y_ref, st_ref, *, tm, m_valid):
    # GEMM + bias; store pre-BN activations in bf16; emit per-tile (sum, sumsq)
    # partials accumulated in f32 (padded M rows masked so stats match PyTorch).
    x = jnp.dot(p_ref[...], w_ref[...], preferred_element_type=jnp.float32)
    x = x + b_ref[...]
    y_ref[...] = x.astype(y_ref.dtype)
    row0 = pl.program_id(0) * tm
    rows = row0 + jax.lax.broadcasted_iota(jnp.int32, (tm, 1), 0)
    xm = jnp.where(rows < m_valid, x, 0.0)
    st_ref[0, 0:1, :] = jnp.sum(xm, axis=0, keepdims=True)        # (1, Coutp)
    st_ref[0, 1:2, :] = jnp.sum(xm * xm, axis=0, keepdims=True)   # (1, Coutp)


def _bn_act_kernel(y_ref, sc_ref, sh_ref, o_ref):
    # fused per-channel affine (precomputed scale/shift) + LeakyReLU
    x = y_ref[...].astype(jnp.float32) * sc_ref[...] + sh_ref[...]
    x = jnp.maximum(x, SLOPE * x)
    o_ref[...] = x.astype(o_ref.dtype)


def _dotvec_sigmoid_kernel(p_ref, w_ref, b_ref, o_ref):
    # Cout == 1 path: VPU broadcast-multiply + lane reduction + sigmoid.
    # Avoids padding the GEMM N dimension / sigmoid / store to 128 columns.
    x = p_ref[...].astype(jnp.float32) * w_ref[...]
    s = jnp.sum(x, axis=1, keepdims=True) + b_ref[...]
    o_ref[...] = jax.nn.sigmoid(s).astype(o_ref.dtype)


# ------------------------------- JAX glue ----------------------------------
def _im2col_nhwc(x_nhwc, kh, kw, stride, pad):
    """NHWC im2col (no transposes; C stays on the lane axis). K order = (ki, kj, c)."""
    n, h, w, c = x_nhwc.shape
    xp = jnp.pad(x_nhwc, ((0, 0), (pad, pad), (pad, pad), (0, 0)))
    ho = (h + 2 * pad - kh) // stride + 1
    wo = (w + 2 * pad - kw) // stride + 1
    cols = []
    for i in range(kh):
        for j in range(kw):
            cols.append(xp[:, i:i + stride * ho:stride, j:j + stride * wo:stride, :])
    patches = jnp.concatenate(cols, axis=-1)               # (N, Ho, Wo, KH*KW*C)
    return patches.reshape(n * ho * wo, kh * kw * c), (n, ho, wo)


def conv_layer(x_nhwc, w, b, stride, *, act, gamma=None, beta=None,
               out_dtype=jnp.bfloat16):
    """One conv (+ optional train-mode BN) + activation, NHWC in / NHWC out."""
    cout, cin, kh, kw = w.shape
    patches, (n, ho, wo) = _im2col_nhwc(x_nhwc, kh, kw, stride, pad=1)
    m, k = patches.shape
    tm, mp, n_m = _choose_m_tile(m)

    patches = patches.astype(jnp.bfloat16)
    if mp > m:
        patches = jnp.pad(patches, ((0, mp - m), (0, 0)))

    # ---------------- Cout == 1 (final layer): VPU reduce, no N padding -----
    if cout == 1:
        wrow = w.transpose(2, 3, 1, 0).reshape(k, 1).T.astype(jnp.float32)   # (1, K)
        b11 = b.astype(jnp.float32).reshape(1, 1)
        block_bytes = 2 * (tm * k * 2 + tm * 4) + k * 4 + 4
        out = pl.pallas_call(
            _dotvec_sigmoid_kernel,
            out_shape=jax.ShapeDtypeStruct((mp, 1), out_dtype),
            grid=(n_m,),
            in_specs=[pl.BlockSpec((tm, k), lambda i: (i, 0)),
                      pl.BlockSpec((1, k), lambda i: (0, 0)),
                      pl.BlockSpec((1, 1), lambda i: (0, 0))],
            out_specs=pl.BlockSpec((tm, 1), lambda i: (i, 0)),
            compiler_params=_compiler_params(block_bytes),
            cost_estimate=pl.CostEstimate(
                flops=2 * mp * k, transcendentals=mp,
                bytes_accessed=mp * k * 2 + k * 4 + mp * 4),
        )(patches, wrow, b11)
        return out[:m, :cout].reshape(n, ho, wo, cout)

    # ---------------- general path: MXU GEMM, Cout padded to 128 ------------
    coutp = _round_up(cout, LANE)   # keep 128: native MXU N on v5e; HBM-bound elsewhere
    w2d = jnp.pad(w.transpose(2, 3, 1, 0).reshape(k, cout).astype(jnp.bfloat16),
                  ((0, 0), (0, coutp - cout)))
    b2d = jnp.pad(b.astype(jnp.float32).reshape(1, cout),
                  ((0, 0), (0, coutp - cout)))

    in_specs = [
        pl.BlockSpec((tm, k), lambda i: (i, 0)),
        pl.BlockSpec((k, coutp), lambda i: (0, 0)),
        pl.BlockSpec((1, coutp), lambda i: (0, 0)),
    ]
    block_bytes = 2 * (tm * k * 2 + k * coutp * 2 + coutp * 4
                       + tm * coutp * 4 + 2 * coutp * 4)
    cparams = _compiler_params(block_bytes)
    gemm_cost = pl.CostEstimate(
        flops=2 * mp * k * coutp,
        transcendentals=0,
        bytes_accessed=mp * k * 2 + k * coutp * 2 + mp * coutp * 2,
    )

    if gamma is None:
        out = pl.pallas_call(
            partial(_gemm_act_kernel, act=act),
            out_shape=jax.ShapeDtypeStruct((mp, coutp), out_dtype),
            grid=(n_m,),
            in_specs=in_specs,
            out_specs=pl.BlockSpec((tm, coutp), lambda i: (i, 0)),
            compiler_params=cparams,
            cost_estimate=gemm_cost,
        )(patches, w2d, b2d)
    else:
        # ---- pass A: GEMM + bias (bf16 store) + per-tile partial BN stats ----
        y, stats = pl.pallas_call(
            partial(_gemm_stats_kernel, tm=tm, m_valid=m),
            out_shape=(jax.ShapeDtypeStruct((mp, coutp), jnp.bfloat16),
                       jax.ShapeDtypeStruct((n_m, 2, coutp), jnp.float32)),
            grid=(n_m,),
            in_specs=in_specs,
            out_specs=(pl.BlockSpec((tm, coutp), lambda i: (i, 0)),
                       pl.BlockSpec((1, 2, coutp), lambda i: (i, 0, 0))),
            compiler_params=cparams,
            cost_estimate=gemm_cost,
        )(patches, w2d, b2d)

        # tiny host-side reduction of per-tile partials -> scale/shift
        ssum = jnp.sum(stats[:, 0, :], axis=0)
        ssq = jnp.sum(stats[:, 1, :], axis=0)
        mean = ssum / m
        var = jnp.maximum(ssq / m - mean * mean, 0.0)   # biased (training-mode) var
        g = jnp.pad(gamma.astype(jnp.float32), (0, coutp - cout))   # pad 0 -> padded lanes -> 0
        be = jnp.pad(beta.astype(jnp.float32), (0, coutp - cout))
        scale = g * jax.lax.rsqrt(var + EPS)
        shift = be - mean * scale
        scale2d = scale.reshape(1, coutp)
        shift2d = shift.reshape(1, coutp)

        # ---- pass B: fused normalize + LeakyReLU (bf16 in / bf16 out) ----
        bn_cost = pl.CostEstimate(flops=3 * mp * coutp, transcendentals=0,
                                  bytes_accessed=2 * mp * coutp * 2)
        out = pl.pallas_call(
            _bn_act_kernel,
            out_shape=jax.ShapeDtypeStruct((mp, coutp), out_dtype),
            grid=(n_m,),
            in_specs=[pl.BlockSpec((tm, coutp), lambda i: (i, 0)),
                      pl.BlockSpec((1, coutp), lambda i: (0, 0)),
                      pl.BlockSpec((1, coutp), lambda i: (0, 0))],
            out_specs=pl.BlockSpec((tm, coutp), lambda i: (i, 0)),
            compiler_params=cparams,
            cost_estimate=bn_cost,
        )(y, scale2d, shift2d)

    return out[:m, :cout].reshape(n, ho, wo, cout)


def spa_discriminator_forward(x_nchw, p):
    # NCHW -> NHWC at the model boundary only; cast to bf16 immediately so the
    # (host-side for now) im2col duplication happens at 2 B/elem for layer 1.
    x = jnp.transpose(x_nchw, (0, 2, 3, 1)).astype(jnp.bfloat16)
    x = conv_layer(x, p["w1"], p["b1"], 2, act="leaky")
    x = conv_layer(x, p["w2"], p["b2"], 2, act="leaky", gamma=p["g2"], beta=p["be2"])
    x = conv_layer(x, p["w3"], p["b3"], 2, act="leaky", gamma=p["g3"], beta=p["be3"])
    x = conv_layer(x, p["w4"], p["b4"], 1, act="leaky", gamma=p["g4"], beta=p["be4"])
    x = conv_layer(x, p["w5"], p["b5"], 1, act="sigmoid", out_dtype=jnp.float32)
    return jnp.transpose(x, (0, 3, 1, 2))


# ------------------------ deterministic parameters --------------------------
def init_params(key, d=16, input_nc=6):
    ks = jax.random.split(key, 5)

    def conv_init(k, cout, cin):
        kw_, kb_ = jax.random.split(k)
        w = 0.02 * jax.random.normal(kw_, (cout, cin, 4, 4), jnp.float32)
        b = 0.01 * jax.random.normal(kb_, (cout,), jnp.float32)
        return w, b

    p = {}
    p["w1"], p["b1"] = conv_init(ks[0], d, input_nc)
    p["w2"], p["b2"] = conv_init(ks[1], 2 * d, d)
    p["w3"], p["b3"] = conv_init(ks[2], 4 * d, 2 * d)
    p["w4"], p["b4"] = conv_init(ks[3], 8 * d, 4 * d)
    p["w5"], p["b5"] = conv_init(ks[4], 1, 8 * d)
    for name, c in (("2", 2 * d), ("3", 4 * d), ("4", 8 * d)):
        p["g" + name] = jnp.ones((c,), jnp.float32)
        p["be" + name] = jnp.zeros((c,), jnp.float32)
    return p


# ----------------------- pure-JAX reference (check) --------------------------
def _ref_forward(x, p):
    def conv(x, w, b, s):
        y = jax.lax.conv_general_dilated(
            x, w, (s, s), ((1, 1), (1, 1)),
            dimension_numbers=("NCHW", "OIHW", "NCHW"))
        return y + b.reshape(1, -1, 1, 1)

    def bn(x, g, be):
        mean = jnp.mean(x, axis=(0, 2, 3), keepdims=True)
        var = jnp.mean((x - mean) ** 2, axis=(0, 2, 3), keepdims=True)
        return ((x - mean) * jax.lax.rsqrt(var + EPS) * g.reshape(1, -1, 1, 1)
                + be.reshape(1, -1, 1, 1))

    lrelu = lambda v: jnp.maximum(v, SLOPE * v)
    x = lrelu(conv(x, p["w1"], p["b1"], 2))
    x = lrelu(bn(conv(x, p["w2"], p["b2"], 2), p["g2"], p["be2"]))
    x = lrelu(bn(conv(x, p["w3"], p["b3"], 2), p["g3"], p["be3"]))
    x = lrelu(bn(conv(x, p["w4"], p["b4"], 1), p["g4"], p["be4"]))
    x = jax.nn.sigmoid(conv(x, p["w5"], p["b5"], 1))
    return x


if __name__ == "__main__":
    key = jax.random.PRNGKey(0)
    kx, kp = jax.random.split(key)

    # small config consistent with the module: d=16, input_nc=6, 32x32 input
    params = init_params(kp, d=16, input_nc=6)
    x = jax.random.normal(kx, (2, 6, 32, 32), jnp.float32)

    fwd = jax.jit(spa_discriminator_forward)
    out = jax.block_until_ready(fwd(x, params))

    assert out.shape == (2, 1, 2, 2), out.shape

    ref = jax.block_until_ready(_ref_forward(x, params))
    # bf16 MXU inputs + bf16 pre-BN activation storage (f32 accumulation/stats)
    # -> slightly looser tolerance than pure f32
    assert jnp.allclose(out, ref, atol=4e-2, rtol=4e-2), float(jnp.max(jnp.abs(out - ref)))

    print("KERNEL_OK")
</pallas_src>

<mosaic_0001>
module attributes {stable_mosaic.version = 11 : i64} {
  func.func @_gemm_act_kernel(%arg0: i32, %arg1: memref<256x96xbf16, #tpu.memory_space<vmem>>, %arg2: memref<96x128xbf16, #tpu.memory_space<vmem>>, %arg3: memref<1x128xf32, #tpu.memory_space<vmem>>, %arg4: memref<256x128xbf16, #tpu.memory_space<vmem>>) attributes {dimension_semantics = [#tpu.dimension_semantics<parallel>], iteration_bounds = array<i64: 2>, scalar_prefetch = 0 : i64, scratch_operands = 0 : i64, tpu.core_type = #tpu.core_type<tc>, window_params = [{transform_indices = @transform_0, window_bounds = array<i64: 256, 96>}, {pipeline_mode = #tpu.pipeline_mode<synchronous>, transform_indices = @transform_1, window_bounds = array<i64: 96, 128>}, {pipeline_mode = #tpu.pipeline_mode<synchronous>, transform_indices = @transform_2, window_bounds = array<i64: 1, 128>}, {transform_indices = @transform_3, window_bounds = array<i64: 256, 128>}]} {
    %c0 = arith.constant 0 : index
    %c0_0 = arith.constant 0 : index
    %0 = vector.load %arg1[%c0, %c0_0] : memref<256x96xbf16, #tpu.memory_space<vmem>>, vector<256x96xbf16>
    %c0_1 = arith.constant 0 : index
    %c0_2 = arith.constant 0 : index
    %1 = vector.load %arg2[%c0_1, %c0_2] : memref<96x128xbf16, #tpu.memory_space<vmem>>, vector<96x128xbf16>
    %cst = arith.constant dense<0.000000e+00> : vector<256x128xf32>
    %2 = tpu.matmul %0, %1, %cst {dimension_numbers = #tpu.dot_dimension_numbers<[1], [0], [0], [1], [0, 0, 1, 1], [], []>} : vector<256x96xbf16>, vector<96x128xbf16>, vector<256x128xf32> -> vector<256x128xf32>
    %c0_3 = arith.constant 0 : index
    %c0_4 = arith.constant 0 : index
    %3 = vector.load %arg3[%c0_3, %c0_4] : memref<1x128xf32, #tpu.memory_space<vmem>>, vector<1x128xf32>
    %4 = vector.broadcast %3 : vector<1x128xf32> to vector<256x128xf32>
    %5 = arith.addf %2, %4 : vector<256x128xf32>
    %cst_5 = arith.constant 2.000000e-01 : f32
    %6 = vector.broadcast %cst_5 : f32 to vector<256x128xf32>
    %7 = arith.mulf %6, %5 : vector<256x128xf32>
    %8 = arith.maximumf %5, %7 : vector<256x128xf32>
    %9 = arith.truncf %8 : vector<256x128xf32> to vector<256x128xbf16>
    %c0_6 = arith.constant 0 : index
    %c0_7 = arith.constant 0 : index
    %10 = vector.load %arg4[%c0_6, %c0_7] : memref<256x128xbf16, #tpu.memory_space<vmem>>, vector<256x128xbf16>
    tpu.vector_store %arg4[%c0_6, %c0_7], %9 {strides = array<i32>} : memref<256x128xbf16, #tpu.memory_space<vmem>>, vector<256x128xbf16>,
    return
  }
  func.func @transform_0(%arg0: i32) -> (i32, i32) {
    %c0_i32 = arith.constant 0 : i32
    %c0_i32_0 = arith.constant 0 : i32
    return %arg0, %c0_i32 : i32, i32
  }
  func.func @transform_1(%arg0: i32) -> (i32, i32) {
    %c0_i32 = arith.constant 0 : i32
    %c0_i32_0 = arith.constant 0 : i32
    %c0_i32_1 = arith.constant 0 : i32
    return %c0_i32, %c0_i32_0 : i32, i32
  }
  func.func @transform_2(%arg0: i32) -> (i32, i32) {
    %c0_i32 = arith.constant 0 : i32
    %c0_i32_0 = arith.constant 0 : i32
    %c0_i32_1 = arith.constant 0 : i32
    return %c0_i32, %c0_i32_0 : i32, i32
  }
  func.func @transform_3(%arg0: i32) -> (i32, i32) {
    %c0_i32 = arith.constant 0 : i32
    %c0_i32_0 = arith.constant 0 : i32
    return %arg0, %c0_i32 : i32, i32
  }
}

module attributes {stable_mosaic.version = 11 : i64} {
  func.func @_gemm_stats_kernel(%arg0: i32, %arg1: memref<64x256xbf16, #tpu.memory_space<vmem>>, %arg2: memref<256x128xbf16, #tpu.memory_space<vmem>>, %arg3: memref<1x128xf32, #tpu.memory_space<vmem>>, %arg4: memref<64x128xbf16, #tpu.memory_space<vmem>>, %arg5: memref<1x2x128xf32, #tpu.memory_space<vmem>>) attributes {dimension_semantics = [#tpu.dimension_semantics<parallel>], iteration_bounds = array<i64: 2>, scalar_prefetch = 0 : i64, scratch_operands = 0 : i64, tpu.core_type = #tpu.core_type<tc>, window_params = [{transform_indices = @transform_0, window_bounds = array<i64: 64, 256>}, {pipeline_mode = #tpu.pipeline_mode<synchronous>, transform_indices = @transform_1, window_bounds = array<i64: 256, 128>}, {pipeline_mode = #tpu.pipeline_mode<synchronous>, transform_indices = @transform_2, window_bounds = array<i64: 1, 128>}, {transform_indices = @transform_3, window_bounds = array<i64: 64, 128>}, {transform_indices = @transform_4, window_bounds = array<i64: 1, 2, 128>}]} {
    %c0 = arith.constant 0 : index
    %c0_0 = arith.constant 0 : index
    %0 = vector.load %arg1[%c0, %c0_0] : memref<64x256xbf16, #tpu.memory_space<vmem>>, vector<64x256xbf16>
    %c0_1 = arith.constant 0 : index
    %c0_2 = arith.constant 0 : index
    %1 = vector.load %arg2[%c0_1, %c0_2] : memref<256x128xbf16, #tpu.memory_space<vmem>>, vector<256x128xbf16>
    %cst = arith.constant dense<0.000000e+00> : vector<64x128xf32>
    %2 = tpu.matmul %0, %1, %cst {dimension_numbers = #tpu.dot_dimension_numbers<[1], [0], [0], [1], [0, 0, 1, 1], [], []>} : vector<64x256xbf16>, vector<256x128xbf16>, vector<64x128xf32> -> vector<64x128xf32>
    %c0_3 = arith.constant 0 : index
    %c0_4 = arith.constant 0 : index
    %3 = vector.load %arg3[%c0_3, %c0_4] : memref<1x128xf32, #tpu.memory_space<vmem>>, vector<1x128xf32>
    %4 = vector.broadcast %3 : vector<1x128xf32> to vector<64x128xf32>
    %5 = arith.addf %2, %4 : vector<64x128xf32>
    %6 = arith.truncf %5 : vector<64x128xf32> to vector<64x128xbf16>
    %c0_5 = arith.constant 0 : index
    %c0_6 = arith.constant 0 : index
    %7 = vector.load %arg4[%c0_5, %c0_6] : memref<64x128xbf16, #tpu.memory_space<vmem>>, vector<64x128xbf16>
    tpu.vector_store %arg4[%c0_5, %c0_6], %6 {strides = array<i32>} : memref<64x128xbf16, #tpu.memory_space<vmem>>, vector<64x128xbf16>,
    %c64_i32 = arith.constant 64 : i32
    %8 = arith.muli %arg0, %c64_i32 : i32
    %9 = tpu.iota {dimensions = array<i32: 0>} : vector<64x1xi32>
    %10 = vector.broadcast %8 : i32 to vector<64x1xi32>
    %11 = arith.addi %10, %9 : vector<64x1xi32>
    %c128_i32 = arith.constant 128 : i32
    %12 = vector.broadcast %c128_i32 : i32 to vector<64x1xi32>
    %13 = arith.cmpi slt, %11, %12 : vector<64x1xi32>
    %cst_7 = arith.constant 0.000000e+00 : f32
    %14 = vector.shape_cast %13 : vector<64x1xi1> to vector<64x1xi1>
    %15 = vector.broadcast %14 : vector<64x1xi1> to vector<64x128xi1>
    %16 = vector.broadcast %cst_7 : f32 to vector<64x128xf32>
    %17 = arith.select %15, %5, %16 : vector<64x128xi1>, vector<64x128xf32>
    %cst_8 = arith.constant dense<0.000000e+00> : vector<128xf32>
    %18 = vector.multi_reduction <add>, %17, %cst_8 [0] : vector<64x128xf32> to vector<128xf32>
    %19 = vector.shape_cast %18 : vector<128xf32> to vector<1x128xf32>
    %c0_9 = arith.constant 0 : index
    %c0_10 = arith.constant 0 : index
    %c0_11 = arith.constant 0 : index
    %20 = vector.load %arg5[%c0_9, %c0_10, %c0_11] : memref<1x2x128xf32, #tpu.memory_space<vmem>>, vector<1x1x128xf32>
    %21 = vector.shape_cast %20 : vector<1x1x128xf32> to vector<1x128xf32>
    %22 = vector.shape_cast %19 : vector<1x128xf32> to vector<1x1x128xf32>
    tpu.vector_store %arg5[%c0_9, %c0_10, %c0_11], %22 {strides = array<i32>} : memref<1x2x128xf32, #tpu.memory_space<vmem>>, vector<1x1x128xf32>,
    %23 = arith.mulf %17, %17 : vector<64x128xf32>
    %cst_12 = arith.constant dense<0.000000e+00> : vector<128xf32>
    %24 = vector.multi_reduction <add>, %23, %cst_12 [0] : vector<64x128xf32> to vector<128xf32>
    %25 = vector.shape_cast %24 : vector<128xf32> to vector<1x128xf32>
    %c0_13 = arith.constant 0 : index
    %c1 = arith.constant 1 : index
    %c0_14 = arith.constant 0 : index
    %26 = vector.load %arg5[%c0_13, %c1, %c0_14] : memref<1x2x128xf32, #tpu.memory_space<vmem>>, vector<1x1x128xf32>
    %27 = vector.shape_cast %26 : vector<1x1x128xf32> to vector<1x128xf32>
    %28 = vector.shape_cast %25 : vector<1x128xf32> to vector<1x1x128xf32>
    tpu.vector_store %arg5[%c0_13, %c1, %c0_14], %28 {strides = array<i32>} : memref<1x2x128xf32, #tpu.memory_space<vmem>>, vector<1x1x128xf32>,
    return
  }
  func.func @transform_0(%arg0: i32) -> (i32, i32) {
    %c0_i32 = arith.constant 0 : i32
    %c0_i32_0 = arith.constant 0 : i32
    return %arg0, %c0_i32 : i32, i32
  }
  func.func @transform_1(%arg0: i32) -> (i32, i32) {
    %c0_i32 = arith.constant 0 : i32
    %c0_i32_0 = arith.constant 0 : i32
    %c0_i32_1 = arith.constant 0 : i32
    return %c0_i32, %c0_i32_0 : i32, i32
  }
  func.func @transform_2(%arg0: i32) -> (i32, i32) {
    %c0_i32 = arith.constant 0 : i32
    %c0_i32_0 = arith.constant 0 : i32
    %c0_i32_1 = arith.constant 0 : i32
    return %c0_i32, %c0_i32_0 : i32, i32
  }
  func.func @transform_3(%arg0: i32) -> (i32, i32) {
    %c0_i32 = arith.constant 0 : i32
    %c0_i32_0 = arith.constant 0 : i32
    return %arg0, %c0_i32 : i32, i32
  }
  func.func @transform_4(%arg0: i32) -> (i32, i32, i32) {
    %c0_i32 = arith.constant 0 : i32
    %c0_i32_0 = arith.constant 0 : i32
    %c0_i32_1 = arith.constant 0 : i32
    return %arg0, %c0_i32, %c0_i32_0 : i32, i32, i32
  }
}

module attributes {stable_mosaic.version = 11 : i64} {
  func.func @_bn_act_kernel(%arg0: i32, %arg1: memref<64x128xbf16, #tpu.memory_space<vmem>>, %arg2: memref<1x128xf32, #tpu.memory_space<vmem>>, %arg3: memref<1x128xf32, #tpu.memory_space<vmem>>, %arg4: memref<64x128xbf16, #tpu.memory_space<vmem>>) attributes {dimension_semantics = [#tpu.dimension_semantics<parallel>], iteration_bounds = array<i64: 2>, scalar_prefetch = 0 : i64, scratch_operands = 0 : i64, tpu.core_type = #tpu.core_type<tc>, window_params = [{transform_indices = @transform_0, window_bounds = array<i64: 64, 128>}, {pipeline_mode = #tpu.pipeline_mode<synchronous>, transform_indices = @transform_1, window_bounds = array<i64: 1, 128>}, {pipeline_mode = #tpu.pipeline_mode<synchronous>, transform_indices = @transform_2, window_bounds = array<i64: 1, 128>}, {transform_indices = @transform_3, window_bounds = array<i64: 64, 128>}]} {
    %c0 = arith.constant 0 : index
    %c0_0 = arith.constant 0 : index
    %0 = vector.load %arg1[%c0, %c0_0] : memref<64x128xbf16, #tpu.memory_space<vmem>>, vector<64x128xbf16>
    %1 = arith.extf %0 : vector<64x128xbf16> to vector<64x128xf32>
    %c0_1 = arith.constant 0 : index
    %c0_2 = arith.constant 0 : index
    %2 = vector.load %arg2[%c0_1, %c0_2] : memref<1x128xf32, #tpu.memory_space<vmem>>, vector<1x128xf32>
    %3 = vector.broadcast %2 : vector<1x128xf32> to vector<64x128xf32>
    %4 = arith.mulf %1, %3 : vector<64x128xf32>
    %c0_3 = arith.constant 0 : index
    %c0_4 = arith.constant 0 : index
    %5 = vector.load %arg3[%c0_3, %c0_4] : memref<1x128xf32, #tpu.memory_space<vmem>>, vector<1x128xf32>
    %6 = vector.broadcast %5 : vector<1x128xf32> to vector<64x128xf32>
    %7 = arith.addf %4, %6 : vector<64x128xf32>
    %cst = arith.constant 2.000000e-01 : f32
    %8 = vector.broadcast %cst : f32 to vector<64x128xf32>
    %9 = arith.mulf %8, %7 : vector<64x128xf32>
    %10 = arith.maximumf %7, %9 : vector<64x128xf32>
    %11 = arith.truncf %10 : vector<64x128xf32> to vector<64x128xbf16>
    %c0_5 = arith.constant 0 : index
    %c0_6 = arith.constant 0 : index
    %12 = vector.load %arg4[%c0_5, %c0_6] : memref<64x128xbf16, #tpu.memory_space<vmem>>, vector<64x128xbf16>
    tpu.vector_store %arg4[%c0_5, %c0_6], %11 {strides = array<i32>} : memref<64x128xbf16, #tpu.memory_space<vmem>>, vector<64x128xbf16>,
    return
  }
  func.func @transform_0(%arg0: i32) -> (i32, i32) {
    %c0_i32 = arith.constant 0 : i32
    %c0_i32_0 = arith.constant 0 : i32
    return %arg0, %c0_i32 : i32, i32
  }
  func.func @transform_1(%arg0: i32) -> (i32, i32) {
    %c0_i32 = arith.constant 0 : i32
    %c0_i32_0 = arith.constant 0 : i32
    %c0_i32_1 = arith.constant 0 : i32
    return %c0_i32, %c0_i32_0 : i32, i32
  }
  func.func @transform_2(%arg0: i32) -> (i32, i32) {
    %c0_i32 = arith.constant 0 : i32
    %c0_i32_0 = arith.constant 0 : i32
    %c0_i32_1 = arith.constant 0 : i32
    return %c0_i32, %c0_i32_0 : i32, i32
  }
  func.func @transform_3(%arg0: i32) -> (i32, i32) {
    %c0_i32 = arith.constant 0 : i32
    %c0_i32_0 = arith.constant 0 : i32
    return %arg0, %c0_i32 : i32, i32
  }
}

module attributes {stable_mosaic.version = 11 : i64} {
  func.func @_bn_act_kernel(%arg0: i32, %arg1: memref<16x128xbf16, #tpu.memory_space<vmem>>, %arg2: memref<1x128xf32, #tpu.memory_space<vmem>>, %arg3: memref<1x128xf32, #tpu.memory_space<vmem>>, %arg4: memref<16x128xbf16, #tpu.memory_space<vmem>>) attributes {dimension_semantics = [#tpu.dimension_semantics<parallel>], iteration_bounds = array<i64: 2>, scalar_prefetch = 0 : i64, scratch_operands = 0 : i64, tpu.core_type = #tpu.core_type<tc>, window_params = [{transform_indices = @transform_0, window_bounds = array<i64: 16, 128>}, {pipeline_mode = #tpu.pipeline_mode<synchronous>, transform_indices = @transform_1, window_bounds = array<i64: 1, 128>}, {pipeline_mode = #tpu.pipeline_mode<synchronous>, transform_indices = @transform_2, window_bounds = array<i64: 1, 128>}, {transform_indices = @transform_3, window_bounds = array<i64: 16, 128>}]} {
    %c0 = arith.constant 0 : index
    %c0_0 = arith.constant 0 : index
    %0 = vector.load %arg1[%c0, %c0_0] : memref<16x128xbf16, #tpu.memory_space<vmem>>, vector<16x128xbf16>
    %1 = arith.extf %0 : vector<16x128xbf16> to vector<16x128xf32>
    %c0_1 = arith.constant 0 : index
    %c0_2 = arith.constant 0 : index
    %2 = vector.load %arg2[%c0_1, %c0_2] : memref<1x128xf32, #tpu.memory_space<vmem>>, vector<1x128xf32>
    %3 = vector.broadcast %2 : vector<1x128xf32> to vector<16x128xf32>
    %4 = arith.mulf %1, %3 : vector<16x128xf32>
    %c0_3 = arith.constant 0 : index
    %c0_4 = arith.constant 0 : index
    %5 = vector.load %arg3[%c0_3, %c0_4] : memref<1x128xf32, #tpu.memory_space<vmem>>, vector<1x128xf32>
    %6 = vector.broadcast %5 : vector<1x128xf32> to vector<16x128xf32>
    %7 = arith.addf %4, %6 : vector<16x128xf32>
    %cst = arith.constant 2.000000e-01 : f32
    %8 = vector.broadcast %cst : f32 to vector<16x128xf32>
    %9 = arith.mulf %8, %7 : vector<16x128xf32>
    %10 = arith.maximumf %7, %9 : vector<16x128xf32>
    %11 = arith.truncf %10 : vector<16x128xf32> to vector<16x128xbf16>
    %c0_5 = arith.constant 0 : index
    %c0_6 = arith.constant 0 : index
    %12 = vector.load %arg4[%c0_5, %c0_6] : memref<16x128xbf16, #tpu.memory_space<vmem>>, vector<16x128xbf16>
    tpu.vector_store %arg4[%c0_5, %c0_6], %11 {strides = array<i32>} : memref<16x128xbf16, #tpu.memory_space<vmem>>, vector<16x128xbf16>,
    return
  }
  func.func @transform_0(%arg0: i32) -> (i32, i32) {
    %c0_i32 = arith.constant 0 : i32
    %c0_i32_0 = arith.constant 0 : i32
    return %arg0, %c0_i32 : i32, i32
  }
  func.func @transform_1(%arg0: i32) -> (i32, i32) {
    %c0_i32 = arith.constant 0 : i32
    %c0_i32_0 = arith.constant 0 : i32
    %c0_i32_1 = arith.constant 0 : i32
    return %c0_i32, %c0_i32_0 : i32, i32
  }
  func.func @transform_2(%arg0: i32) -> (i32, i32) {
    %c0_i32 = arith.constant 0 : i32
    %c0_i32_0 = arith.constant 0 : i32
    %c0_i32_1 = arith.constant 0 : i32
    return %c0_i32, %c0_i32_0 : i32, i32
  }
  func.func @transform_3(%arg0: i32) -> (i32, i32) {
    %c0_i32 = arith.constant 0 : i32
    %c0_i32_0 = arith.constant 0 : i32
    return %arg0, %c0_i32 : i32, i32
  }
}

module attributes {stable_mosaic.version = 11 : i64} {
  func.func @_gemm_stats_kernel(%arg0: i32, %arg1: memref<16x512xbf16, #tpu.memory_space<vmem>>, %arg2: memref<512x128xbf16, #tpu.memory_space<vmem>>, %arg3: memref<1x128xf32, #tpu.memory_space<vmem>>, %arg4: memref<16x128xbf16, #tpu.memory_space<vmem>>, %arg5: memref<1x2x128xf32, #tpu.memory_space<vmem>>) attributes {dimension_semantics = [#tpu.dimension_semantics<parallel>], iteration_bounds = array<i64: 2>, scalar_prefetch = 0 : i64, scratch_operands = 0 : i64, tpu.core_type = #tpu.core_type<tc>, window_params = [{transform_indices = @transform_0, window_bounds = array<i64: 16, 512>}, {pipeline_mode = #tpu.pipeline_mode<synchronous>, transform_indices = @transform_1, window_bounds = array<i64: 512, 128>}, {pipeline_mode = #tpu.pipeline_mode<synchronous>, transform_indices = @transform_2, window_bounds = array<i64: 1, 128>}, {transform_indices = @transform_3, window_bounds = array<i64: 16, 128>}, {transform_indices = @transform_4, window_bounds = array<i64: 1, 2, 128>}]} {
    %c0 = arith.constant 0 : index
    %c0_0 = arith.constant 0 : index
    %0 = vector.load %arg1[%c0, %c0_0] : memref<16x512xbf16, #tpu.memory_space<vmem>>, vector<16x512xbf16>
    %c0_1 = arith.constant 0 : index
    %c0_2 = arith.constant 0 : index
    %1 = vector.load %arg2[%c0_1, %c0_2] : memref<512x128xbf16, #tpu.memory_space<vmem>>, vector<512x128xbf16>
    %cst = arith.constant dense<0.000000e+00> : vector<16x128xf32>
    %2 = tpu.matmul %0, %1, %cst {dimension_numbers = #tpu.dot_dimension_numbers<[1], [0], [0], [1], [0, 0, 1, 1], [], []>} : vector<16x512xbf16>, vector<512x128xbf16>, vector<16x128xf32> -> vector<16x128xf32>
    %c0_3 = arith.constant 0 : index
    %c0_4 = arith.constant 0 : index
    %3 = vector.load %arg3[%c0_3, %c0_4] : memref<1x128xf32, #tpu.memory_space<vmem>>, vector<1x128xf32>
    %4 = vector.broadcast %3 : vector<1x128xf32> to vector<16x128xf32>
    %5 = arith.addf %2, %4 : vector<16x128xf32>
    %6 = arith.truncf %5 : vector<16x128xf32> to vector<16x128xbf16>
    %c0_5 = arith.constant 0 : index
    %c0_6 = arith.constant 0 : index
    %7 = vector.load %arg4[%c0_5, %c0_6] : memref<16x128xbf16, #tpu.memory_space<vmem>>, vector<16x128xbf16>
    tpu.vector_store %arg4[%c0_5, %c0_6], %6 {strides = array<i32>} : memref<16x128xbf16, #tpu.memory_space<vmem>>, vector<16x128xbf16>,
    %c16_i32 = arith.constant 16 : i32
    %8 = arith.muli %arg0, %c16_i32 : i32
    %9 = tpu.iota {dimensions = array<i32: 0>} : vector<16x1xi32>
    %10 = vector.broadcast %8 : i32 to vector<16x1xi32>
    %11 = arith.addi %10, %9 : vector<16x1xi32>
    %c32_i32 = arith.constant 32 : i32
    %12 = vector.broadcast %c32_i32 : i32 to vector<16x1xi32>
    %13 = arith.cmpi slt, %11, %12 : vector<16x1xi32>
    %cst_7 = arith.constant 0.000000e+00 : f32
    %14 = vector.shape_cast %13 : vector<16x1xi1> to vector<16x1xi1>
    %15 = vector.broadcast %14 : vector<16x1xi1> to vector<16x128xi1>
    %16 = vector.broadcast %cst_7 : f32 to vector<16x128xf32>
    %17 = arith.select %15, %5, %16 : vector<16x128xi1>, vector<16x128xf32>
    %cst_8 = arith.constant dense<0.000000e+00> : vector<128xf32>
    %18 = vector.multi_reduction <add>, %17, %cst_8 [0] : vector<16x128xf32> to vector<128xf32>
    %19 = vector.shape_cast %18 : vector<128xf32> to vector<1x128xf32>
    %c0_9 = arith.constant 0 : index
    %c0_10 = arith.constant 0 : index
    %c0_11 = arith.constant 0 : index
    %20 = vector.load %arg5[%c0_9, %c0_10, %c0_11] : memref<1x2x128xf32, #tpu.memory_space<vmem>>, vector<1x1x128xf32>
    %21 = vector.shape_cast %20 : vector<1x1x128xf32> to vector<1x128xf32>
    %22 = vector.shape_cast %19 : vector<1x128xf32> to vector<1x1x128xf32>
    tpu.vector_store %arg5[%c0_9, %c0_10, %c0_11], %22 {strides = array<i32>} : memref<1x2x128xf32, #tpu.memory_space<vmem>>, vector<1x1x128xf32>,
    %23 = arith.mulf %17, %17 : vector<16x128xf32>
    %cst_12 = arith.constant dense<0.000000e+00> : vector<128xf32>
    %24 = vector.multi_reduction <add>, %23, %cst_12 [0] : vector<16x128xf32> to vector<128xf32>
    %25 = vector.shape_cast %24 : vector<128xf32> to vector<1x128xf32>
    %c0_13 = arith.constant 0 : index
    %c1 = arith.constant 1 : index
    %c0_14 = arith.constant 0 : index
    %26 = vector.load %arg5[%c0_13, %c1, %c0_14] : memref<1x2x128xf32, #tpu.memory_space<vmem>>, vector<1x1x128xf32>
    %27 = vector.shape_cast %26 : vector<1x1x128xf32> to vector<1x128xf32>
    %28 = vector.shape_cast %25 : vector<1x128xf32> to vector<1x1x128xf32>
    tpu.vector_store %arg5[%c0_13, %c1, %c0_14], %28 {strides = array<i32>} : memref<1x2x128xf32, #tpu.memory_space<vmem>>, vector<1x1x128xf32>,
    return
  }
  func.func @transform_0(%arg0: i32) -> (i32, i32) {
    %c0_i32 = arith.constant 0 : i32
    %c0_i32_0 = arith.constant 0 : i32
    return %arg0, %c0_i32 : i32, i32
  }
  func.func @transform_1(%arg0: i32) -> (i32, i32) {
    %c0_i32 = arith.constant 0 : i32
    %c0_i32_0 = arith.constant 0 : i32
    %c0_i32_1 = arith.constant 0 : i32
    return %c0_i32, %c0_i32_0 : i32, i32
  }
  func.func @transform_2(%arg0: i32) -> (i32, i32) {
    %c0_i32 = arith.constant 0 : i32
    %c0_i32_0 = arith.constant 0 : i32
    %c0_i32_1 = arith.constant 0 : i32
    return %c0_i32, %c0_i32_0 : i32, i32
  }
  func.func @transform_3(%arg0: i32) -> (i32, i32) {
    %c0_i32 = arith.constant 0 : i32
    %c0_i32_0 = arith.constant 0 : i32
    return %arg0, %c0_i32 : i32, i32
  }
  func.func @transform_4(%arg0: i32) -> (i32, i32, i32) {
    %c0_i32 = arith.constant 0 : i32
    %c0_i32_0 = arith.constant 0 : i32
    %c0_i32_1 = arith.constant 0 : i32
    return %arg0, %c0_i32, %c0_i32_0 : i32, i32, i32
  }
}

module attributes {stable_mosaic.version = 11 : i64} {
  func.func @_gemm_stats_kernel(%arg0: i32, %arg1: memref<16x1024xbf16, #tpu.memory_space<vmem>>, %arg2: memref<1024x128xbf16, #tpu.memory_space<vmem>>, %arg3: memref<1x128xf32, #tpu.memory_space<vmem>>, %arg4: memref<16x128xbf16, #tpu.memory_space<vmem>>, %arg5: memref<1x2x128xf32, #tpu.memory_space<vmem>>) attributes {dimension_semantics = [#tpu.dimension_semantics<parallel>], iteration_bounds = array<i64: 2>, scalar_prefetch = 0 : i64, scratch_operands = 0 : i64, tpu.core_type = #tpu.core_type<tc>, window_params = [{transform_indices = @transform_0, window_bounds = array<i64: 16, 1024>}, {pipeline_mode = #tpu.pipeline_mode<synchronous>, transform_indices = @transform_1, window_bounds = array<i64: 1024, 128>}, {pipeline_mode = #tpu.pipeline_mode<synchronous>, transform_indices = @transform_2, window_bounds = array<i64: 1, 128>}, {transform_indices = @transform_3, window_bounds = array<i64: 16, 128>}, {transform_indices = @transform_4, window_bounds = array<i64: 1, 2, 128>}]} {
    %c0 = arith.constant 0 : index
    %c0_0 = arith.constant 0 : index
    %0 = vector.load %arg1[%c0, %c0_0] : memref<16x1024xbf16, #tpu.memory_space<vmem>>, vector<16x1024xbf16>
    %c0_1 = arith.constant 0 : index
    %c0_2 = arith.constant 0 : index
    %1 = vector.load %arg2[%c0_1, %c0_2] : memref<1024x128xbf16, #tpu.memory_space<vmem>>, vector<1024x128xbf16>
    %cst = arith.constant dense<0.000000e+00> : vector<16x128xf32>
    %2 = tpu.matmul %0, %1, %cst {dimension_numbers = #tpu.dot_dimension_numbers<[1], [0], [0], [1], [0, 0, 1, 1], [], []>} : vector<16x1024xbf16>, vector<1024x128xbf16>, vector<16x128xf32> -> vector<16x128xf32>
    %c0_3 = arith.constant 0 : index
    %c0_4 = arith.constant 0 : index
    %3 = vector.load %arg3[%c0_3, %c0_4] : memref<1x128xf32, #tpu.memory_space<vmem>>, vector<1x128xf32>
    %4 = vector.broadcast %3 : vector<1x128xf32> to vector<16x128xf32>
    %5 = arith.addf %2, %4 : vector<16x128xf32>
    %6 = arith.truncf %5 : vector<16x128xf32> to vector<16x128xbf16>
    %c0_5 = arith.constant 0 : index
    %c0_6 = arith.constant 0 : index
    %7 = vector.load %arg4[%c0_5, %c0_6] : memref<16x128xbf16, #tpu.memory_space<vmem>>, vector<16x128xbf16>
    tpu.vector_store %arg4[%c0_5, %c0_6], %6 {strides = array<i32>} : memref<16x128xbf16, #tpu.memory_space<vmem>>, vector<16x128xbf16>,
    %c16_i32 = arith.constant 16 : i32
    %8 = arith.muli %arg0, %c16_i32 : i32
    %9 = tpu.iota {dimensions = array<i32: 0>} : vector<16x1xi32>
    %10 = vector.broadcast %8 : i32 to vector<16x1xi32>
    %11 = arith.addi %10, %9 : vector<16x1xi32>
    %c18_i32 = arith.constant 18 : i32
    %12 = vector.broadcast %c18_i32 : i32 to vector<16x1xi32>
    %13 = arith.cmpi slt, %11, %12 : vector<16x1xi32>
    %cst_7 = arith.constant 0.000000e+00 : f32
    %14 = vector.shape_cast %13 : vector<16x1xi1> to vector<16x1xi1>
    %15 = vector.broadcast %14 : vector<16x1xi1> to vector<16x128xi1>
    %16 = vector.broadcast %cst_7 : f32 to vector<16x128xf32>
    %17 = arith.select %15, %5, %16 : vector<16x128xi1>, vector<16x128xf32>
    %cst_8 = arith.constant dense<0.000000e+00> : vector<128xf32>
    %18 = vector.multi_reduction <add>, %17, %cst_8 [0] : vector<16x128xf32> to vector<128xf32>
    %19 = vector.shape_cast %18 : vector<128xf32> to vector<1x128xf32>
    %c0_9 = arith.constant 0 : index
    %c0_10 = arith.constant 0 : index
    %c0_11 = arith.constant 0 : index
    %20 = vector.load %arg5[%c0_9, %c0_10, %c0_11] : memref<1x2x128xf32, #tpu.memory_space<vmem>>, vector<1x1x128xf32>
    %21 = vector.shape_cast %20 : vector<1x1x128xf32> to vector<1x128xf32>
    %22 = vector.shape_cast %19 : vector<1x128xf32> to vector<1x1x128xf32>
    tpu.vector_store %arg5[%c0_9, %c0_10, %c0_11], %22 {strides = array<i32>} : memref<1x2x128xf32, #tpu.memory_space<vmem>>, vector<1x1x128xf32>,
    %23 = arith.mulf %17, %17 : vector<16x128xf32>
    %cst_12 = arith.constant dense<0.000000e+00> : vector<128xf32>
    %24 = vector.multi_reduction <add>, %23, %cst_12 [0] : vector<16x128xf32> to vector<128xf32>
    %25 = vector.shape_cast %24 : vector<128xf32> to vector<1x128xf32>
    %c0_13 = arith.constant 0 : index
    %c1 = arith.constant 1 : index
    %c0_14 = arith.constant 0 : index
    %26 = vector.load %arg5[%c0_13, %c1, %c0_14] : memref<1x2x128xf32, #tpu.memory_space<vmem>>, vector<1x1x128xf32>
    %27 = vector.shape_cast %26 : vector<1x1x128xf32> to vector<1x128xf32>
    %28 = vector.shape_cast %25 : vector<1x128xf32> to vector<1x1x128xf32>
    tpu.vector_store %arg5[%c0_13, %c1, %c0_14], %28 {strides = array<i32>} : memref<1x2x128xf32, #tpu.memory_space<vmem>>, vector<1x1x128xf32>,
    return
  }
  func.func @transform_0(%arg0: i32) -> (i32, i32) {
    %c0_i32 = arith.constant 0 : i32
    %c0_i32_0 = arith.constant 0 : i32
    return %arg0, %c0_i32 : i32, i32
  }
  func.func @transform_1(%arg0: i32) -> (i32, i32) {
    %c0_i32 = arith.constant 0 : i32
    %c0_i32_0 = arith.constant 0 : i32
    %c0_i32_1 = arith.constant 0 : i32
    return %c0_i32, %c0_i32_0 : i32, i32
  }
  func.func @transform_2(%arg0: i32) -> (i32, i32) {
    %c0_i32 = arith.constant 0 : i32
    %c0_i32_0 = arith.constant 0 : i32
    %c0_i32_1 = arith.constant 0 : i32
    return %c0_i32, %c0_i32_0 : i32, i32
  }
  func.func @transform_3(%arg0: i32) -> (i32, i32) {
    %c0_i32 = arith.constant 0 : i32
    %c0_i32_0 = arith.constant 0 : i32
    return %arg0, %c0_i32 : i32, i32
  }
  func.func @transform_4(%arg0: i32) -> (i32, i32, i32) {
    %c0_i32 = arith.constant 0 : i32
    %c0_i32_0 = arith.constant 0 : i32
    %c0_i32_1 = arith.constant 0 : i32
    return %arg0, %c0_i32, %c0_i32_0 : i32, i32, i32
  }
}

module attributes {stable_mosaic.version = 11 : i64} {
  func.func @_dotvec_sigmoid_kernel(%arg0: i32, %arg1: memref<16x2048xbf16, #tpu.memory_space<vmem>>, %arg2: memref<1x2048xf32, #tpu.memory_space<vmem>>, %arg3: memref<1x1xf32, #tpu.memory_space<vmem>>, %arg4: memref<16x1xf32, #tpu.memory_space<vmem>>) attributes {dimension_semantics = [#tpu.dimension_semantics<parallel>], iteration_bounds = array<i64: 1>, scalar_prefetch = 0 : i64, scratch_operands = 0 : i64, tpu.core_type = #tpu.core_type<tc>, window_params = [{transform_indices = @transform_0, window_bounds = array<i64: 16, 2048>}, {pipeline_mode = #tpu.pipeline_mode<synchronous>, transform_indices = @transform_1, window_bounds = array<i64: 1, 2048>}, {pipeline_mode = #tpu.pipeline_mode<synchronous>, transform_indices = @transform_2, window_bounds = array<i64: 1, 1>}, {transform_indices = @transform_3, window_bounds = array<i64: 16, 1>}]} {
    %c0 = arith.constant 0 : index
    %c0_0 = arith.constant 0 : index
    %0 = vector.load %arg1[%c0, %c0_0] : memref<16x2048xbf16, #tpu.memory_space<vmem>>, vector<16x2048xbf16>
    %1 = arith.extf %0 : vector<16x2048xbf16> to vector<16x2048xf32>
    %c0_1 = arith.constant 0 : index
    %c0_2 = arith.constant 0 : index
    %2 = vector.load %arg2[%c0_1, %c0_2] : memref<1x2048xf32, #tpu.memory_space<vmem>>, vector<1x2048xf32>
    %3 = vector.broadcast %2 : vector<1x2048xf32> to vector<16x2048xf32>
    %4 = arith.mulf %1, %3 : vector<16x2048xf32>
    %cst = arith.constant dense<0.000000e+00> : vector<16xf32>
    %5 = vector.multi_reduction <add>, %4, %cst [1] : vector<16x2048xf32> to vector<16xf32>
    %6 = vector.shape_cast %5 : vector<16xf32> to vector<16x1xf32>
    %c0_3 = arith.constant 0 : index
    %c0_4 = arith.constant 0 : index
    %7 = vector.load %arg3[%c0_3, %c0_4] : memref<1x1xf32, #tpu.memory_space<vmem>>, vector<1x1xf32>
    %8 = vector.broadcast %7 : vector<1x1xf32> to vector<16x1xf32>
    %9 = arith.addf %6, %8 : vector<16x1xf32>
    %10 = arith.negf %9 : vector<16x1xf32>
    %11 = math.exp %10 : vector<16x1xf32>
    %cst_5 = arith.constant 1.000000e+00 : f32
    %12 = vector.broadcast %cst_5 : f32 to vector<16x1xf32>
    %13 = arith.addf %12, %11 : vector<16x1xf32>
    %14 = arith.divf %12, %13 : vector<16x1xf32>
    %c0_6 = arith.constant 0 : index
    %c0_7 = arith.constant 0 : index
    %15 = vector.load %arg4[%c0_6, %c0_7] : memref<16x1xf32, #tpu.memory_space<vmem>>, vector<16x1xf32>
    tpu.vector_store %arg4[%c0_6, %c0_7], %14 {strides = array<i32>} : memref<16x1xf32, #tpu.memory_space<vmem>>, vector<16x1xf32>,
    return
  }
  func.func @transform_0(%arg0: i32) -> (i32, i32) {
    %c0_i32 = arith.constant 0 : i32
    %c0_i32_0 = arith.constant 0 : i32
    return %arg0, %c0_i32 : i32, i32
  }
  func.func @transform_1(%arg0: i32) -> (i32, i32) {
    %c0_i32 = arith.constant 0 : i32
    %c0_i32_0 = arith.constant 0 : i32
    %c0_i32_1 = arith.constant 0 : i32
    return %c0_i32, %c0_i32_0 : i32, i32
  }
  func.func @transform_2(%arg0: i32) -> (i32, i32) {
    %c0_i32 = arith.constant 0 : i32
    %c0_i32_0 = arith.constant 0 : i32
    %c0_i32_1 = arith.constant 0 : i32
    return %c0_i32, %c0_i32_0 : i32, i32
  }
  func.func @transform_3(%arg0: i32) -> (i32, i32) {
    %c0_i32 = arith.constant 0 : i32
    %c0_i32_0 = arith.constant 0 : i32
    return %arg0, %c0_i32 : i32, i32
  }
}

</mosaic_0001>

<llo_original>
// kernel: spa_discriminator_forward.8
$region0: #{spa_discriminator_forward.8}
  #allocation0 [shape = 'u32[]', space=smem, size = 0x4, offset = 0x4, fixed_abs, tag = 'smem constant byte address 0x4 - core index']
  #allocation1 [shape = 'u32[144,128]{1,0:T(1,128)}', space=vmem, size = 0x12000, scoped, tag = 'internal scratch']
  %s0 = inlined_call_operand.vmem [shape: bf16[512,96], index: 0, kind: input, shape index: {}]
  %s1 = inlined_call_operand.vmem [shape: bf16[96,128], index: 1, kind: input, shape index: {}]
  %s2 = inlined_call_operand.vmem [shape: f32[1,128], index: 2, kind: input, shape index: {}]
  %s3 = inlined_call_operand.vmem [shape: bf16[512,128], index: 3, kind: output, shape index: {}]
  %s4 = sld [smem:[#allocation0]]
  $region45: #{spa_discriminator_forward.8} parent=0
    _
  %s6 = ssub.s32 1, %s4
  %s7 = scalar_select 0, %s6, %s4
  loop: start=0, step=1, limit=4
  $region2: #{spa_discriminator_forward.8} parent=0 // loop_pre_header
    _
  $region3: #{spa_discriminator_forward.8} parent=0 // loop_header
    %s9 = sphi 0, %s13
    %p10 = scmp.ge.s32.totalorder %s9, 4
    %s19 = sphi 0, %s21
    %s22 = sphi 0, %s19
    %s23 = sphi 0, %s22
    %s39 = sphi 0, %s23
    %s43 = sphi 0, %s43
    %s45 = sphi 0, %s43
    %s46 = sphi 0, %s45
    %s60 = sphi 0, %s46
    %s64 = sphi 0, %s64
    %s66 = sphi 0, %s64
    %s67 = sphi 0, %s66
    %s81 = sphi 0, %s67
    %s87 = sphi 0, %s89
    %s90 = sphi 0, %s87
    %s91 = sphi 0, %s90
    %s107 = sphi 0, %s91
  $region4: #{spa_discriminator_forward.8} parent=0 // loop_header_branch
    %12 = sbr.rel (%p10) target = $region8
  $region5: #{spa_discriminator_forward.8} parent=0 // loop_body
    %s14 = ssub.s32 %s9, 1
    %s15 = ssub.s32 %s9, 2
    %s16 = sadd.s32 %s9, 1
    %s17 = ssub.s32 %s9, %s16
    %p18 = scmp.eq.s32.totalorder %s17, 0
    %s20 = sadd.s32 %s19, 1
    %s21 = scalar_select %p18, %s19, %s20
    %p24 = pneg %p18
    %p25 = scmp.eq.s32.totalorder %s9, 1
    %p26 = por %p24, %p25
    %p27 = scmp.ne.s32.totalorder %s19, %s22
    %p28 = scmp.eq.s32.totalorder %s9, 0
    %p29 = por %p27, %p28
    %p30 = scmp.ne.s32.totalorder %s19, %s22
    %p31 = scmp.eq.s32.totalorder %s14, 1
    %p32 = por %p30, %p31
    %p33 = scmp.ne.s32.totalorder %s22, %s23
    %p34 = scmp.eq.s32.totalorder %s14, 0
    %p35 = por %p33, %p34
    %p36 = scmp.ne.s32.totalorder %s22, %s23
    %p37 = scmp.eq.s32.totalorder %s15, 1
    %p38 = por %p36, %p37
    %p40 = scmp.ne.s32.totalorder %s23, %s39
    %p41 = scmp.eq.s32.totalorder %s15, 0
    %p42 = por %p40, %p41
    %s44 = sadd.s32 %s43, 1
    %p47 = scmp.eq.s32.totalorder %s9, 1
    %p48 = scmp.ne.s32.totalorder %s43, %s45
    %p49 = scmp.eq.s32.totalorder %s9, 0
    %p50 = por %p48, %p49
    %p51 = scmp.ne.s32.totalorder %s43, %s45
    %p52 = scmp.eq.s32.totalorder %s14, 1
    %p53 = por %p51, %p52
    %p54 = scmp.ne.s32.totalorder %s45, %s46
    %p55 = scmp.eq.s32.totalorder %s14, 0
    %p56 = por %p54, %p55
    %p57 = scmp.ne.s32.totalorder %s45, %s46
    %p58 = scmp.eq.s32.totalorder %s15, 1
    %p59 = por %p57, %p58
    %p61 = scmp.ne.s32.totalorder %s46, %s60
    %p62 = scmp.eq.s32.totalorder %s15, 0
    %p63 = por %p61, %p62
    %s65 = sadd.s32 %s64, 1
    %p68 = scmp.eq.s32.totalorder %s9, 1
    %p69 = scmp.ne.s32.totalorder %s64, %s66
    %p70 = scmp.eq.s32.totalorder %s9, 0
    %p71 = por %p69, %p70
    %p72 = scmp.ne.s32.totalorder %s64, %s66
    %p73 = scmp.eq.s32.totalorder %s14, 1
    %p74 = por %p72, %p73
    %p75 = scmp.ne.s32.totalorder %s66, %s67
    %p76 = scmp.eq.s32.totalorder %s14, 0
    %p77 = por %p75, %p76
    %p78 = scmp.ne.s32.totalorder %s66, %s67
    %p79 = scmp.eq.s32.totalorder %s15, 1
    %p80 = por %p78, %p79
    %p82 = scmp.ne.s32.totalorder %s67, %s81
    %p83 = scmp.eq.s32.totalorder %s15, 0
    %p84 = por %p82, %p83
    %s85 = ssub.s32 %s9, %s16
    %p86 = scmp.eq.s32.totalorder %s85, 0
    %s88 = sadd.s32 %s87, 1
    %s89 = scalar_select %p86, %s87, %s88
    %p92 = pneg %p86
    %p93 = scmp.eq.s32.totalorder %s9, 1
    %p94 = por %p92, %p93
    %p95 = scmp.ne.s32.totalorder %s87, %s90
    %p96 = scmp.eq.s32.totalorder %s9, 0
    %p97 = por %p95, %p96
    %p98 = scmp.ne.s32.totalorder %s87, %s90
    %p99 = scmp.eq.s32.totalorder %s14, 1
    %p100 = por %p98, %p99
    %p101 = scmp.ne.s32.totalorder %s90, %s91
    %p102 = scmp.eq.s32.totalorder %s14, 0
    %p103 = por %p101, %p102
    %p104 = scmp.ne.s32.totalorder %s90, %s91
    %p105 = scmp.eq.s32.totalorder %s15, 1
    %p106 = por %p104, %p105
    %p108 = scmp.ne.s32.totalorder %s91, %s107
    %p109 = scmp.eq.s32.totalorder %s15, 0
    %p110 = por %p108, %p109
    %p111 = scmp.le.s32.totalorder 1, %s9
    %p112 = scmp.lt.s32.totalorder %s9, 3
    %p113 = pnand %p111, %p112
    %p114 = pneg %p113
    // Predicated region
    $region9: #{spa_discriminator_forward.8} parent=5 // pred_check
      _
    $region10: #{spa_discriminator_forward.8} parent=5 // pred_check_branch
      %116 = sbr.rel (%p113) target = $region12
    $region11: #{spa_discriminator_forward.8} parent=5 // pred_region
      %s117 = ssub.s32 %s9, 1
      // Predicated region
      $region13: #{spa_discriminator_forward.8} parent=11 // pred_check
        %p118 = pneg %p56
      $region14: #{spa_discriminator_forward.8} parent=11 // pred_check_branch
        %120 = sbr.rel (%p118) target = $region16
      $region15: #{spa_discriminator_forward.8} parent=11 // pred_region
        _
      $region16: #{spa_discriminator_forward.8} parent=11 // pred_fallthru
        _
      // Predicated region
      $region17: #{spa_discriminator_forward.8} parent=11 // pred_check
        %p121 = pneg %p77
      $region18: #{spa_discriminator_forward.8} parent=11 // pred_check_branch
        %123 = sbr.rel (%p121) target = $region20
      $region19: #{spa_discriminator_forward.8} parent=11 // pred_region
        _
      $region20: #{spa_discriminator_forward.8} parent=11 // pred_fallthru
        _
    $region12: #{spa_discriminator_forward.8} parent=5 // pred_fallthru
      _
    %p124 = scmp.lt.s32.totalorder %s9, 2
    // Predicated region
    $region21: #{spa_discriminator_forward.8} parent=5 // pred_check
      %p125 = pneg %p124
    $region22: #{spa_discriminator_forward.8} parent=5 // pred_check_branch
      %127 = sbr.rel (%p125) target = $region24
    $region23: #{spa_discriminator_forward.8} parent=5 // pred_region
      // Predicated region
      $region25: #{spa_discriminator_forward.8} parent=23 // pred_check
        %p128 = pneg %p29
      $region26: #{spa_discriminator_forward.8} parent=23 // pred_check_branch
        %130 = sbr.rel (%p128) target = $region28
      $region27: #{spa_discriminator_forward.8} parent=23 // pred_region
        %s131 = smul.u32 32, %s9
        %p132 = scmp.lt.s32.totalorder %s131, 63
        %s133 = scalar_select %p132, %s131, 63
        %s134 = smul.addr %s133, 4
        %s135 = scalar_lea.vmem %s0, %s134
        %s136 = smul.u32 32, %s9
      $region28: #{spa_discriminator_forward.8} parent=23 // pred_fallthru
        _
    $region24: #{spa_discriminator_forward.8} parent=5 // pred_fallthru
      _
    %p137 = scmp.le.s32.totalorder 1, %s9
    %p138 = scmp.lt.s32.totalorder %s9, 3
    %p139 = pnand %p137, %p138
    %p140 = pneg %p139
    // Predicated region
    $region29: #{spa_discriminator_forward.8} parent=5 // pred_check
      _
    $region30: #{spa_discriminator_forward.8} parent=5 // pred_check_branch
      %142 = sbr.rel (%p139) target = $region32
    $region31: #{spa_discriminator_forward.8} parent=5 // pred_region
      %s143 = ssub.s32 %s9, 1
      %s144 = smul.u32 32, %s14
      %p145 = scmp.lt.s32.totalorder %s144, 63
      %s146 = scalar_select %p145, %s144, 63
      %s147 = smul.addr %s146, 4
      %s148 = scalar_lea.vmem %s0, %s147
      %p149 = pneg %p35
      %p150 = pneg %p32
      %p151 = pneg %p56
      %p152 = pneg %p53
      %p153 = pneg %p77
      %p154 = pneg %p74
      %p155 = pneg %p103
      %p156 = pneg %p100
      %s157 = smul.u32 32, %s14
      %p158 = scmp.lt.s32.totalorder %s157, 63
      %s159 = scalar_select %p158, %s157, 63
      %s160 = smul.addr %s159, 4
      %s161 = scalar_lea.vmem %s3, %s160
      %s162 = smul.u32 32, %s14
      %p163 = scmp.lt.s32.totalorder %s162, 63
      %s164 = scalar_select %p163, %s162, 63
      %s165 = smul.addr %s164, 4
      %s166 = scalar_lea.vmem %s0, %s165
      %s167 = smul.u32 32, %s14
      %s168 = smul.u32 32, %s14
      %p169 = scmp.lt.s32.totalorder %s168, 63
      %s170 = scalar_select %p169, %s168, 63
      %s171 = smul.addr %s170, 4
      %s172 = scalar_lea.vmem %s3, %s171
      %s173 = smul.u32 32, %s14
      %v175 = vld [vmem:[%s166] sm:$0xf]
      %v176 = vld [vmem:[%s166 + $0x4] sm:$0xf]
      %v177 = vld [vmem:[%s166 + $0x8] sm:$0xf]
      %v178 = vld [vmem:[%s166 + $0xc] sm:$0xf]
      %v179 = vld [vmem:[%s166 + $0x10] sm:$0xf]
      %v180 = vld [vmem:[%s166 + $0x14] sm:$0xf]
      %v181 = vld [vmem:[%s166 + $0x18] sm:$0xf]
      %v182 = vld [vmem:[%s166 + $0x1c] sm:$0xf]
      %v183 = vld [vmem:[%s166 + $0x20] sm:$0xf]
      %v184 = vld [vmem:[%s166 + $0x24] sm:$0xf]
      %v185 = vld [vmem:[%s166 + $0x28] sm:$0xf]
      %v186 = vld [vmem:[%s166 + $0x2c] sm:$0xf]
      %v187 = vld [vmem:[%s166 + $0x30] sm:$0xf]
      %v188 = vld [vmem:[%s166 + $0x34] sm:$0xf]
      %v189 = vld [vmem:[%s166 + $0x38] sm:$0xf]
      %v190 = vld [vmem:[%s166 + $0x3c] sm:$0xf]
      %v191 = vld [vmem:[%s166 + $0x40] sm:$0xf]
      %v192 = vld [vmem:[%s166 + $0x44] sm:$0xf]
      %v193 = vld [vmem:[%s166 + $0x48] sm:$0xf]
      %v194 = vld [vmem:[%s166 + $0x4c] sm:$0xf]
      %v195 = vld [vmem:[%s166 + $0x50] sm:$0xf]
      %v196 = vld [vmem:[%s166 + $0x54] sm:$0xf]
      %v197 = vld [vmem:[%s166 + $0x58] sm:$0xf]
      %v198 = vld [vmem:[%s166 + $0x5c] sm:$0xf]
      %v199 = vld [vmem:[%s166 + $0x60] sm:$0xf]
      %v200 = vld [vmem:[%s166 + $0x64] sm:$0xf]
      %v201 = vld [vmem:[%s166 + $0x68] sm:$0xf]
      %v202 = vld [vmem:[%s166 + $0x6c] sm:$0xf]
      %v203 = vld [vmem:[%s166 + $0x70] sm:$0xf]
      %v204 = vld [vmem:[%s166 + $0x74] sm:$0xf]
      %v205 = vld [vmem:[%s166 + $0x78] sm:$0xf]
      %v206 = vld [vmem:[%s166 + $0x7c] sm:$0xf]
      %v207 = vld [vmem:[%s1] sm:$0xf]
      %v208 = vld [vmem:[%s1 + $0x4] sm:$0xf]
      %v209 = vld [vmem:[%s1 + $0x8] sm:$0xf]
      %v210 = vld [vmem:[%s1 + $0xc] sm:$0xf]
      %v211 = vld [vmem:[%s1 + $0x10] sm:$0xf]
      %v212 = vld [vmem:[%s1 + $0x14] sm:$0xf]
      %v213 = vld [vmem:[%s1 + $0x18] sm:$0xf]
      %v214 = vld [vmem:[%s1 + $0x1c] sm:$0xf]
      %v215 = vld [vmem:[%s1 + $0x20] sm:$0xf]
      %v216 = vld [vmem:[%s1 + $0x24] sm:$0xf]
      %v217 = vld [vmem:[%s1 + $0x28] sm:$0xf]
      %v218 = vld [vmem:[%s1 + $0x2c] sm:$0xf]
      %v219 = vld [vmem:[%s2] sm:$0x1]
      %v221 = vlaneseq
      %v222 = vshrl.u32 %v221, 7
      %v223 = vsub.s32 0, %v222
      %v224 = vrot.slane %v219, %v223
      %v258 = vunpack.c.l.b16 %v175
      %v259 = vunpack.c.l.b16 %v176
      %v260 = vunpack.c.l.b16 %v177
      %v261 = vunpack.c.l.b16 %v178
      %v262 = vunpack.c.l.b16 %v179
      %v263 = vunpack.c.l.b16 %v180
      %v264 = vunpack.c.l.b16 %v181
      %v265 = vunpack.c.l.b16 %v182
      %v266 = vunpack.c.l.b16 %v183
      %v267 = vunpack.c.l.b16 %v184
      %v268 = vunpack.c.l.b16 %v185
      %v269 = vunpack.c.l.b16 %v186
      %v270 = vunpack.c.l.b16 %v187
      %v271 = vunpack.c.l.b16 %v188
      %v272 = vunpack.c.l.b16 %v189
      %v273 = vunpack.c.l.b16 %v190
      %v274 = vunpack.c.l.b16 %v191
      %v275 = vunpack.c.l.b16 %v192
      %v276 = vunpack.c.l.b16 %v193
      %v277 = vunpack.c.l.b16 %v194
      %v278 = vunpack.c.l.b16 %v195
      %v279 = vunpack.c.l.b16 %v196
      %v280 = vunpack.c.l.b16 %v197
      %v281 = vunpack.c.l.b16 %v198
      %v282 = vunpack.c.l.b16 %v199
      %v283 = vunpack.c.l.b16 %v200
      %v284 = vunpack.c.l.b16 %v201
      %v285 = vunpack.c.l.b16 %v202
      %v286 = vunpack.c.l.b16 %v203
      %v287 = vunpack.c.l.b16 %v204
      %v288 = vunpack.c.l.b16 %v205
      %v289 = vunpack.c.l.b16 %v206
      %v290 = vpack.c.b16 %v259, %v258
      %v291 = vpack.c.b16 %v261, %v260
      %v292 = vpack.c.b16 %v263, %v262
      %v293 = vpack.c.b16 %v265, %v264
      %v294 = vpack.c.b16 %v267, %v266
      %v295 = vpack.c.b16 %v269, %v268
      %v296 = vpack.c.b16 %v271, %v270
      %v297 = vpack.c.b16 %v273, %v272
      %v298 = vpack.c.b16 %v275, %v274
      %v299 = vpack.c.b16 %v277, %v276
      %v300 = vpack.c.b16 %v279, %v278
      %v301 = vpack.c.b16 %v281, %v280
      %v302 = vpack.c.b16 %v283, %v282
      %v303 = vpack.c.b16 %v285, %v284
      %v304 = vpack.c.b16 %v287, %v286
      %v305 = vpack.c.b16 %v289, %v288
      %v318 = vunpack.c.l.b16 %v207
      %v319 = vunpack.c.l.b16 %v208
      %v320 = vunpack.c.l.b16 %v209
      %v321 = vunpack.c.l.b16 %v210
      %v322 = vunpack.c.l.b16 %v211
      %v323 = vunpack.c.l.b16 %v212
      %v324 = vunpack.c.l.b16 %v213
      %v325 = vunpack.c.l.b16 %v214
      %v326 = vunpack.c.l.b16 %v215
      %v327 = vunpack.c.l.b16 %v216
      %v328 = vunpack.c.l.b16 %v217
      %v329 = vunpack.c.l.b16 %v218
      %v330 = vpack.c.b16 %v319, %v318
      %v331 = vpack.c.b16 %v321, %v320
      %v332 = vpack.c.b16 %v323, %v322
      %v333 = vpack.c.b16 %v325, %v324
      %v334 = vpack.c.b16 %v327, %v326
      %v335 = vpack.c.b16 %v329, %v328
      %vm342 = vcmask 785408
      %v344 = vsel %vm342, %v290, 0
      %v347 = vsel %vm342, %v291, 0
      %v350 = vsel %vm342, %v292, 0
      %v353 = vsel %vm342, %v293, 0
      %v356 = vsel %vm342, %v294, 0
      %v359 = vsel %vm342, %v295, 0
      %v362 = vsel %vm342, %v296, 0
      %v365 = vsel %vm342, %v297, 0
      %v368 = vsel %vm342, %v298, 0
      %v371 = vsel %vm342, %v299, 0
      %v374 = vsel %vm342, %v300, 0
      %v377 = vsel %vm342, %v301, 0
      %v380 = vsel %vm342, %v302, 0
      %v383 = vsel %vm342, %v303, 0
      %v386 = vsel %vm342, %v304, 0
      %v389 = vsel %vm342, %v305, 0
      %391 = vmatprep.subr.bf16.mxu0 0
      %392 = vmatpush1.bf16.msra.mxu0 %v330
      %393 = vmatprep.subr.bf16.mxu0 0
      %394 = vmatpush1.bf16.msra.mxu0 %v331
      %395 = vmatprep.subr.bf16.mxu0 0
      %396 = vmatpush1.bf16.msra.mxu0 %v332
      %397 = vmatprep.subr.bf16.mxu0 0
      %398 = vmatpush1.bf16.msra.mxu0 %v333
      %399 = vmatprep.subr.bf16.mxu0 0
      %400 = vmatpush1.bf16.msra.mxu0 %v334
      %401 = vmatprep.subr.bf16.mxu0 0
      %402 = vmatpush1.bf16.msra.mxu0 %v335
      %403 = vmatprep.subr.bf16.mxu0 0
      %404 = vmatpush1.bf16.msra.mxu0 0
      %405 = vmatprep.subr.bf16.mxu0 0
      %406 = vmatpush1.bf16.msra.mxu0 0
      %407 = vmatprep.subr.bf16.mxu0 0
      %408 = vmatpush1.bf16.msra.mxu0 0
      %409 = vmatprep.subr.bf16.mxu0 0
      %410 = vmatpush1.bf16.msra.mxu0 0
      %411 = vmatprep.subr.bf16.mxu0 0
      %412 = vmatpush1.bf16.msra.mxu0 0
      %413 = vmatprep.subr.bf16.mxu0 0
      %414 = vmatpush1.bf16.msra.mxu0 0
      %415 = vmatprep.subr.bf16.mxu0 0
      %416 = vmatpush1.bf16.msra.mxu0 0
      %417 = vmatprep.subr.bf16.mxu0 0
      %418 = vmatpush1.bf16.msra.mxu0 0
      %419 = vmatprep.subr.bf16.mxu0 0
      %420 = vmatpush1.bf16.msra.mxu0 0
      %421 = vmatprep.subr.bf16.mxu0 0
      %422 = vmatpush1.bf16.msra.mxu0 0
      %423 = vmatprep.mubr.bf16.mxu0 0
      %424 = vmatmul.mubr.bf16.gmra.mrb[0].mxu0 %v344
      %v425 = vpop.f32.mrb[0].mxu0
      %v426 = vadd.f32 %v224, %v425
      %v427 = vpop.f32.mrb[0].mxu0
      %v428 = vpop.f32.mrb[0].mxu0
      %v429 = vadd.f32 %v224, %v428
      %v430 = vpop.f32.mrb[0].mxu0
      %431 = vmatprep.mubr.bf16.mxu0 0
      %432 = vmatmul.mubr.bf16.gmra.mrb[0].mxu0 %v347
      %v433 = vpop.f32.mrb[0].mxu0
      %v434 = vadd.f32 %v224, %v433
      %v435 = vpop.f32.mrb[0].mxu0
      %v436 = vpop.f32.mrb[0].mxu0
      %v437 = vadd.f32 %v224, %v436
      %v438 = vpop.f32.mrb[0].mxu0
      %439 = vmatprep.mubr.bf16.mxu0 0
      %440 = vmatmul.mubr.bf16.gmra.mrb[0].mxu0 %v350
      %v441 = vpop.f32.mrb[0].mxu0
      %v442 = vadd.f32 %v224, %v441
      %v443 = vpop.f32.mrb[0].mxu0
      %v444 = vpop.f32.mrb[0].mxu0
      %v445 = vadd.f32 %v224, %v444
      %v446 = vpop.f32.mrb[0].mxu0
      %447 = vmatprep.mubr.bf16.mxu0 0
      %448 = vmatmul.mubr.bf16.gmra.mrb[0].mxu0 %v353
      %v449 = vpop.f32.mrb[0].mxu0
      %v450 = vadd.f32 %v224, %v449
      %v451 = vpop.f32.mrb[0].mxu0
      %v452 = vpop.f32.mrb[0].mxu0
      %v453 = vadd.f32 %v224, %v452
      %v454 = vpop.f32.mrb[0].mxu0
      %455 = vmatprep.mubr.bf16.mxu0 0
      %456 = vmatmul.mubr.bf16.gmra.mrb[0].mxu0 %v356
      %v457 = vpop.f32.mrb[0].mxu0
      %v458 = vadd.f32 %v224, %v457
      %v459 = vpop.f32.mrb[0].mxu0
      %v460 = vpop.f32.mrb[0].mxu0
      %v461 = vadd.f32 %v224, %v460
      %v462 = vpop.f32.mrb[0].mxu0
      %463 = vmatprep.mubr.bf16.mxu0 0
      %464 = vmatmul.mubr.bf16.gmra.mrb[0].mxu0 %v359
      %v465 = vpop.f32.mrb[0].mxu0
      %v466 = vadd.f32 %v224, %v465
      %v467 = vpop.f32.mrb[0].mxu0
      %v468 = vpop.f32.mrb[0].mxu0
      %v469 = vadd.f32 %v224, %v468
      %v470 = vpop.f32.mrb[0].mxu0
      %471 = vmatprep.mubr.bf16.mxu0 0
      %472 = vmatmul.mubr.bf16.gmra.mrb[0].mxu0 %v362
      %v473 = vpop.f32.mrb[0].mxu0
      %v474 = vadd.f32 %v224, %v473
      %v475 = vpop.f32.mrb[0].mxu0
      %v476 = vpop.f32.mrb[0].mxu0
      %v477 = vadd.f32 %v224, %v476
      %v478 = vpop.f32.mrb[0].mxu0
      %479 = vmatprep.mubr.bf16.mxu0 0
      %480 = vmatmul.mubr.bf16.gmra.mrb[0].mxu0 %v365
      %v481 = vpop.f32.mrb[0].mxu0
      %v482 = vadd.f32 %v224, %v481
      %v483 = vpop.f32.mrb[0].mxu0
      %v484 = vpop.f32.mrb[0].mxu0
      %v485 = vadd.f32 %v224, %v484
      %v486 = vpop.f32.mrb[0].mxu0
      %487 = vmatprep.mubr.bf16.mxu0 0
      %488 = vmatmul.mubr.bf16.gmra.mrb[0].mxu0 %v368
      %v489 = vpop.f32.mrb[0].mxu0
      %v490 = vadd.f32 %v224, %v489
      %v491 = vpop.f32.mrb[0].mxu0
      %v492 = vpop.f32.mrb[0].mxu0
      %v493 = vadd.f32 %v224, %v492
      %v494 = vpop.f32.mrb[0].mxu0
      %495 = vmatprep.mubr.bf16.mxu0 0
      %496 = vmatmul.mubr.bf16.gmra.mrb[0].mxu0 %v371
      %v497 = vpop.f32.mrb[0].mxu0
      %v498 = vadd.f32 %v224, %v497
      %v499 = vpop.f32.mrb[0].mxu0
      %v500 = vpop.f32.mrb[0].mxu0
      %v501 = vadd.f32 %v224, %v500
      %v502 = vpop.f32.mrb[0].mxu0
      %503 = vmatprep.mubr.bf16.mxu0 0
      %504 = vmatmul.mubr.bf16.gmra.mrb[0].mxu0 %v374
      %v505 = vpop.f32.mrb[0].mxu0
      %v506 = vadd.f32 %v224, %v505
      %v507 = vpop.f32.mrb[0].mxu0
      %v508 = vpop.f32.mrb[0].mxu0
      %v509 = vadd.f32 %v224, %v508
      %v510 = vpop.f32.mrb[0].mxu0
      %511 = vmatprep.mubr.bf16.mxu0 0
      %512 = vmatmul.mubr.bf16.gmra.mrb[0].mxu0 %v377
      %v513 = vpop.f32.mrb[0].mxu0
      %v514 = vadd.f32 %v224, %v513
      %v515 = vpop.f32.mrb[0].mxu0
      %v516 = vpop.f32.mrb[0].mxu0
      %v517 = vadd.f32 %v224, %v516
      %v518 = vpop.f32.mrb[0].mxu0
      %519 = vmatprep.mubr.bf16.mxu0 0
      %520 = vmatmul.mubr.bf16.gmra.mrb[0].mxu0 %v380
      %v521 = vpop.f32.mrb[0].mxu0
      %v522 = vadd.f32 %v224, %v521
      %v523 = vpop.f32.mrb[0].mxu0
      %v524 = vpop.f32.mrb[0].mxu0
      %v525 = vadd.f32 %v224, %v524
      %v526 = vpop.f32.mrb[0].mxu0
      %527 = vmatprep.mubr.bf16.mxu0 0
      %528 = vmatmul.mubr.bf16.gmra.mrb[0].mxu0 %v383
      %v529 = vpop.f32.mrb[0].mxu0
      %v530 = vadd.f32 %v224, %v529
      %v531 = vpop.f32.mrb[0].mxu0
      %v532 = vpop.f32.mrb[0].mxu0
      %v533 = vadd.f32 %v224, %v532
      %v534 = vpop.f32.mrb[0].mxu0
      %535 = vmatprep.mubr.bf16.mxu0 0
      %536 = vmatmul.mubr.bf16.gmra.mrb[0].mxu0 %v386
      %v537 = vpop.f32.mrb[0].mxu0
      %v538 = vadd.f32 %v224, %v537
      %v539 = vpop.f32.mrb[0].mxu0
      %v540 = vpop.f32.mrb[0].mxu0
      %v541 = vadd.f32 %v224, %v540
      %v542 = vpop.f32.mrb[0].mxu0
      %543 = vmatprep.mubr.bf16.mxu0 0
      %544 = vmatmul.mubr.bf16.gmra.mrb[0].mxu0 %v389
      %v545 = vpop.f32.mrb[0].mxu0
      %v546 = vadd.f32 %v224, %v545
      %v547 = vpop.f32.mrb[0].mxu0
      %v548 = vpop.f32.mrb[0].mxu0
      %v549 = vadd.f32 %v224, %v548
      %v550 = vpop.f32.mrb[0].mxu0
      %551 = vdwg.mxu0
      %v552 = vmul.f32 %v426, 0.2
      %v553 = vmul.f32 %v429, 0.2
      %v554 = vmul.f32 %v434, 0.2
      %v555 = vmul.f32 %v437, 0.2
      %v556 = vmul.f32 %v442, 0.2
      %v557 = vmul.f32 %v445, 0.2
      %v558 = vmul.f32 %v450, 0.2
      %v559 = vmul.f32 %v453, 0.2
      %v560 = vmul.f32 %v458, 0.2
      %v561 = vmul.f32 %v461, 0.2
      %v562 = vmul.f32 %v466, 0.2
      %v563 = vmul.f32 %v469, 0.2
      %v564 = vmul.f32 %v474, 0.2
      %v565 = vmul.f32 %v477, 0.2
      %v566 = vmul.f32 %v482, 0.2
      %v567 = vmul.f32 %v485, 0.2
      %v568 = vmul.f32 %v490, 0.2
      %v569 = vmul.f32 %v493, 0.2
      %v570 = vmul.f32 %v498, 0.2
      %v571 = vmul.f32 %v501, 0.2
      %v572 = vmul.f32 %v506, 0.2
      %v573 = vmul.f32 %v509, 0.2
      %v574 = vmul.f32 %v514, 0.2
      %v575 = vmul.f32 %v517, 0.2
      %v576 = vmul.f32 %v522, 0.2
      %v577 = vmul.f32 %v525, 0.2
      %v578 = vmul.f32 %v530, 0.2
      %v579 = vmul.f32 %v533, 0.2
      %v580 = vmul.f32 %v538, 0.2
      %v581 = vmul.f32 %v541, 0.2
      %v582 = vmul.f32 %v546, 0.2
      %v583 = vmul.f32 %v549, 0.2
      %v584 = vmax.f32 %v426, %v552
      %v585 = vmax.f32 %v429, %v553
      %v586 = vmax.f32 %v434, %v554
      %v587 = vmax.f32 %v437, %v555
      %v588 = vmax.f32 %v442, %v556
      %v589 = vmax.f32 %v445, %v557
      %v590 = vmax.f32 %v450, %v558
      %v591 = vmax.f32 %v453, %v559
      %v592 = vmax.f32 %v458, %v560
      %v593 = vmax.f32 %v461, %v561
      %v594 = vmax.f32 %v466, %v562
      %v595 = vmax.f32 %v469, %v563
      %v596 = vmax.f32 %v474, %v564
      %v597 = vmax.f32 %v477, %v565
      %v598 = vmax.f32 %v482, %v566
      %v599 = vmax.f32 %v485, %v567
      %v600 = vmax.f32 %v490, %v568
      %v601 = vmax.f32 %v493, %v569
      %v602 = vmax.f32 %v498, %v570
      %v603 = vmax.f32 %v501, %v571
      %v604 = vmax.f32 %v506, %v572
      %v605 = vmax.f32 %v509, %v573
      %v606 = vmax.f32 %v514, %v574
      %v607 = vmax.f32 %v517, %v575
      %v608 = vmax.f32 %v522, %v576
      %v609 = vmax.f32 %v525, %v577
      %v610 = vmax.f32 %v530, %v578
      %v611 = vmax.f32 %v533, %v579
      %v612 = vmax.f32 %v538, %v580
      %v613 = vmax.f32 %v541, %v581
      %v614 = vmax.f32 %v546, %v582
      %v615 = vmax.f32 %v549, %v583
      %v616 = vpack.c.bf16 %v585, %v584
      %v617 = vpack.c.bf16 %v587, %v586
      %v618 = vpack.c.bf16 %v589, %v588
      %v619 = vpack.c.bf16 %v591, %v590
      %v620 = vpack.c.bf16 %v593, %v592
      %v621 = vpack.c.bf16 %v595, %v594
      %v622 = vpack.c.bf16 %v597, %v596
      %v623 = vpack.c.bf16 %v599, %v598
      %v624 = vpack.c.bf16 %v601, %v600
      %v625 = vpack.c.bf16 %v603, %v602
      %v626 = vpack.c.bf16 %v605, %v604
      %v627 = vpack.c.bf16 %v607, %v606
      %v628 = vpack.c.bf16 %v609, %v608
      %v629 = vpack.c.bf16 %v611, %v610
      %v630 = vpack.c.bf16 %v613, %v612
      %v631 = vpack.c.bf16 %v615, %v614
      %v648 = vunpack.c.l.b16 %v616
      %v649 = vunpack.c.h.b16 %v616
      %v650 = vunpack.c.l.b16 %v617
      %v651 = vunpack.c.h.b16 %v617
      %v652 = vunpack.c.l.b16 %v618
      %v653 = vunpack.c.h.b16 %v618
      %v654 = vunpack.c.l.b16 %v619
      %v655 = vunpack.c.h.b16 %v619
      %v656 = vunpack.c.l.b16 %v620
      %v657 = vunpack.c.h.b16 %v620
      %v658 = vunpack.c.l.b16 %v621
      %v659 = vunpack.c.h.b16 %v621
      %v660 = vunpack.c.l.b16 %v622
      %v661 = vunpack.c.h.b16 %v622
      %v662 = vunpack.c.l.b16 %v623
      %v663 = vunpack.c.h.b16 %v623
      %v664 = vunpack.c.l.b16 %v624
      %v665 = vunpack.c.h.b16 %v624
      %v666 = vunpack.c.l.b16 %v625
      %v667 = vunpack.c.h.b16 %v625
      %v668 = vunpack.c.l.b16 %v626
      %v669 = vunpack.c.h.b16 %v626
      %v670 = vunpack.c.l.b16 %v627
      %v671 = vunpack.c.h.b16 %v627
      %v672 = vunpack.c.l.b16 %v628
      %v673 = vunpack.c.h.b16 %v628
      %v674 = vunpack.c.l.b16 %v629
      %v675 = vunpack.c.h.b16 %v629
      %v676 = vunpack.c.l.b16 %v630
      %v677 = vunpack.c.h.b16 %v630
      %v678 = vunpack.c.l.b16 %v631
      %v679 = vunpack.c.h.b16 %v631
      %v680 = vpack.c.b16 %v648, %v648
      %v681 = vpack.c.b16 %v649, %v649
      %v682 = vpack.c.b16 %v650, %v650
      %v683 = vpack.c.b16 %v651, %v651
      %v684 = vpack.c.b16 %v652, %v652
      %v685 = vpack.c.b16 %v653, %v653
      %v686 = vpack.c.b16 %v654, %v654
      %v687 = vpack.c.b16 %v655, %v655
      %v688 = vpack.c.b16 %v656, %v656
      %v689 = vpack.c.b16 %v657, %v657
      %v690 = vpack.c.b16 %v658, %v658
      %v691 = vpack.c.b16 %v659, %v659
      %v692 = vpack.c.b16 %v660, %v660
      %v693 = vpack.c.b16 %v661, %v661
      %v694 = vpack.c.b16 %v662, %v662
      %v695 = vpack.c.b16 %v663, %v663
      %v696 = vpack.c.b16 %v664, %v664
      %v697 = vpack.c.b16 %v665, %v665
      %v698 = vpack.c.b16 %v666, %v666
      %v699 = vpack.c.b16 %v667, %v667
      %v700 = vpack.c.b16 %v668, %v668
      %v701 = vpack.c.b16 %v669, %v669
      %v702 = vpack.c.b16 %v670, %v670
      %v703 = vpack.c.b16 %v671, %v671
      %v704 = vpack.c.b16 %v672, %v672
      %v705 = vpack.c.b16 %v673, %v673
      %v706 = vpack.c.b16 %v674, %v674
      %v707 = vpack.c.b16 %v675, %v675
      %v708 = vpack.c.b16 %v676, %v676
      %v709 = vpack.c.b16 %v677, %v677
      %v710 = vpack.c.b16 %v678, %v678
      %v711 = vpack.c.b16 %v679, %v679
      %744 = vst [vmem:[%s172] sm:$0xf] %v680
      %745 = vst [vmem:[%s172 + $0x4] sm:$0xf] %v681
      %746 = vst [vmem:[%s172 + $0x8] sm:$0xf] %v682
      %747 = vst [vmem:[%s172 + $0xc] sm:$0xf] %v683
      %748 = vst [vmem:[%s172 + $0x10] sm:$0xf] %v684
      %749 = vst [vmem:[%s172 + $0x14] sm:$0xf] %v685
      %750 = vst [vmem:[%s172 + $0x18] sm:$0xf] %v686
      %751 = vst [vmem:[%s172 + $0x1c] sm:$0xf] %v687
      %752 = vst [vmem:[%s172 + $0x20] sm:$0xf] %v688
      %753 = vst [vmem:[%s172 + $0x24] sm:$0xf] %v689
      %754 = vst [vmem:[%s172 + $0x28] sm:$0xf] %v690
      %755 = vst [vmem:[%s172 + $0x2c] sm:$0xf] %v691
      %756 = vst [vmem:[%s172 + $0x30] sm:$0xf] %v692
      %757 = vst [vmem:[%s172 + $0x34] sm:$0xf] %v693
      %758 = vst [vmem:[%s172 + $0x38] sm:$0xf] %v694
      %759 = vst [vmem:[%s172 + $0x3c] sm:$0xf] %v695
      %760 = vst [vmem:[%s172 + $0x40] sm:$0xf] %v696
      %761 = vst [vmem:[%s172 + $0x44] sm:$0xf] %v697
      %762 = vst [vmem:[%s172 + $0x48] sm:$0xf] %v698
      %763 = vst [vmem:[%s172 + $0x4c] sm:$0xf] %v699
      %764 = vst [vmem:[%s172 + $0x50] sm:$0xf] %v700
      %765 = vst [vmem:[%s172 + $0x54] sm:$0xf] %v701
      %766 = vst [vmem:[%s172 + $0x58] sm:$0xf] %v702
      %767 = vst [vmem:[%s172 + $0x5c] sm:$0xf] %v703
      %768 = vst [vmem:[%s172 + $0x60] sm:$0xf] %v704
      %769 = vst [vmem:[%s172 + $0x64] sm:$0xf] %v705
      %770 = vst [vmem:[%s172 + $0x68] sm:$0xf] %v706
      %771 = vst [vmem:[%s172 + $0x6c] sm:$0xf] %v707
      %772 = vst [vmem:[%s172 + $0x70] sm:$0xf] %v708
      %773 = vst [vmem:[%s172 + $0x74] sm:$0xf] %v709
      %774 = vst [vmem:[%s172 + $0x78] sm:$0xf] %v710
      %775 = vst [vmem:[%s172 + $0x7c] sm:$0xf] %v711
      %s776 = smul.u32 32, %s14
      %p777 = scmp.lt.s32.totalorder %s776, 63
      %s778 = scalar_select %p777, %s776, 63
      %s779 = smul.addr %s778, 4
      %s780 = scalar_lea.vmem %s3, %s779
      // Predicated region
      $region33: #{spa_discriminator_forward.8} parent=31 // pred_check
        %p781 = pneg %p100
      $region34: #{spa_discriminator_forward.8} parent=31 // pred_check_branch
        %783 = sbr.rel (%p781) target = $region36
      $region35: #{spa_discriminator_forward.8} parent=31 // pred_region
        %s784 = smul.u32 32, %s14
      $region36: #{spa_discriminator_forward.8} parent=31 // pred_fallthru
        _
    $region32: #{spa_discriminator_forward.8} parent=5 // pred_fallthru
      _
    %p785 = scmp.le.s32.totalorder 2, %s9
    // Predicated region
    $region37: #{spa_discriminator_forward.8} parent=5 // pred_check
      %p786 = pneg %p785
    $region38: #{spa_discriminator_forward.8} parent=5 // pred_check_branch
      %788 = sbr.rel (%p786) target = $region40
    $region39: #{spa_discriminator_forward.8} parent=5 // pred_region
      %s789 = ssub.s32 %s9, 2
      // Predicated region
      $region41: #{spa_discriminator_forward.8} parent=39 // pred_check
        %p790 = pneg %p106
      $region42: #{spa_discriminator_forward.8} parent=39 // pred_check_branch
        %792 = sbr.rel (%p790) target = $region44
      $region43: #{spa_discriminator_forward.8} parent=39 // pred_region
        %s793 = smul.u32 32, %s15
        %p794 = scmp.lt.s32.totalorder %s793, 63
        %s795 = scalar_select %p794, %s793, 63
        %s796 = smul.addr %s795, 4
        %s797 = scalar_lea.vmem %s3, %s796
      $region44: #{spa_discriminator_forward.8} parent=39 // pred_fallthru
        _
    $region40: #{spa_discriminator_forward.8} parent=5 // pred_fallthru
      _
  $region6: #{spa_discriminator_forward.8} parent=0 // loop_footer
    %s13 = sadd.s32 1, %s9
  $region7: #{spa_discriminator_forward.8} parent=0 // loop_footer_branch
    %8 = sbr.rel target = $region3
  $region8: #{spa_discriminator_forward.8} parent=0 // loop_exit
    _

// kernel: spa_discriminator_forward.10
$region0: #{spa_discriminator_forward.10}
  #allocation0 [shape = 'u32[]', space=smem, size = 0x4, offset = 0x4, fixed_abs, tag = 'smem constant byte address 0x4 - core index']
  #allocation1 [shape = 'u32[144,128]{1,0:T(1,128)}', space=vmem, size = 0x12000, scoped, tag = 'internal scratch']
  %s0 = inlined_call_operand.vmem [shape: bf16[128,128], index: 0, kind: input, shape index: {}]
  %s1 = inlined_call_operand.vmem [shape: f32[1,128], index: 1, kind: input, shape index: {}]
  %s2 = inlined_call_operand.vmem [shape: f32[1,128], index: 2, kind: input, shape index: {}]
  %s3 = inlined_call_operand.vmem [shape: bf16[128,128], index: 3, kind: output, shape index: {}]
  %s4 = sld [smem:[#allocation0]]
  $region45: #{spa_discriminator_forward.10} parent=0
    _
  %s6 = ssub.s32 1, %s4
  %s7 = scalar_select 0, %s6, %s4
  loop: start=0, step=1, limit=4
  $region2: #{spa_discriminator_forward.10} parent=0 // loop_pre_header
    _
  $region3: #{spa_discriminator_forward.10} parent=0 // loop_header
    %s9 = sphi 0, %s13
    %p10 = scmp.ge.s32.totalorder %s9, 4
    %s19 = sphi 0, %s21
    %s22 = sphi 0, %s19
    %s23 = sphi 0, %s22
    %s39 = sphi 0, %s23
    %s43 = sphi 0, %s43
    %s45 = sphi 0, %s43
    %s46 = sphi 0, %s45
    %s60 = sphi 0, %s46
    %s64 = sphi 0, %s64
    %s66 = sphi 0, %s64
    %s67 = sphi 0, %s66
    %s81 = sphi 0, %s67
    %s87 = sphi 0, %s89
    %s90 = sphi 0, %s87
    %s91 = sphi 0, %s90
    %s107 = sphi 0, %s91
  $region4: #{spa_discriminator_forward.10} parent=0 // loop_header_branch
    %12 = sbr.rel (%p10) target = $region8
  $region5: #{spa_discriminator_forward.10} parent=0 // loop_body
    %s14 = ssub.s32 %s9, 1
    %s15 = ssub.s32 %s9, 2
    %s16 = sadd.s32 %s9, 1
    %s17 = ssub.s32 %s9, %s16
    %p18 = scmp.eq.s32.totalorder %s17, 0
    %s20 = sadd.s32 %s19, 1
    %s21 = scalar_select %p18, %s19, %s20
    %p24 = pneg %p18
    %p25 = scmp.eq.s32.totalorder %s9, 1
    %p26 = por %p24, %p25
    %p27 = scmp.ne.s32.totalorder %s19, %s22
    %p28 = scmp.eq.s32.totalorder %s9, 0
    %p29 = por %p27, %p28
    %p30 = scmp.ne.s32.totalorder %s19, %s22
    %p31 = scmp.eq.s32.totalorder %s14, 1
    %p32 = por %p30, %p31
    %p33 = scmp.ne.s32.totalorder %s22, %s23
    %p34 = scmp.eq.s32.totalorder %s14, 0
    %p35 = por %p33, %p34
    %p36 = scmp.ne.s32.totalorder %s22, %s23
    %p37 = scmp.eq.s32.totalorder %s15, 1
    %p38 = por %p36, %p37
    %p40 = scmp.ne.s32.totalorder %s23, %s39
    %p41 = scmp.eq.s32.totalorder %s15, 0
    %p42 = por %p40, %p41
    %s44 = sadd.s32 %s43, 1
    %p47 = scmp.eq.s32.totalorder %s9, 1
    %p48 = scmp.ne.s32.totalorder %s43, %s45
    %p49 = scmp.eq.s32.totalorder %s9, 0
    %p50 = por %p48, %p49
    %p51 = scmp.ne.s32.totalorder %s43, %s45
    %p52 = scmp.eq.s32.totalorder %s14, 1
    %p53 = por %p51, %p52
    %p54 = scmp.ne.s32.totalorder %s45, %s46
    %p55 = scmp.eq.s32.totalorder %s14, 0
    %p56 = por %p54, %p55
    %p57 = scmp.ne.s32.totalorder %s45, %s46
    %p58 = scmp.eq.s32.totalorder %s15, 1
    %p59 = por %p57, %p58
    %p61 = scmp.ne.s32.totalorder %s46, %s60
    %p62 = scmp.eq.s32.totalorder %s15, 0
    %p63 = por %p61, %p62
    %s65 = sadd.s32 %s64, 1
    %p68 = scmp.eq.s32.totalorder %s9, 1
    %p69 = scmp.ne.s32.totalorder %s64, %s66
    %p70 = scmp.eq.s32.totalorder %s9, 0
    %p71 = por %p69, %p70
    %p72 = scmp.ne.s32.totalorder %s64, %s66
    %p73 = scmp.eq.s32.totalorder %s14, 1
    %p74 = por %p72, %p73
    %p75 = scmp.ne.s32.totalorder %s66, %s67
    %p76 = scmp.eq.s32.totalorder %s14, 0
    %p77 = por %p75, %p76
    %p78 = scmp.ne.s32.totalorder %s66, %s67
    %p79 = scmp.eq.s32.totalorder %s15, 1
    %p80 = por %p78, %p79
    %p82 = scmp.ne.s32.totalorder %s67, %s81
    %p83 = scmp.eq.s32.totalorder %s15, 0
    %p84 = por %p82, %p83
    %s85 = ssub.s32 %s9, %s16
    %p86 = scmp.eq.s32.totalorder %s85, 0
    %s88 = sadd.s32 %s87, 1
    %s89 = scalar_select %p86, %s87, %s88
    %p92 = pneg %p86
    %p93 = scmp.eq.s32.totalorder %s9, 1
    %p94 = por %p92, %p93
    %p95 = scmp.ne.s32.totalorder %s87, %s90
    %p96 = scmp.eq.s32.totalorder %s9, 0
    %p97 = por %p95, %p96
    %p98 = scmp.ne.s32.totalorder %s87, %s90
    %p99 = scmp.eq.s32.totalorder %s14, 1
    %p100 = por %p98, %p99
    %p101 = scmp.ne.s32.totalorder %s90, %s91
    %p102 = scmp.eq.s32.totalorder %s14, 0
    %p103 = por %p101, %p102
    %p104 = scmp.ne.s32.totalorder %s90, %s91
    %p105 = scmp.eq.s32.totalorder %s15, 1
    %p106 = por %p104, %p105
    %p108 = scmp.ne.s32.totalorder %s91, %s107
    %p109 = scmp.eq.s32.totalorder %s15, 0
    %p110 = por %p108, %p109
    %p111 = scmp.le.s32.totalorder 1, %s9
    %p112 = scmp.lt.s32.totalorder %s9, 3
    %p113 = pnand %p111, %p112
    %p114 = pneg %p113
    // Predicated region
    $region9: #{spa_discriminator_forward.10} parent=5 // pred_check
      _
    $region10: #{spa_discriminator_forward.10} parent=5 // pred_check_branch
      %116 = sbr.rel (%p113) target = $region12
    $region11: #{spa_discriminator_forward.10} parent=5 // pred_region
      %s117 = ssub.s32 %s9, 1
      // Predicated region
      $region13: #{spa_discriminator_forward.10} parent=11 // pred_check
        %p118 = pneg %p56
      $region14: #{spa_discriminator_forward.10} parent=11 // pred_check_branch
        %120 = sbr.rel (%p118) target = $region16
      $region15: #{spa_discriminator_forward.10} parent=11 // pred_region
        _
      $region16: #{spa_discriminator_forward.10} parent=11 // pred_fallthru
        _
      // Predicated region
      $region17: #{spa_discriminator_forward.10} parent=11 // pred_check
        %p121 = pneg %p77
      $region18: #{spa_discriminator_forward.10} parent=11 // pred_check_branch
        %123 = sbr.rel (%p121) target = $region20
      $region19: #{spa_discriminator_forward.10} parent=11 // pred_region
        _
      $region20: #{spa_discriminator_forward.10} parent=11 // pred_fallthru
        _
    $region12: #{spa_discriminator_forward.10} parent=5 // pred_fallthru
      _
    %p124 = scmp.lt.s32.totalorder %s9, 2
    // Predicated region
    $region21: #{spa_discriminator_forward.10} parent=5 // pred_check
      %p125 = pneg %p124
    $region22: #{spa_discriminator_forward.10} parent=5 // pred_check_branch
      %127 = sbr.rel (%p125) target = $region24
    $region23: #{spa_discriminator_forward.10} parent=5 // pred_region
      // Predicated region
      $region25: #{spa_discriminator_forward.10} parent=23 // pred_check
        %p128 = pneg %p29
      $region26: #{spa_discriminator_forward.10} parent=23 // pred_check_branch
        %130 = sbr.rel (%p128) target = $region28
      $region27: #{spa_discriminator_forward.10} parent=23 // pred_region
        %s131 = smul.u32 8, %s9
        %p132 = scmp.lt.s32.totalorder %s131, 15
        %s133 = scalar_select %p132, %s131, 15
        %s134 = smul.addr %s133, 4
        %s135 = scalar_lea.vmem %s0, %s134
        %s136 = smul.u32 8, %s9
      $region28: #{spa_discriminator_forward.10} parent=23 // pred_fallthru
        _
    $region24: #{spa_discriminator_forward.10} parent=5 // pred_fallthru
      _
    %p137 = scmp.le.s32.totalorder 1, %s9
    %p138 = scmp.lt.s32.totalorder %s9, 3
    %p139 = pnand %p137, %p138
    %p140 = pneg %p139
    // Predicated region
    $region29: #{spa_discriminator_forward.10} parent=5 // pred_check
      _
    $region30: #{spa_discriminator_forward.10} parent=5 // pred_check_branch
      %142 = sbr.rel (%p139) target = $region32
    $region31: #{spa_discriminator_forward.10} parent=5 // pred_region
      %s143 = ssub.s32 %s9, 1
      %s144 = smul.u32 8, %s14
      %p145 = scmp.lt.s32.totalorder %s144, 15
      %s146 = scalar_select %p145, %s144, 15
      %s147 = smul.addr %s146, 4
      %s148 = scalar_lea.vmem %s0, %s147
      %p149 = pneg %p35
      %p150 = pneg %p32
      %p151 = pneg %p56
      %p152 = pneg %p53
      %p153 = pneg %p77
      %p154 = pneg %p74
      %p155 = pneg %p103
      %p156 = pneg %p100
      %s157 = smul.u32 8, %s14
      %p158 = scmp.lt.s32.totalorder %s157, 15
      %s159 = scalar_select %p158, %s157, 15
      %s160 = smul.addr %s159, 4
      %s161 = scalar_lea.vmem %s3, %s160
      %s162 = smul.u32 8, %s14
      %p163 = scmp.lt.s32.totalorder %s162, 15
      %s164 = scalar_select %p163, %s162, 15
      %s165 = smul.addr %s164, 4
      %s166 = scalar_lea.vmem %s0, %s165
      %s167 = smul.u32 8, %s14
      %s168 = smul.u32 8, %s14
      %p169 = scmp.lt.s32.totalorder %s168, 15
      %s170 = scalar_select %p169, %s168, 15
      %s171 = smul.addr %s170, 4
      %s172 = scalar_lea.vmem %s3, %s171
      %s173 = smul.u32 8, %s14
      %v174 = vld [vmem:[%s166] sm:$0xf]
      %v175 = vld [vmem:[%s166 + $0x4] sm:$0xf]
      %v176 = vld [vmem:[%s166 + $0x8] sm:$0xf]
      %v177 = vld [vmem:[%s166 + $0xc] sm:$0xf]
      %v178 = vld [vmem:[%s166 + $0x10] sm:$0xf]
      %v179 = vld [vmem:[%s166 + $0x14] sm:$0xf]
      %v180 = vld [vmem:[%s166 + $0x18] sm:$0xf]
      %v181 = vld [vmem:[%s166 + $0x1c] sm:$0xf]
      %v182 = vunpack.c.l.bf16 %v174
      %v183 = vunpack.c.l.bf16 %v175
      %v184 = vunpack.c.l.bf16 %v176
      %v185 = vunpack.c.l.bf16 %v177
      %v186 = vunpack.c.l.bf16 %v178
      %v187 = vunpack.c.l.bf16 %v179
      %v188 = vunpack.c.l.bf16 %v180
      %v189 = vunpack.c.l.bf16 %v181
      %v190 = vld [vmem:[%s1] sm:$0x1]
      %v192 = vlaneseq
      %v193 = vshrl.u32 %v192, 7
      %v194 = vsub.s32 0, %v193
      %v195 = vrot.slane %v190, %v194
      %v197 = vmul.f32 %v182, %v195
      %v198 = vmul.f32 %v183, %v195
      %v199 = vmul.f32 %v184, %v195
      %v200 = vmul.f32 %v185, %v195
      %v201 = vmul.f32 %v186, %v195
      %v202 = vmul.f32 %v187, %v195
      %v203 = vmul.f32 %v188, %v195
      %v204 = vmul.f32 %v189, %v195
      %v205 = vld [vmem:[%s2] sm:$0x1]
      %v207 = vlaneseq
      %v208 = vshrl.u32 %v207, 7
      %v209 = vsub.s32 0, %v208
      %v210 = vrot.slane %v205, %v209
      %v212 = vadd.f32 %v197, %v210
      %v213 = vadd.f32 %v198, %v210
      %v214 = vadd.f32 %v199, %v210
      %v215 = vadd.f32 %v200, %v210
      %v216 = vadd.f32 %v201, %v210
      %v217 = vadd.f32 %v202, %v210
      %v218 = vadd.f32 %v203, %v210
      %v219 = vadd.f32 %v204, %v210
      %v220 = vmul.f32 %v212, 0.2
      %v221 = vmul.f32 %v213, 0.2
      %v222 = vmul.f32 %v214, 0.2
      %v223 = vmul.f32 %v215, 0.2
      %v224 = vmul.f32 %v216, 0.2
      %v225 = vmul.f32 %v217, 0.2
      %v226 = vmul.f32 %v218, 0.2
      %v227 = vmul.f32 %v219, 0.2
      %v228 = vmax.f32 %v212, %v220
      %v229 = vmax.f32 %v213, %v221
      %v230 = vmax.f32 %v214, %v222
      %v231 = vmax.f32 %v215, %v223
      %v232 = vmax.f32 %v216, %v224
      %v233 = vmax.f32 %v217, %v225
      %v234 = vmax.f32 %v218, %v226
      %v235 = vmax.f32 %v219, %v227
      %v236 = vpack.c.bf16 %v229, %v228
      %v237 = vpack.c.bf16 %v231, %v230
      %v238 = vpack.c.bf16 %v233, %v232
      %v239 = vpack.c.bf16 %v235, %v234
      %v244 = vunpack.c.l.b16 %v236
      %v245 = vunpack.c.h.b16 %v236
      %v246 = vunpack.c.l.b16 %v237
      %v247 = vunpack.c.h.b16 %v237
      %v248 = vunpack.c.l.b16 %v238
      %v249 = vunpack.c.h.b16 %v238
      %v250 = vunpack.c.l.b16 %v239
      %v251 = vunpack.c.h.b16 %v239
      %v252 = vpack.c.b16 %v244, %v244
      %v253 = vpack.c.b16 %v245, %v245
      %v254 = vpack.c.b16 %v246, %v246
      %v255 = vpack.c.b16 %v247, %v247
      %v256 = vpack.c.b16 %v248, %v248
      %v257 = vpack.c.b16 %v249, %v249
      %v258 = vpack.c.b16 %v250, %v250
      %v259 = vpack.c.b16 %v251, %v251
      %268 = vst [vmem:[%s172] sm:$0xf] %v252
      %269 = vst [vmem:[%s172 + $0x4] sm:$0xf] %v253
      %270 = vst [vmem:[%s172 + $0x8] sm:$0xf] %v254
      %271 = vst [vmem:[%s172 + $0xc] sm:$0xf] %v255
      %272 = vst [vmem:[%s172 + $0x10] sm:$0xf] %v256
      %273 = vst [vmem:[%s172 + $0x14] sm:$0xf] %v257
      %274 = vst [vmem:[%s172 + $0x18] sm:$0xf] %v258
      %275 = vst [vmem:[%s172 + $0x1c] sm:$0xf] %v259
      %s276 = smul.u32 8, %s14
      %p277 = scmp.lt.s32.totalorder %s276, 15
      %s278 = scalar_select %p277, %s276, 15
      %s279 = smul.addr %s278, 4
      %s280 = scalar_lea.vmem %s3, %s279
      // Predicated region
      $region33: #{spa_discriminator_forward.10} parent=31 // pred_check
        %p281 = pneg %p100
      $region34: #{spa_discriminator_forward.10} parent=31 // pred_check_branch
        %283 = sbr.rel (%p281) target = $region36
      $region35: #{spa_discriminator_forward.10} parent=31 // pred_region
        %s284 = smul.u32 8, %s14
      $region36: #{spa_discriminator_forward.10} parent=31 // pred_fallthru
        _
    $region32: #{spa_discriminator_forward.10} parent=5 // pred_fallthru
      _
    %p285 = scmp.le.s32.totalorder 2, %s9
    // Predicated region
    $region37: #{spa_discriminator_forward.10} parent=5 // pred_check
      %p286 = pneg %p285
    $region38: #{spa_discriminator_forward.10} parent=5 // pred_check_branch
      %288 = sbr.rel (%p286) target = $region40
    $region39: #{spa_discriminator_forward.10} parent=5 // pred_region
      %s289 = ssub.s32 %s9, 2
      // Predicated region
      $region41: #{spa_discriminator_forward.10} parent=39 // pred_check
        %p290 = pneg %p106
      $region42: #{spa_discriminator_forward.10} parent=39 // pred_check_branch
        %292 = sbr.rel (%p290) target = $region44
      $region43: #{spa_discriminator_forward.10} parent=39 // pred_region
        %s293 = smul.u32 8, %s15
        %p294 = scmp.lt.s32.totalorder %s293, 15
        %s295 = scalar_select %p294, %s293, 15
        %s296 = smul.addr %s295, 4
        %s297 = scalar_lea.vmem %s3, %s296
      $region44: #{spa_discriminator_forward.10} parent=39 // pred_fallthru
        _
    $region40: #{spa_discriminator_forward.10} parent=5 // pred_fallthru
      _
  $region6: #{spa_discriminator_forward.10} parent=0 // loop_footer
    %s13 = sadd.s32 1, %s9
  $region7: #{spa_discriminator_forward.10} parent=0 // loop_footer_branch
    %8 = sbr.rel target = $region3
  $region8: #{spa_discriminator_forward.10} parent=0 // loop_exit
    _

// kernel: spa_discriminator_forward.9
$region0: #{spa_discriminator_forward.9}
  #allocation0 [shape = 'u32[]', space=smem, size = 0x4, offset = 0x4, fixed_abs, tag = 'smem constant byte address 0x4 - core index']
  #allocation1 [shape = 'u32[144,128]{1,0:T(1,128)}', space=vmem, size = 0x12000, scoped, tag = 'internal scratch']
  %s0 = inlined_call_operand.vmem [shape: bf16[128,256], index: 0, kind: input, shape index: {}]
  %s1 = inlined_call_operand.vmem [shape: bf16[256,128], index: 1, kind: input, shape index: {}]
  %s2 = inlined_call_operand.vmem [shape: f32[1,128], index: 2, kind: input, shape index: {}]
  %s3 = inlined_call_operand.vmem [shape: bf16[128,128], index: 3, kind: output, shape index: {0}]
  %s4 = inlined_call_operand.vmem [shape: f32[2,2,128], index: 4, kind: output, shape index: {1}]
  %5 = xla_tuple %s3, %s4
  %s6 = sld [smem:[#allocation0]]
  $region53: #{spa_discriminator_forward.9} parent=0
    _
  %s8 = ssub.s32 1, %s6
  %s9 = scalar_select 0, %s8, %s6
  loop: start=0, step=1, limit=4
  $region2: #{spa_discriminator_forward.9} parent=0 // loop_pre_header
    _
  $region3: #{spa_discriminator_forward.9} parent=0 // loop_header
    %s11 = sphi 0, %s15
    %p12 = scmp.ge.s32.totalorder %s11, 4
    %s21 = sphi 0, %s23
    %s24 = sphi 0, %s21
    %s25 = sphi 0, %s24
    %s41 = sphi 0, %s25
    %s45 = sphi 0, %s45
    %s47 = sphi 0, %s45
    %s48 = sphi 0, %s47
    %s62 = sphi 0, %s48
    %s66 = sphi 0, %s66
    %s68 = sphi 0, %s66
    %s69 = sphi 0, %s68
    %s83 = sphi 0, %s69
    %s89 = sphi 0, %s91
    %s92 = sphi 0, %s89
    %s93 = sphi 0, %s92
    %s109 = sphi 0, %s93
    %s115 = sphi 0, %s117
    %s118 = sphi 0, %s115
    %s119 = sphi 0, %s118
    %s135 = sphi 0, %s119
  $region4: #{spa_discriminator_forward.9} parent=0 // loop_header_branch
    %14 = sbr.rel (%p12) target = $region8
  $region5: #{spa_discriminator_forward.9} parent=0 // loop_body
    %s16 = ssub.s32 %s11, 1
    %s17 = ssub.s32 %s11, 2
    %s18 = sadd.s32 %s11, 1
    %s19 = ssub.s32 %s11, %s18
    %p20 = scmp.eq.s32.totalorder %s19, 0
    %s22 = sadd.s32 %s21, 1
    %s23 = scalar_select %p20, %s21, %s22
    %p26 = pneg %p20
    %p27 = scmp.eq.s32.totalorder %s11, 1
    %p28 = por %p26, %p27
    %p29 = scmp.ne.s32.totalorder %s21, %s24
    %p30 = scmp.eq.s32.totalorder %s11, 0
    %p31 = por %p29, %p30
    %p32 = scmp.ne.s32.totalorder %s21, %s24
    %p33 = scmp.eq.s32.totalorder %s16, 1
    %p34 = por %p32, %p33
    %p35 = scmp.ne.s32.totalorder %s24, %s25
    %p36 = scmp.eq.s32.totalorder %s16, 0
    %p37 = por %p35, %p36
    %p38 = scmp.ne.s32.totalorder %s24, %s25
    %p39 = scmp.eq.s32.totalorder %s17, 1
    %p40 = por %p38, %p39
    %p42 = scmp.ne.s32.totalorder %s25, %s41
    %p43 = scmp.eq.s32.totalorder %s17, 0
    %p44 = por %p42, %p43
    %s46 = sadd.s32 %s45, 1
    %p49 = scmp.eq.s32.totalorder %s11, 1
    %p50 = scmp.ne.s32.totalorder %s45, %s47
    %p51 = scmp.eq.s32.totalorder %s11, 0
    %p52 = por %p50, %p51
    %p53 = scmp.ne.s32.totalorder %s45, %s47
    %p54 = scmp.eq.s32.totalorder %s16, 1
    %p55 = por %p53, %p54
    %p56 = scmp.ne.s32.totalorder %s47, %s48
    %p57 = scmp.eq.s32.totalorder %s16, 0
    %p58 = por %p56, %p57
    %p59 = scmp.ne.s32.totalorder %s47, %s48
    %p60 = scmp.eq.s32.totalorder %s17, 1
    %p61 = por %p59, %p60
    %p63 = scmp.ne.s32.totalorder %s48, %s62
    %p64 = scmp.eq.s32.totalorder %s17, 0
    %p65 = por %p63, %p64
    %s67 = sadd.s32 %s66, 1
    %p70 = scmp.eq.s32.totalorder %s11, 1
    %p71 = scmp.ne.s32.totalorder %s66, %s68
    %p72 = scmp.eq.s32.totalorder %s11, 0
    %p73 = por %p71, %p72
    %p74 = scmp.ne.s32.totalorder %s66, %s68
    %p75 = scmp.eq.s32.totalorder %s16, 1
    %p76 = por %p74, %p75
    %p77 = scmp.ne.s32.totalorder %s68, %s69
    %p78 = scmp.eq.s32.totalorder %s16, 0
    %p79 = por %p77, %p78
    %p80 = scmp.ne.s32.totalorder %s68, %s69
    %p81 = scmp.eq.s32.totalorder %s17, 1
    %p82 = por %p80, %p81
    %p84 = scmp.ne.s32.totalorder %s69, %s83
    %p85 = scmp.eq.s32.totalorder %s17, 0
    %p86 = por %p84, %p85
    %s87 = ssub.s32 %s11, %s18
    %p88 = scmp.eq.s32.totalorder %s87, 0
    %s90 = sadd.s32 %s89, 1
    %s91 = scalar_select %p88, %s89, %s90
    %p94 = pneg %p88
    %p95 = scmp.eq.s32.totalorder %s11, 1
    %p96 = por %p94, %p95
    %p97 = scmp.ne.s32.totalorder %s89, %s92
    %p98 = scmp.eq.s32.totalorder %s11, 0
    %p99 = por %p97, %p98
    %p100 = scmp.ne.s32.totalorder %s89, %s92
    %p101 = scmp.eq.s32.totalorder %s16, 1
    %p102 = por %p100, %p101
    %p103 = scmp.ne.s32.totalorder %s92, %s93
    %p104 = scmp.eq.s32.totalorder %s16, 0
    %p105 = por %p103, %p104
    %p106 = scmp.ne.s32.totalorder %s92, %s93
    %p107 = scmp.eq.s32.totalorder %s17, 1
    %p108 = por %p106, %p107
    %p110 = scmp.ne.s32.totalorder %s93, %s109
    %p111 = scmp.eq.s32.totalorder %s17, 0
    %p112 = por %p110, %p111
    %s113 = ssub.s32 %s11, %s18
    %p114 = scmp.eq.s32.totalorder %s113, 0
    %s116 = sadd.s32 %s115, 1
    %s117 = scalar_select %p114, %s115, %s116
    %p120 = pneg %p114
    %p121 = scmp.eq.s32.totalorder %s11, 1
    %p122 = por %p120, %p121
    %p123 = scmp.ne.s32.totalorder %s115, %s118
    %p124 = scmp.eq.s32.totalorder %s11, 0
    %p125 = por %p123, %p124
    %p126 = scmp.ne.s32.totalorder %s115, %s118
    %p127 = scmp.eq.s32.totalorder %s16, 1
    %p128 = por %p126, %p127
    %p129 = scmp.ne.s32.totalorder %s118, %s119
    %p130 = scmp.eq.s32.totalorder %s16, 0
    %p131 = por %p129, %p130
    %p132 = scmp.ne.s32.totalorder %s118, %s119
    %p133 = scmp.eq.s32.totalorder %s17, 1
    %p134 = por %p132, %p133
    %p136 = scmp.ne.s32.totalorder %s119, %s135
    %p137 = scmp.eq.s32.totalorder %s17, 0
    %p138 = por %p136, %p137
    %p139 = scmp.le.s32.totalorder 1, %s11
    %p140 = scmp.lt.s32.totalorder %s11, 3
    %p141 = pnand %p139, %p140
    %p142 = pneg %p141
    // Predicated region
    $region9: #{spa_discriminator_forward.9} parent=5 // pred_check
      _
    $region10: #{spa_discriminator_forward.9} parent=5 // pred_check_branch
      %144 = sbr.rel (%p141) target = $region12
    $region11: #{spa_discriminator_forward.9} parent=5 // pred_region
      %s145 = ssub.s32 %s11, 1
      // Predicated region
      $region13: #{spa_discriminator_forward.9} parent=11 // pred_check
        %p146 = pneg %p58
      $region14: #{spa_discriminator_forward.9} parent=11 // pred_check_branch
        %148 = sbr.rel (%p146) target = $region16
      $region15: #{spa_discriminator_forward.9} parent=11 // pred_region
        _
      $region16: #{spa_discriminator_forward.9} parent=11 // pred_fallthru
        _
      // Predicated region
      $region17: #{spa_discriminator_forward.9} parent=11 // pred_check
        %p149 = pneg %p79
      $region18: #{spa_discriminator_forward.9} parent=11 // pred_check_branch
        %151 = sbr.rel (%p149) target = $region20
      $region19: #{spa_discriminator_forward.9} parent=11 // pred_region
        _
      $region20: #{spa_discriminator_forward.9} parent=11 // pred_fallthru
        _
    $region12: #{spa_discriminator_forward.9} parent=5 // pred_fallthru
      _
    %p152 = scmp.lt.s32.totalorder %s11, 2
    // Predicated region
    $region21: #{spa_discriminator_forward.9} parent=5 // pred_check
      %p153 = pneg %p152
    $region22: #{spa_discriminator_forward.9} parent=5 // pred_check_branch
      %155 = sbr.rel (%p153) target = $region24
    $region23: #{spa_discriminator_forward.9} parent=5 // pred_region
      // Predicated region
      $region25: #{spa_discriminator_forward.9} parent=23 // pred_check
        %p156 = pneg %p31
      $region26: #{spa_discriminator_forward.9} parent=23 // pred_check_branch
        %158 = sbr.rel (%p156) target = $region28
      $region27: #{spa_discriminator_forward.9} parent=23 // pred_region
        %s159 = smul.u32 8, %s11
        %p160 = scmp.lt.s32.totalorder %s159, 15
        %s161 = scalar_select %p160, %s159, 15
        %s162 = smul.addr %s161, 2
        %s163 = smul.addr %s162, 4
        %s164 = scalar_lea.vmem %s0, %s163
        %s165 = smul.u32 8, %s11
      $region28: #{spa_discriminator_forward.9} parent=23 // pred_fallthru
        _
    $region24: #{spa_discriminator_forward.9} parent=5 // pred_fallthru
      _
    %p166 = scmp.le.s32.totalorder 1, %s11
    %p167 = scmp.lt.s32.totalorder %s11, 3
    %p168 = pnand %p166, %p167
    %p169 = pneg %p168
    // Predicated region
    $region29: #{spa_discriminator_forward.9} parent=5 // pred_check
      _
    $region30: #{spa_discriminator_forward.9} parent=5 // pred_check_branch
      %171 = sbr.rel (%p168) target = $region32
    $region31: #{spa_discriminator_forward.9} parent=5 // pred_region
      %s172 = ssub.s32 %s11, 1
      %s173 = smul.u32 8, %s16
      %p174 = scmp.lt.s32.totalorder %s173, 15
      %s175 = scalar_select %p174, %s173, 15
      %s176 = smul.addr %s175, 2
      %s177 = smul.addr %s176, 4
      %s178 = scalar_lea.vmem %s0, %s177
      %p179 = pneg %p37
      %p180 = pneg %p34
      %p181 = pneg %p58
      %p182 = pneg %p55
      %p183 = pneg %p79
      %p184 = pneg %p76
      %p185 = pneg %p105
      %p186 = pneg %p102
      %s187 = smul.u32 8, %s16
      %p188 = scmp.lt.s32.totalorder %s187, 15
      %s189 = scalar_select %p188, %s187, 15
      %s190 = smul.addr %s189, 4
      %s191 = scalar_lea.vmem %s3, %s190
      %p192 = pneg %p131
      %p193 = pneg %p128
      %p194 = scmp.lt.s32.totalorder %s16, 1
      %s195 = scalar_select %p194, %s16, 1
      %s196 = smul.addr %s195, 2
      %s197 = scalar_lea.vmem %s4, %s196
      %s198 = smul.u32 8, %s16
      %p199 = scmp.lt.s32.totalorder %s198, 15
      %s200 = scalar_select %p199, %s198, 15
      %s201 = smul.addr %s200, 2
      %s202 = smul.addr %s201, 4
      %s203 = scalar_lea.vmem %s0, %s202
      %s204 = smul.u32 8, %s16
      %s205 = smul.u32 8, %s16
      %p206 = scmp.lt.s32.totalorder %s205, 15
      %s207 = scalar_select %p206, %s205, 15
      %s208 = smul.addr %s207, 4
      %s209 = scalar_lea.vmem %s3, %s208
      %s210 = smul.u32 8, %s16
      %p211 = scmp.lt.s32.totalorder %s16, 1
      %s212 = scalar_select %p211, %s16, 1
      %s213 = smul.addr %s212, 2
      %s214 = scalar_lea.vmem %s4, %s213
      %v216 = vld [vmem:[%s203] sm:$0xff]
      %v217 = vld [vmem:[%s203 + $0x8] sm:$0xff]
      %v218 = vld [vmem:[%s203 + $0x10] sm:$0xff]
      %v219 = vld [vmem:[%s203 + $0x18] sm:$0xff]
      %v220 = vld [vmem:[%s203 + $0x20] sm:$0xff]
      %v221 = vld [vmem:[%s203 + $0x28] sm:$0xff]
      %v222 = vld [vmem:[%s203 + $0x30] sm:$0xff]
      %v223 = vld [vmem:[%s203 + $0x38] sm:$0xff]
      %v224 = vld [vmem:[%s1] sm:$0xf]
      %v225 = vld [vmem:[%s1 + $0x4] sm:$0xf]
      %v226 = vld [vmem:[%s1 + $0x8] sm:$0xf]
      %v227 = vld [vmem:[%s1 + $0xc] sm:$0xf]
      %v228 = vld [vmem:[%s1 + $0x10] sm:$0xf]
      %v229 = vld [vmem:[%s1 + $0x14] sm:$0xf]
      %v230 = vld [vmem:[%s1 + $0x18] sm:$0xf]
      %v231 = vld [vmem:[%s1 + $0x1c] sm:$0xf]
      %v232 = vld [vmem:[%s1 + $0x20] sm:$0xf]
      %v233 = vld [vmem:[%s1 + $0x24] sm:$0xf]
      %v234 = vld [vmem:[%s1 + $0x28] sm:$0xf]
      %v235 = vld [vmem:[%s1 + $0x2c] sm:$0xf]
      %v236 = vld [vmem:[%s1 + $0x30] sm:$0xf]
      %v237 = vld [vmem:[%s1 + $0x34] sm:$0xf]
      %v238 = vld [vmem:[%s1 + $0x38] sm:$0xf]
      %v239 = vld [vmem:[%s1 + $0x3c] sm:$0xf]
      %v240 = vld [vmem:[%s1 + $0x40] sm:$0xf]
      %v241 = vld [vmem:[%s1 + $0x44] sm:$0xf]
      %v242 = vld [vmem:[%s1 + $0x48] sm:$0xf]
      %v243 = vld [vmem:[%s1 + $0x4c] sm:$0xf]
      %v244 = vld [vmem:[%s1 + $0x50] sm:$0xf]
      %v245 = vld [vmem:[%s1 + $0x54] sm:$0xf]
      %v246 = vld [vmem:[%s1 + $0x58] sm:$0xf]
      %v247 = vld [vmem:[%s1 + $0x5c] sm:$0xf]
      %v248 = vld [vmem:[%s1 + $0x60] sm:$0xf]
      %v249 = vld [vmem:[%s1 + $0x64] sm:$0xf]
      %v250 = vld [vmem:[%s1 + $0x68] sm:$0xf]
      %v251 = vld [vmem:[%s1 + $0x6c] sm:$0xf]
      %v252 = vld [vmem:[%s1 + $0x70] sm:$0xf]
      %v253 = vld [vmem:[%s1 + $0x74] sm:$0xf]
      %v254 = vld [vmem:[%s1 + $0x78] sm:$0xf]
      %v255 = vld [vmem:[%s1 + $0x7c] sm:$0xf]
      %v256 = vld [vmem:[%s2] sm:$0x1]
      %v258 = vlaneseq
      %v259 = vshrl.u32 %v258, 7
      %v260 = vsub.s32 0, %v259
      %v261 = vrot.slane %v256, %v260
      %v271 = vunpack.c.l.b16 %v216
      %v272 = vunpack.c.h.b16 %v216
      %v273 = vunpack.c.l.b16 %v217
      %v274 = vunpack.c.h.b16 %v217
      %v275 = vunpack.c.l.b16 %v218
      %v276 = vunpack.c.h.b16 %v218
      %v277 = vunpack.c.l.b16 %v219
      %v278 = vunpack.c.h.b16 %v219
      %v279 = vunpack.c.l.b16 %v220
      %v280 = vunpack.c.h.b16 %v220
      %v281 = vunpack.c.l.b16 %v221
      %v282 = vunpack.c.h.b16 %v221
      %v283 = vunpack.c.l.b16 %v222
      %v284 = vunpack.c.h.b16 %v222
      %v285 = vunpack.c.l.b16 %v223
      %v286 = vunpack.c.h.b16 %v223
      %v287 = vpack.c.b16 %v273, %v271
      %v288 = vpack.c.b16 %v274, %v272
      %v289 = vpack.c.b16 %v277, %v275
      %v290 = vpack.c.b16 %v278, %v276
      %v291 = vpack.c.b16 %v281, %v279
      %v292 = vpack.c.b16 %v282, %v280
      %v293 = vpack.c.b16 %v285, %v283
      %v294 = vpack.c.b16 %v286, %v284
      %v335 = vunpack.c.l.b16 %v224
      %v336 = vunpack.c.l.b16 %v225
      %v337 = vunpack.c.l.b16 %v226
      %v338 = vunpack.c.l.b16 %v227
      %v339 = vunpack.c.l.b16 %v228
      %v340 = vunpack.c.l.b16 %v229
      %v341 = vunpack.c.l.b16 %v230
      %v342 = vunpack.c.l.b16 %v231
      %v343 = vunpack.c.l.b16 %v232
      %v344 = vunpack.c.l.b16 %v233
      %v345 = vunpack.c.l.b16 %v234
      %v346 = vunpack.c.l.b16 %v235
      %v347 = vunpack.c.l.b16 %v236
      %v348 = vunpack.c.l.b16 %v237
      %v349 = vunpack.c.l.b16 %v238
      %v350 = vunpack.c.l.b16 %v239
      %v351 = vunpack.c.l.b16 %v240
      %v352 = vunpack.c.l.b16 %v241
      %v353 = vunpack.c.l.b16 %v242
      %v354 = vunpack.c.l.b16 %v243
      %v355 = vunpack.c.l.b16 %v244
      %v356 = vunpack.c.l.b16 %v245
      %v357 = vunpack.c.l.b16 %v246
      %v358 = vunpack.c.l.b16 %v247
      %v359 = vunpack.c.l.b16 %v248
      %v360 = vunpack.c.l.b16 %v249
      %v361 = vunpack.c.l.b16 %v250
      %v362 = vunpack.c.l.b16 %v251
      %v363 = vunpack.c.l.b16 %v252
      %v364 = vunpack.c.l.b16 %v253
      %v365 = vunpack.c.l.b16 %v254
      %v366 = vunpack.c.l.b16 %v255
      %v367 = vpack.c.b16 %v336, %v335
      %v368 = vpack.c.b16 %v338, %v337
      %v369 = vpack.c.b16 %v340, %v339
      %v370 = vpack.c.b16 %v342, %v341
      %v371 = vpack.c.b16 %v344, %v343
      %v372 = vpack.c.b16 %v346, %v345
      %v373 = vpack.c.b16 %v348, %v347
      %v374 = vpack.c.b16 %v350, %v349
      %v375 = vpack.c.b16 %v352, %v351
      %v376 = vpack.c.b16 %v354, %v353
      %v377 = vpack.c.b16 %v356, %v355
      %v378 = vpack.c.b16 %v358, %v357
      %v379 = vpack.c.b16 %v360, %v359
      %v380 = vpack.c.b16 %v362, %v361
      %v381 = vpack.c.b16 %v364, %v363
      %v382 = vpack.c.b16 %v366, %v365
      %399 = vmatprep.subr.bf16.mxu0 0
      %400 = vmatpush1.bf16.msra.mxu0 %v367
      %401 = vmatprep.subr.bf16.mxu0 0
      %402 = vmatpush1.bf16.msra.mxu0 %v368
      %403 = vmatprep.subr.bf16.mxu0 0
      %404 = vmatpush1.bf16.msra.mxu0 %v369
      %405 = vmatprep.subr.bf16.mxu0 0
      %406 = vmatpush1.bf16.msra.mxu0 %v370
      %407 = vmatprep.subr.bf16.mxu0 0
      %408 = vmatpush1.bf16.msra.mxu0 %v371
      %409 = vmatprep.subr.bf16.mxu0 0
      %410 = vmatpush1.bf16.msra.mxu0 %v372
      %411 = vmatprep.subr.bf16.mxu0 0
      %412 = vmatpush1.bf16.msra.mxu0 %v373
      %413 = vmatprep.subr.bf16.mxu0 0
      %414 = vmatpush1.bf16.msra.mxu0 %v374
      %415 = vmatprep.subr.bf16.mxu0 0
      %416 = vmatpush1.bf16.msra.mxu0 %v375
      %417 = vmatprep.subr.bf16.mxu0 0
      %418 = vmatpush1.bf16.msra.mxu0 %v376
      %419 = vmatprep.subr.bf16.mxu0 0
      %420 = vmatpush1.bf16.msra.mxu0 %v377
      %421 = vmatprep.subr.bf16.mxu0 0
      %422 = vmatpush1.bf16.msra.mxu0 %v378
      %423 = vmatprep.subr.bf16.mxu0 0
      %424 = vmatpush1.bf16.msra.mxu0 %v379
      %425 = vmatprep.subr.bf16.mxu0 0
      %426 = vmatpush1.bf16.msra.mxu0 %v380
      %427 = vmatprep.subr.bf16.mxu0 0
      %428 = vmatpush1.bf16.msra.mxu0 %v381
      %429 = vmatprep.subr.bf16.mxu0 0
      %430 = vmatpush1.bf16.msra.mxu0 %v382
      %431 = vmatprep.mubr.bf16.mxu0 %v288
      %432 = vmatmul.mubr.bf16.gmra.mrb[0].mxu0 %v287
      %v433 = vpop.f32.mrb[0].mxu0
      %v434 = vadd.f32 %v261, %v433
      %v435 = vpop.f32.mrb[0].mxu0
      %v436 = vpop.f32.mrb[0].mxu0
      %v437 = vadd.f32 %v261, %v436
      %v438 = vpop.f32.mrb[0].mxu0
      %439 = vmatprep.mubr.bf16.mxu0 %v290
      %440 = vmatmul.mubr.bf16.gmra.mrb[0].mxu0 %v289
      %v441 = vpop.f32.mrb[0].mxu0
      %v442 = vadd.f32 %v261, %v441
      %v443 = vpop.f32.mrb[0].mxu0
      %v444 = vpop.f32.mrb[0].mxu0
      %v445 = vadd.f32 %v261, %v444
      %v446 = vpop.f32.mrb[0].mxu0
      %447 = vmatprep.mubr.bf16.mxu0 %v292
      %448 = vmatmul.mubr.bf16.gmra.mrb[0].mxu0 %v291
      %v449 = vpop.f32.mrb[0].mxu0
      %v450 = vadd.f32 %v261, %v449
      %v451 = vpop.f32.mrb[0].mxu0
      %v452 = vpop.f32.mrb[0].mxu0
      %v453 = vadd.f32 %v261, %v452
      %v454 = vpop.f32.mrb[0].mxu0
      %455 = vmatprep.mubr.bf16.mxu0 %v294
      %456 = vmatmul.mubr.bf16.gmra.mrb[0].mxu0 %v293
      %v457 = vpop.f32.mrb[0].mxu0
      %v458 = vadd.f32 %v261, %v457
      %v459 = vpop.f32.mrb[0].mxu0
      %v460 = vpop.f32.mrb[0].mxu0
      %v461 = vadd.f32 %v261, %v460
      %v462 = vpop.f32.mrb[0].mxu0
      %463 = vdwg.mxu0
      %v464 = vpack.c.bf16 %v437, %v434
      %v465 = vpack.c.bf16 %v445, %v442
      %v466 = vpack.c.bf16 %v453, %v450
      %v467 = vpack.c.bf16 %v461, %v458
      %v472 = vunpack.c.l.b16 %v464
      %v473 = vunpack.c.h.b16 %v464
      %v474 = vunpack.c.l.b16 %v465
      %v475 = vunpack.c.h.b16 %v465
      %v476 = vunpack.c.l.b16 %v466
      %v477 = vunpack.c.h.b16 %v466
      %v478 = vunpack.c.l.b16 %v467
      %v479 = vunpack.c.h.b16 %v467
      %v480 = vpack.c.b16 %v472, %v472
      %v481 = vpack.c.b16 %v473, %v473
      %v482 = vpack.c.b16 %v474, %v474
      %v483 = vpack.c.b16 %v475, %v475
      %v484 = vpack.c.b16 %v476, %v476
      %v485 = vpack.c.b16 %v477, %v477
      %v486 = vpack.c.b16 %v478, %v478
      %v487 = vpack.c.b16 %v479, %v479
      %496 = vst [vmem:[%s209] sm:$0xf] %v480
      %497 = vst [vmem:[%s209 + $0x4] sm:$0xf] %v481
      %498 = vst [vmem:[%s209 + $0x8] sm:$0xf] %v482
      %499 = vst [vmem:[%s209 + $0xc] sm:$0xf] %v483
      %500 = vst [vmem:[%s209 + $0x10] sm:$0xf] %v484
      %501 = vst [vmem:[%s209 + $0x14] sm:$0xf] %v485
      %502 = vst [vmem:[%s209 + $0x18] sm:$0xf] %v486
      %503 = vst [vmem:[%s209 + $0x1c] sm:$0xf] %v487
      %s504 = smul.u32 %s16, 64
      %v505 = vlaneseq
      %v506 = vshrl.u32 %v505, 7
      %v507 = vadd.s32 %v506, 8
      %v508 = vadd.s32 %v506, 16
      %v509 = vadd.s32 %v506, 24
      %v510 = vadd.s32 %v506, 32
      %v511 = vadd.s32 %v506, 40
      %v512 = vadd.s32 %v506, 48
      %v513 = vadd.s32 %v506, 56
      %v514 = vstv %s504
      %v515 = vadd.s32 %v514, %v506
      %v516 = vadd.s32 %v514, %v507
      %v517 = vadd.s32 %v514, %v508
      %v518 = vadd.s32 %v514, %v509
      %v519 = vadd.s32 %v514, %v510
      %v520 = vadd.s32 %v514, %v511
      %v521 = vadd.s32 %v514, %v512
      %v522 = vadd.s32 %v514, %v513
      %vm523 = vcmp.lt.s32.totalorder %v515, 128
      %vm524 = vcmp.lt.s32.totalorder %v516, 128
      %vm525 = vcmp.lt.s32.totalorder %v517, 128
      %vm526 = vcmp.lt.s32.totalorder %v518, 128
      %vm527 = vcmp.lt.s32.totalorder %v519, 128
      %vm528 = vcmp.lt.s32.totalorder %v520, 128
      %vm529 = vcmp.lt.s32.totalorder %v521, 128
      %vm530 = vcmp.lt.s32.totalorder %v522, 128
      %v531 = vsel %vm523, 1, 0
      %v532 = vsel %vm524, 1, 0
      %v533 = vsel %vm525, 1, 0
      %v534 = vsel %vm526, 1, 0
      %v535 = vsel %vm527, 1, 0
      %v536 = vsel %vm528, 1, 0
      %v537 = vsel %vm529, 1, 0
      %v538 = vsel %vm530, 1, 0
      %vm539 = vcmp.eq.s32.totalorder %v531, 1
      %vm540 = vcmp.eq.s32.totalorder %v532, 1
      %vm541 = vcmp.eq.s32.totalorder %v533, 1
      %vm542 = vcmp.eq.s32.totalorder %v534, 1
      %vm543 = vcmp.eq.s32.totalorder %v535, 1
      %vm544 = vcmp.eq.s32.totalorder %v536, 1
      %vm545 = vcmp.eq.s32.totalorder %v537, 1
      %vm546 = vcmp.eq.s32.totalorder %v538, 1
      %v547 = vsel %vm539, %v434, 0.0
      %v548 = vsel %vm540, %v437, 0.0
      %v549 = vsel %vm541, %v442, 0.0
      %v550 = vsel %vm542, %v445, 0.0
      %v551 = vsel %vm543, %v450, 0.0
      %v552 = vsel %vm544, %v453, 0.0
      %v553 = vsel %vm545, %v458, 0.0
      %v554 = vsel %vm546, %v461, 0.0
      %v555 = vadd.f32 %v547, %v548
      %v556 = vadd.f32 %v555, %v549
      %v557 = vadd.f32 %v556, %v550
      %v558 = vadd.f32 %v557, %v551
      %v559 = vadd.f32 %v558, %v552
      %v560 = vadd.f32 %v559, %v553
      %v561 = vadd.f32 %v560, %v554
      %v562 = vrot.slane %v561, 4
      %v563 = vadd.f32 %v561, %v562
      %v564 = vrot.slane %v563, 2
      %v565 = vadd.f32 %v563, %v564
      %v566 = vrot.slane %v565, 1
      %v567 = vadd.f32 %v565, %v566
      %568 = vst [vmem:[%s214] sm:$0x1] %v567
      %v569 = vmul.f32 %v547, %v547
      %v570 = vmul.f32 %v548, %v548
      %v571 = vmul.f32 %v549, %v549
      %v572 = vmul.f32 %v550, %v550
      %v573 = vmul.f32 %v551, %v551
      %v574 = vmul.f32 %v552, %v552
      %v575 = vmul.f32 %v553, %v553
      %v576 = vmul.f32 %v554, %v554
      %v577 = vadd.f32 %v569, %v570
      %v578 = vadd.f32 %v577, %v571
      %v579 = vadd.f32 %v578, %v572
      %v580 = vadd.f32 %v579, %v573
      %v581 = vadd.f32 %v580, %v574
      %v582 = vadd.f32 %v581, %v575
      %v583 = vadd.f32 %v582, %v576
      %v584 = vrot.slane %v583, 4
      %v585 = vadd.f32 %v583, %v584
      %v586 = vrot.slane %v585, 2
      %v587 = vadd.f32 %v585, %v586
      %v588 = vrot.slane %v587, 1
      %v589 = vadd.f32 %v587, %v588
      %590 = vst [vmem:[%s214 + $0x1] sm:$0x1] %v589
      %s591 = smul.u32 8, %s16
      %p592 = scmp.lt.s32.totalorder %s591, 15
      %s593 = scalar_select %p592, %s591, 15
      %s594 = smul.addr %s593, 4
      %s595 = scalar_lea.vmem %s3, %s594
      %p596 = scmp.lt.s32.totalorder %s16, 1
      %s597 = scalar_select %p596, %s16, 1
      %s598 = smul.addr %s597, 2
      %s599 = scalar_lea.vmem %s4, %s598
      // Predicated region
      $region33: #{spa_discriminator_forward.9} parent=31 // pred_check
        %p600 = pneg %p102
      $region34: #{spa_discriminator_forward.9} parent=31 // pred_check_branch
        %602 = sbr.rel (%p600) target = $region36
      $region35: #{spa_discriminator_forward.9} parent=31 // pred_region
        %s603 = smul.u32 8, %s16
      $region36: #{spa_discriminator_forward.9} parent=31 // pred_fallthru
        _
      // Predicated region
      $region37: #{spa_discriminator_forward.9} parent=31 // pred_check
        %p604 = pneg %p128
      $region38: #{spa_discriminator_forward.9} parent=31 // pred_check_branch
        %606 = sbr.rel (%p604) target = $region40
      $region39: #{spa_discriminator_forward.9} parent=31 // pred_region
        _
      $region40: #{spa_discriminator_forward.9} parent=31 // pred_fallthru
        _
    $region32: #{spa_discriminator_forward.9} parent=5 // pred_fallthru
      _
    %p607 = scmp.le.s32.totalorder 2, %s11
    // Predicated region
    $region41: #{spa_discriminator_forward.9} parent=5 // pred_check
      %p608 = pneg %p607
    $region42: #{spa_discriminator_forward.9} parent=5 // pred_check_branch
      %610 = sbr.rel (%p608) target = $region44
    $region43: #{spa_discriminator_forward.9} parent=5 // pred_region
      %s611 = ssub.s32 %s11, 2
      // Predicated region
      $region45: #{spa_discriminator_forward.9} parent=43 // pred_check
        %p612 = pneg %p108
      $region46: #{spa_discriminator_forward.9} parent=43 // pred_check_branch
        %614 = sbr.rel (%p612) target = $region48
      $region47: #{spa_discriminator_forward.9} parent=43 // pred_region
        %s615 = smul.u32 8, %s17
        %p616 = scmp.lt.s32.totalorder %s615, 15
        %s617 = scalar_select %p616, %s615, 15
        %s618 = smul.addr %s617, 4
        %s619 = scalar_lea.vmem %s3, %s618
      $region48: #{spa_discriminator_forward.9} parent=43 // pred_fallthru
        _
      // Predicated region
      $region49: #{spa_discriminator_forward.9} parent=43 // pred_check
        %p620 = pneg %p134
      $region50: #{spa_discriminator_forward.9} parent=43 // pred_check_branch
        %622 = sbr.rel (%p620) target = $region52
      $region51: #{spa_discriminator_forward.9} parent=43 // pred_region
        %p623 = scmp.lt.s32.totalorder %s17, 1
        %s624 = scalar_select %p623, %s17, 1
        %s625 = smul.addr %s624, 2
        %s626 = scalar_lea.vmem %s4, %s625
      $region52: #{spa_discriminator_forward.9} parent=43 // pred_fallthru
        _
    $region44: #{spa_discriminator_forward.9} parent=5 // pred_fallthru
      _
  $region6: #{spa_discriminator_forward.9} parent=0 // loop_footer
    %s15 = sadd.s32 1, %s11
  $region7: #{spa_discriminator_forward.9} parent=0 // loop_footer_branch
    %10 = sbr.rel target = $region3
  $region8: #{spa_discriminator_forward.9} parent=0 // loop_exit
    _

// kernel: spa_discriminator_forward.12
$region0: #{spa_discriminator_forward.12}
  #allocation0 [shape = 'u32[]', space=smem, size = 0x4, offset = 0x4, fixed_abs, tag = 'smem constant byte address 0x4 - core index']
  #allocation1 [shape = 'u32[144,128]{1,0:T(1,128)}', space=vmem, size = 0x12000, scoped, tag = 'internal scratch']
  %s0 = inlined_call_operand.vmem [shape: bf16[32,128], index: 0, kind: input, shape index: {}]
  %s1 = inlined_call_operand.vmem [shape: f32[1,128], index: 1, kind: input, shape index: {}]
  %s2 = inlined_call_operand.vmem [shape: f32[1,128], index: 2, kind: input, shape index: {}]
  %s3 = inlined_call_operand.vmem [shape: bf16[32,128], index: 3, kind: output, shape index: {}]
  %s4 = sld [smem:[#allocation0]]
  $region45: #{spa_discriminator_forward.12} parent=0
    _
  %s6 = ssub.s32 1, %s4
  %s7 = scalar_select 0, %s6, %s4
  loop: start=0, step=1, limit=4
  $region2: #{spa_discriminator_forward.12} parent=0 // loop_pre_header
    _
  $region3: #{spa_discriminator_forward.12} parent=0 // loop_header
    %s9 = sphi 0, %s13
    %p10 = scmp.ge.s32.totalorder %s9, 4
    %s19 = sphi 0, %s21
    %s22 = sphi 0, %s19
    %s23 = sphi 0, %s22
    %s39 = sphi 0, %s23
    %s43 = sphi 0, %s43
    %s45 = sphi 0, %s43
    %s46 = sphi 0, %s45
    %s60 = sphi 0, %s46
    %s64 = sphi 0, %s64
    %s66 = sphi 0, %s64
    %s67 = sphi 0, %s66
    %s81 = sphi 0, %s67
    %s87 = sphi 0, %s89
    %s90 = sphi 0, %s87
    %s91 = sphi 0, %s90
    %s107 = sphi 0, %s91
  $region4: #{spa_discriminator_forward.12} parent=0 // loop_header_branch
    %12 = sbr.rel (%p10) target = $region8
  $region5: #{spa_discriminator_forward.12} parent=0 // loop_body
    %s14 = ssub.s32 %s9, 1
    %s15 = ssub.s32 %s9, 2
    %s16 = sadd.s32 %s9, 1
    %s17 = ssub.s32 %s9, %s16
    %p18 = scmp.eq.s32.totalorder %s17, 0
    %s20 = sadd.s32 %s19, 1
    %s21 = scalar_select %p18, %s19, %s20
    %p24 = pneg %p18
    %p25 = scmp.eq.s32.totalorder %s9, 1
    %p26 = por %p24, %p25
    %p27 = scmp.ne.s32.totalorder %s19, %s22
    %p28 = scmp.eq.s32.totalorder %s9, 0
    %p29 = por %p27, %p28
    %p30 = scmp.ne.s32.totalorder %s19, %s22
    %p31 = scmp.eq.s32.totalorder %s14, 1
    %p32 = por %p30, %p31
    %p33 = scmp.ne.s32.totalorder %s22, %s23
    %p34 = scmp.eq.s32.totalorder %s14, 0
    %p35 = por %p33, %p34
    %p36 = scmp.ne.s32.totalorder %s22, %s23
    %p37 = scmp.eq.s32.totalorder %s15, 1
    %p38 = por %p36, %p37
    %p40 = scmp.ne.s32.totalorder %s23, %s39
    %p41 = scmp.eq.s32.totalorder %s15, 0
    %p42 = por %p40, %p41
    %s44 = sadd.s32 %s43, 1
    %p47 = scmp.eq.s32.totalorder %s9, 1
    %p48 = scmp.ne.s32.totalorder %s43, %s45
    %p49 = scmp.eq.s32.totalorder %s9, 0
    %p50 = por %p48, %p49
    %p51 = scmp.ne.s32.totalorder %s43, %s45
    %p52 = scmp.eq.s32.totalorder %s14, 1
    %p53 = por %p51, %p52
    %p54 = scmp.ne.s32.totalorder %s45, %s46
    %p55 = scmp.eq.s32.totalorder %s14, 0
    %p56 = por %p54, %p55
    %p57 = scmp.ne.s32.totalorder %s45, %s46
    %p58 = scmp.eq.s32.totalorder %s15, 1
    %p59 = por %p57, %p58
    %p61 = scmp.ne.s32.totalorder %s46, %s60
    %p62 = scmp.eq.s32.totalorder %s15, 0
    %p63 = por %p61, %p62
    %s65 = sadd.s32 %s64, 1
    %p68 = scmp.eq.s32.totalorder %s9, 1
    %p69 = scmp.ne.s32.totalorder %s64, %s66
    %p70 = scmp.eq.s32.totalorder %s9, 0
    %p71 = por %p69, %p70
    %p72 = scmp.ne.s32.totalorder %s64, %s66
    %p73 = scmp.eq.s32.totalorder %s14, 1
    %p74 = por %p72, %p73
    %p75 = scmp.ne.s32.totalorder %s66, %s67
    %p76 = scmp.eq.s32.totalorder %s14, 0
    %p77 = por %p75, %p76
    %p78 = scmp.ne.s32.totalorder %s66, %s67
    %p79 = scmp.eq.s32.totalorder %s15, 1
    %p80 = por %p78, %p79
    %p82 = scmp.ne.s32.totalorder %s67, %s81
    %p83 = scmp.eq.s32.totalorder %s15, 0
    %p84 = por %p82, %p83
    %s85 = ssub.s32 %s9, %s16
    %p86 = scmp.eq.s32.totalorder %s85, 0
    %s88 = sadd.s32 %s87, 1
    %s89 = scalar_select %p86, %s87, %s88
    %p92 = pneg %p86
    %p93 = scmp.eq.s32.totalorder %s9, 1
    %p94 = por %p92, %p93
    %p95 = scmp.ne.s32.totalorder %s87, %s90
    %p96 = scmp.eq.s32.totalorder %s9, 0
    %p97 = por %p95, %p96
    %p98 = scmp.ne.s32.totalorder %s87, %s90
    %p99 = scmp.eq.s32.totalorder %s14, 1
    %p100 = por %p98, %p99
    %p101 = scmp.ne.s32.totalorder %s90, %s91
    %p102 = scmp.eq.s32.totalorder %s14, 0
    %p103 = por %p101, %p102
    %p104 = scmp.ne.s32.totalorder %s90, %s91
    %p105 = scmp.eq.s32.totalorder %s15, 1
    %p106 = por %p104, %p105
    %p108 = scmp.ne.s32.totalorder %s91, %s107
    %p109 = scmp.eq.s32.totalorder %s15, 0
    %p110 = por %p108, %p109
    %p111 = scmp.le.s32.totalorder 1, %s9
    %p112 = scmp.lt.s32.totalorder %s9, 3
    %p113 = pnand %p111, %p112
    %p114 = pneg %p113
    // Predicated region
    $region9: #{spa_discriminator_forward.12} parent=5 // pred_check
      _
    $region10: #{spa_discriminator_forward.12} parent=5 // pred_check_branch
      %116 = sbr.rel (%p113) target = $region12
    $region11: #{spa_discriminator_forward.12} parent=5 // pred_region
      %s117 = ssub.s32 %s9, 1
      // Predicated region
      $region13: #{spa_discriminator_forward.12} parent=11 // pred_check
        %p118 = pneg %p56
      $region14: #{spa_discriminator_forward.12} parent=11 // pred_check_branch
        %120 = sbr.rel (%p118) target = $region16
      $region15: #{spa_discriminator_forward.12} parent=11 // pred_region
        _
      $region16: #{spa_discriminator_forward.12} parent=11 // pred_fallthru
        _
      // Predicated region
      $region17: #{spa_discriminator_forward.12} parent=11 // pred_check
        %p121 = pneg %p77
      $region18: #{spa_discriminator_forward.12} parent=11 // pred_check_branch
        %123 = sbr.rel (%p121) target = $region20
      $region19: #{spa_discriminator_forward.12} parent=11 // pred_region
        _
      $region20: #{spa_discriminator_forward.12} parent=11 // pred_fallthru
        _
    $region12: #{spa_discriminator_forward.12} parent=5 // pred_fallthru
      _
    %p124 = scmp.lt.s32.totalorder %s9, 2
    // Predicated region
    $region21: #{spa_discriminator_forward.12} parent=5 // pred_check
      %p125 = pneg %p124
    $region22: #{spa_discriminator_forward.12} parent=5 // pred_check_branch
      %127 = sbr.rel (%p125) target = $region24
    $region23: #{spa_discriminator_forward.12} parent=5 // pred_region
      // Predicated region
      $region25: #{spa_discriminator_forward.12} parent=23 // pred_check
        %p128 = pneg %p29
      $region26: #{spa_discriminator_forward.12} parent=23 // pred_check_branch
        %130 = sbr.rel (%p128) target = $region28
      $region27: #{spa_discriminator_forward.12} parent=23 // pred_region
        %s131 = smul.u32 2, %s9
        %p132 = scmp.lt.s32.totalorder %s131, 3
        %s133 = scalar_select %p132, %s131, 3
        %s134 = smul.addr %s133, 4
        %s135 = scalar_lea.vmem %s0, %s134
        %s136 = smul.u32 2, %s9
      $region28: #{spa_discriminator_forward.12} parent=23 // pred_fallthru
        _
    $region24: #{spa_discriminator_forward.12} parent=5 // pred_fallthru
      _
    %p137 = scmp.le.s32.totalorder 1, %s9
    %p138 = scmp.lt.s32.totalorder %s9, 3
    %p139 = pnand %p137, %p138
    %p140 = pneg %p139
    // Predicated region
    $region29: #{spa_discriminator_forward.12} parent=5 // pred_check
      _
    $region30: #{spa_discriminator_forward.12} parent=5 // pred_check_branch
      %142 = sbr.rel (%p139) target = $region32
    $region31: #{spa_discriminator_forward.12} parent=5 // pred_region
      %s143 = ssub.s32 %s9, 1
      %s144 = smul.u32 2, %s14
      %p145 = scmp.lt.s32.totalorder %s144, 3
      %s146 = scalar_select %p145, %s144, 3
      %s147 = smul.addr %s146, 4
      %s148 = scalar_lea.vmem %s0, %s147
      %p149 = pneg %p35
      %p150 = pneg %p32
      %p151 = pneg %p56
      %p152 = pneg %p53
      %p153 = pneg %p77
      %p154 = pneg %p74
      %p155 = pneg %p103
      %p156 = pneg %p100
      %s157 = smul.u32 2, %s14
      %p158 = scmp.lt.s32.totalorder %s157, 3
      %s159 = scalar_select %p158, %s157, 3
      %s160 = smul.addr %s159, 4
      %s161 = scalar_lea.vmem %s3, %s160
      %s162 = smul.u32 2, %s14
      %p163 = scmp.lt.s32.totalorder %s162, 3
      %s164 = scalar_select %p163, %s162, 3
      %s165 = smul.addr %s164, 4
      %s166 = scalar_lea.vmem %s0, %s165
      %s167 = smul.u32 2, %s14
      %s168 = smul.u32 2, %s14
      %p169 = scmp.lt.s32.totalorder %s168, 3
      %s170 = scalar_select %p169, %s168, 3
      %s171 = smul.addr %s170, 4
      %s172 = scalar_lea.vmem %s3, %s171
      %s173 = smul.u32 2, %s14
      %v174 = vld [vmem:[%s166] sm:$0xf]
      %v175 = vld [vmem:[%s166 + $0x4] sm:$0xf]
      %v176 = vunpack.c.l.bf16 %v174
      %v177 = vunpack.c.l.bf16 %v175
      %v178 = vld [vmem:[%s1] sm:$0x1]
      %v180 = vlaneseq
      %v181 = vshrl.u32 %v180, 7
      %v182 = vsub.s32 0, %v181
      %v183 = vrot.slane %v178, %v182
      %v185 = vmul.f32 %v176, %v183
      %v186 = vmul.f32 %v177, %v183
      %v187 = vld [vmem:[%s2] sm:$0x1]
      %v189 = vlaneseq
      %v190 = vshrl.u32 %v189, 7
      %v191 = vsub.s32 0, %v190
      %v192 = vrot.slane %v187, %v191
      %v194 = vadd.f32 %v185, %v192
      %v195 = vadd.f32 %v186, %v192
      %v196 = vmul.f32 %v194, 0.2
      %v197 = vmul.f32 %v195, 0.2
      %v198 = vmax.f32 %v194, %v196
      %v199 = vmax.f32 %v195, %v197
      %v200 = vpack.c.bf16 %v199, %v198
      %v202 = vunpack.c.l.b16 %v200
      %v203 = vunpack.c.h.b16 %v200
      %v204 = vpack.c.b16 %v202, %v202
      %v205 = vpack.c.b16 %v203, %v203
      %208 = vst [vmem:[%s172] sm:$0xf] %v204
      %209 = vst [vmem:[%s172 + $0x4] sm:$0xf] %v205
      %s210 = smul.u32 2, %s14
      %p211 = scmp.lt.s32.totalorder %s210, 3
      %s212 = scalar_select %p211, %s210, 3
      %s213 = smul.addr %s212, 4
      %s214 = scalar_lea.vmem %s3, %s213
      // Predicated region
      $region33: #{spa_discriminator_forward.12} parent=31 // pred_check
        %p215 = pneg %p100
      $region34: #{spa_discriminator_forward.12} parent=31 // pred_check_branch
        %217 = sbr.rel (%p215) target = $region36
      $region35: #{spa_discriminator_forward.12} parent=31 // pred_region
        %s218 = smul.u32 2, %s14
      $region36: #{spa_discriminator_forward.12} parent=31 // pred_fallthru
        _
    $region32: #{spa_discriminator_forward.12} parent=5 // pred_fallthru
      _
    %p219 = scmp.le.s32.totalorder 2, %s9
    // Predicated region
    $region37: #{spa_discriminator_forward.12} parent=5 // pred_check
      %p220 = pneg %p219
    $region38: #{spa_discriminator_forward.12} parent=5 // pred_check_branch
      %222 = sbr.rel (%p220) target = $region40
    $region39: #{spa_discriminator_forward.12} parent=5 // pred_region
      %s223 = ssub.s32 %s9, 2
      // Predicated region
      $region41: #{spa_discriminator_forward.12} parent=39 // pred_check
        %p224 = pneg %p106
      $region42: #{spa_discriminator_forward.12} parent=39 // pred_check_branch
        %226 = sbr.rel (%p224) target = $region44
      $region43: #{spa_discriminator_forward.12} parent=39 // pred_region
        %s227 = smul.u32 2, %s15
        %p228 = scmp.lt.s32.totalorder %s227, 3
        %s229 = scalar_select %p228, %s227, 3
        %s230 = smul.addr %s229, 4
        %s231 = scalar_lea.vmem %s3, %s230
      $region44: #{spa_discriminator_forward.12} parent=39 // pred_fallthru
        _
    $region40: #{spa_discriminator_forward.12} parent=5 // pred_fallthru
      _
  $region6: #{spa_discriminator_forward.12} parent=0 // loop_footer
    %s13 = sadd.s32 1, %s9
  $region7: #{spa_discriminator_forward.12} parent=0 // loop_footer_branch
    %8 = sbr.rel target = $region3
  $region8: #{spa_discriminator_forward.12} parent=0 // loop_exit
    _

// kernel: spa_discriminator_forward.11
$region0: #{spa_discriminator_forward.11}
  #allocation0 [shape = 'u32[]', space=smem, size = 0x4, offset = 0x4, fixed_abs, tag = 'smem constant byte address 0x4 - core index']
  #allocation1 [shape = 'u32[144,128]{1,0:T(1,128)}', space=vmem, size = 0x12000, scoped, tag = 'internal scratch']
  %s0 = inlined_call_operand.vmem [shape: bf16[32,512], index: 0, kind: input, shape index: {}]
  %s1 = inlined_call_operand.vmem [shape: bf16[512,128], index: 1, kind: input, shape index: {}]
  %s2 = inlined_call_operand.vmem [shape: f32[1,128], index: 2, kind: input, shape index: {}]
  %s3 = inlined_call_operand.vmem [shape: bf16[32,128], index: 3, kind: output, shape index: {0}]
  %s4 = inlined_call_operand.vmem [shape: f32[2,2,128], index: 4, kind: output, shape index: {1}]
  %5 = xla_tuple %s3, %s4
  %s6 = sld [smem:[#allocation0]]
  $region53: #{spa_discriminator_forward.11} parent=0
    _
  %s8 = ssub.s32 1, %s6
  %s9 = scalar_select 0, %s8, %s6
  loop: start=0, step=1, limit=4
  $region2: #{spa_discriminator_forward.11} parent=0 // loop_pre_header
    _
  $region3: #{spa_discriminator_forward.11} parent=0 // loop_header
    %s11 = sphi 0, %s15
    %p12 = scmp.ge.s32.totalorder %s11, 4
    %s21 = sphi 0, %s23
    %s24 = sphi 0, %s21
    %s25 = sphi 0, %s24
    %s41 = sphi 0, %s25
    %s45 = sphi 0, %s45
    %s47 = sphi 0, %s45
    %s48 = sphi 0, %s47
    %s62 = sphi 0, %s48
    %s66 = sphi 0, %s66
    %s68 = sphi 0, %s66
    %s69 = sphi 0, %s68
    %s83 = sphi 0, %s69
    %s89 = sphi 0, %s91
    %s92 = sphi 0, %s89
    %s93 = sphi 0, %s92
    %s109 = sphi 0, %s93
    %s115 = sphi 0, %s117
    %s118 = sphi 0, %s115
    %s119 = sphi 0, %s118
    %s135 = sphi 0, %s119
  $region4: #{spa_discriminator_forward.11} parent=0 // loop_header_branch
    %14 = sbr.rel (%p12) target = $region8
  $region5: #{spa_discriminator_forward.11} parent=0 // loop_body
    %s16 = ssub.s32 %s11, 1
    %s17 = ssub.s32 %s11, 2
    %s18 = sadd.s32 %s11, 1
    %s19 = ssub.s32 %s11, %s18
    %p20 = scmp.eq.s32.totalorder %s19, 0
    %s22 = sadd.s32 %s21, 1
    %s23 = scalar_select %p20, %s21, %s22
    %p26 = pneg %p20
    %p27 = scmp.eq.s32.totalorder %s11, 1
    %p28 = por %p26, %p27
    %p29 = scmp.ne.s32.totalorder %s21, %s24
    %p30 = scmp.eq.s32.totalorder %s11, 0
    %p31 = por %p29, %p30
    %p32 = scmp.ne.s32.totalorder %s21, %s24
    %p33 = scmp.eq.s32.totalorder %s16, 1
    %p34 = por %p32, %p33
    %p35 = scmp.ne.s32.totalorder %s24, %s25
    %p36 = scmp.eq.s32.totalorder %s16, 0
    %p37 = por %p35, %p36
    %p38 = scmp.ne.s32.totalorder %s24, %s25
    %p39 = scmp.eq.s32.totalorder %s17, 1
    %p40 = por %p38, %p39
    %p42 = scmp.ne.s32.totalorder %s25, %s41
    %p43 = scmp.eq.s32.totalorder %s17, 0
    %p44 = por %p42, %p43
    %s46 = sadd.s32 %s45, 1
    %p49 = scmp.eq.s32.totalorder %s11, 1
    %p50 = scmp.ne.s32.totalorder %s45, %s47
    %p51 = scmp.eq.s32.totalorder %s11, 0
    %p52 = por %p50, %p51
    %p53 = scmp.ne.s32.totalorder %s45, %s47
    %p54 = scmp.eq.s32.totalorder %s16, 1
    %p55 = por %p53, %p54
    %p56 = scmp.ne.s32.totalorder %s47, %s48
    %p57 = scmp.eq.s32.totalorder %s16, 0
    %p58 = por %p56, %p57
    %p59 = scmp.ne.s32.totalorder %s47, %s48
    %p60 = scmp.eq.s32.totalorder %s17, 1
    %p61 = por %p59, %p60
    %p63 = scmp.ne.s32.totalorder %s48, %s62
    %p64 = scmp.eq.s32.totalorder %s17, 0
    %p65 = por %p63, %p64
    %s67 = sadd.s32 %s66, 1
    %p70 = scmp.eq.s32.totalorder %s11, 1
    %p71 = scmp.ne.s32.totalorder %s66, %s68
    %p72 = scmp.eq.s32.totalorder %s11, 0
    %p73 = por %p71, %p72
    %p74 = scmp.ne.s32.totalorder %s66, %s68
    %p75 = scmp.eq.s32.totalorder %s16, 1
    %p76 = por %p74, %p75
    %p77 = scmp.ne.s32.totalorder %s68, %s69
    %p78 = scmp.eq.s32.totalorder %s16, 0
    %p79 = por %p77, %p78
    %p80 = scmp.ne.s32.totalorder %s68, %s69
    %p81 = scmp.eq.s32.totalorder %s17, 1
    %p82 = por %p80, %p81
    %p84 = scmp.ne.s32.totalorder %s69, %s83
    %p85 = scmp.eq.s32.totalorder %s17, 0
    %p86 = por %p84, %p85
    %s87 = ssub.s32 %s11, %s18
    %p88 = scmp.eq.s32.totalorder %s87, 0
    %s90 = sadd.s32 %s89, 1
    %s91 = scalar_select %p88, %s89, %s90
    %p94 = pneg %p88
    %p95 = scmp.eq.s32.totalorder %s11, 1
    %p96 = por %p94, %p95
    %p97 = scmp.ne.s32.totalorder %s89, %s92
    %p98 = scmp.eq.s32.totalorder %s11, 0
    %p99 = por %p97, %p98
    %p100 = scmp.ne.s32.totalorder %s89, %s92
    %p101 = scmp.eq.s32.totalorder %s16, 1
    %p102 = por %p100, %p101
    %p103 = scmp.ne.s32.totalorder %s92, %s93
    %p104 = scmp.eq.s32.totalorder %s16, 0
    %p105 = por %p103, %p104
    %p106 = scmp.ne.s32.totalorder %s92, %s93
    %p107 = scmp.eq.s32.totalorder %s17, 1
    %p108 = por %p106, %p107
    %p110 = scmp.ne.s32.totalorder %s93, %s109
    %p111 = scmp.eq.s32.totalorder %s17, 0
    %p112 = por %p110, %p111
    %s113 = ssub.s32 %s11, %s18
    %p114 = scmp.eq.s32.totalorder %s113, 0
    %s116 = sadd.s32 %s115, 1
    %s117 = scalar_select %p114, %s115, %s116
    %p120 = pneg %p114
    %p121 = scmp.eq.s32.totalorder %s11, 1
    %p122 = por %p120, %p121
    %p123 = scmp.ne.s32.totalorder %s115, %s118
    %p124 = scmp.eq.s32.totalorder %s11, 0
    %p125 = por %p123, %p124
    %p126 = scmp.ne.s32.totalorder %s115, %s118
    %p127 = scmp.eq.s32.totalorder %s16, 1
    %p128 = por %p126, %p127
    %p129 = scmp.ne.s32.totalorder %s118, %s119
    %p130 = scmp.eq.s32.totalorder %s16, 0
    %p131 = por %p129, %p130
    %p132 = scmp.ne.s32.totalorder %s118, %s119
    %p133 = scmp.eq.s32.totalorder %s17, 1
    %p134 = por %p132, %p133
    %p136 = scmp.ne.s32.totalorder %s119, %s135
    %p137 = scmp.eq.s32.totalorder %s17, 0
    %p138 = por %p136, %p137
    %p139 = scmp.le.s32.totalorder 1, %s11
    %p140 = scmp.lt.s32.totalorder %s11, 3
    %p141 = pnand %p139, %p140
    %p142 = pneg %p141
    // Predicated region
    $region9: #{spa_discriminator_forward.11} parent=5 // pred_check
      _
    $region10: #{spa_discriminator_forward.11} parent=5 // pred_check_branch
      %144 = sbr.rel (%p141) target = $region12
    $region11: #{spa_discriminator_forward.11} parent=5 // pred_region
      %s145 = ssub.s32 %s11, 1
      // Predicated region
      $region13: #{spa_discriminator_forward.11} parent=11 // pred_check
        %p146 = pneg %p58
      $region14: #{spa_discriminator_forward.11} parent=11 // pred_check_branch
        %148 = sbr.rel (%p146) target = $region16
      $region15: #{spa_discriminator_forward.11} parent=11 // pred_region
        _
      $region16: #{spa_discriminator_forward.11} parent=11 // pred_fallthru
        _
      // Predicated region
      $region17: #{spa_discriminator_forward.11} parent=11 // pred_check
        %p149 = pneg %p79
      $region18: #{spa_discriminator_forward.11} parent=11 // pred_check_branch
        %151 = sbr.rel (%p149) target = $region20
      $region19: #{spa_discriminator_forward.11} parent=11 // pred_region
        _
      $region20: #{spa_discriminator_forward.11} parent=11 // pred_fallthru
        _
    $region12: #{spa_discriminator_forward.11} parent=5 // pred_fallthru
      _
    %p152 = scmp.lt.s32.totalorder %s11, 2
    // Predicated region
    $region21: #{spa_discriminator_forward.11} parent=5 // pred_check
      %p153 = pneg %p152
    $region22: #{spa_discriminator_forward.11} parent=5 // pred_check_branch
      %155 = sbr.rel (%p153) target = $region24
    $region23: #{spa_discriminator_forward.11} parent=5 // pred_region
      // Predicated region
      $region25: #{spa_discriminator_forward.11} parent=23 // pred_check
        %p156 = pneg %p31
      $region26: #{spa_discriminator_forward.11} parent=23 // pred_check_branch
        %158 = sbr.rel (%p156) target = $region28
      $region27: #{spa_discriminator_forward.11} parent=23 // pred_region
        %s159 = smul.u32 2, %s11
        %p160 = scmp.lt.s32.totalorder %s159, 3
        %s161 = scalar_select %p160, %s159, 3
        %s162 = smul.addr %s161, 4
        %s163 = smul.addr %s162, 4
        %s164 = scalar_lea.vmem %s0, %s163
        %s165 = smul.u32 2, %s11
      $region28: #{spa_discriminator_forward.11} parent=23 // pred_fallthru
        _
    $region24: #{spa_discriminator_forward.11} parent=5 // pred_fallthru
      _
    %p166 = scmp.le.s32.totalorder 1, %s11
    %p167 = scmp.lt.s32.totalorder %s11, 3
    %p168 = pnand %p166, %p167
    %p169 = pneg %p168
    // Predicated region
    $region29: #{spa_discriminator_forward.11} parent=5 // pred_check
      _
    $region30: #{spa_discriminator_forward.11} parent=5 // pred_check_branch
      %171 = sbr.rel (%p168) target = $region32
    $region31: #{spa_discriminator_forward.11} parent=5 // pred_region
      %s172 = ssub.s32 %s11, 1
      %s173 = smul.u32 2, %s16
      %p174 = scmp.lt.s32.totalorder %s173, 3
      %s175 = scalar_select %p174, %s173, 3
      %s176 = smul.addr %s175, 4
      %s177 = smul.addr %s176, 4
      %s178 = scalar_lea.vmem %s0, %s177
      %p179 = pneg %p37
      %p180 = pneg %p34
      %p181 = pneg %p58
      %p182 = pneg %p55
      %p183 = pneg %p79
      %p184 = pneg %p76
      %p185 = pneg %p105
      %p186 = pneg %p102
      %s187 = smul.u32 2, %s16
      %p188 = scmp.lt.s32.totalorder %s187, 3
      %s189 = scalar_select %p188, %s187, 3
      %s190 = smul.addr %s189, 4
      %s191 = scalar_lea.vmem %s3, %s190
      %p192 = pneg %p131
      %p193 = pneg %p128
      %p194 = scmp.lt.s32.totalorder %s16, 1
      %s195 = scalar_select %p194, %s16, 1
      %s196 = smul.addr %s195, 2
      %s197 = scalar_lea.vmem %s4, %s196
      %s198 = smul.u32 2, %s16
      %p199 = scmp.lt.s32.totalorder %s198, 3
      %s200 = scalar_select %p199, %s198, 3
      %s201 = smul.addr %s200, 4
      %s202 = smul.addr %s201, 4
      %s203 = scalar_lea.vmem %s0, %s202
      %s204 = smul.u32 2, %s16
      %s205 = smul.u32 2, %s16
      %p206 = scmp.lt.s32.totalorder %s205, 3
      %s207 = scalar_select %p206, %s205, 3
      %s208 = smul.addr %s207, 4
      %s209 = scalar_lea.vmem %s3, %s208
      %s210 = smul.u32 2, %s16
      %p211 = scmp.lt.s32.totalorder %s16, 1
      %s212 = scalar_select %p211, %s16, 1
      %s213 = smul.addr %s212, 2
      %s214 = scalar_lea.vmem %s4, %s213
      %v216 = vld [vmem:[%s203] sm:$0xff]
      %v217 = vld [vmem:[%s203 + $0x8] sm:$0xff]
      %v218 = vld [vmem:[%s203 + $0x10] sm:$0xff]
      %v219 = vld [vmem:[%s203 + $0x18] sm:$0xff]
      %v220 = vld [vmem:[%s1] sm:$0xf]
      %v221 = vld [vmem:[%s1 + $0x4] sm:$0xf]
      %v222 = vld [vmem:[%s1 + $0x8] sm:$0xf]
      %v223 = vld [vmem:[%s1 + $0xc] sm:$0xf]
      %v224 = vld [vmem:[%s1 + $0x10] sm:$0xf]
      %v225 = vld [vmem:[%s1 + $0x14] sm:$0xf]
      %v226 = vld [vmem:[%s1 + $0x18] sm:$0xf]
      %v227 = vld [vmem:[%s1 + $0x1c] sm:$0xf]
      %v228 = vld [vmem:[%s1 + $0x20] sm:$0xf]
      %v229 = vld [vmem:[%s1 + $0x24] sm:$0xf]
      %v230 = vld [vmem:[%s1 + $0x28] sm:$0xf]
      %v231 = vld [vmem:[%s1 + $0x2c] sm:$0xf]
      %v232 = vld [vmem:[%s1 + $0x30] sm:$0xf]
      %v233 = vld [vmem:[%s1 + $0x34] sm:$0xf]
      %v234 = vld [vmem:[%s1 + $0x38] sm:$0xf]
      %v235 = vld [vmem:[%s1 + $0x3c] sm:$0xf]
      %v236 = vld [vmem:[%s1 + $0x40] sm:$0xf]
      %v237 = vld [vmem:[%s1 + $0x44] sm:$0xf]
      %v238 = vld [vmem:[%s1 + $0x48] sm:$0xf]
      %v239 = vld [vmem:[%s1 + $0x4c] sm:$0xf]
      %v240 = vld [vmem:[%s1 + $0x50] sm:$0xf]
      %v241 = vld [vmem:[%s1 + $0x54] sm:$0xf]
      %v242 = vld [vmem:[%s1 + $0x58] sm:$0xf]
      %v243 = vld [vmem:[%s1 + $0x5c] sm:$0xf]
      %v244 = vld [vmem:[%s1 + $0x60] sm:$0xf]
      %v245 = vld [vmem:[%s1 + $0x64] sm:$0xf]
      %v246 = vld [vmem:[%s1 + $0x68] sm:$0xf]
      %v247 = vld [vmem:[%s1 + $0x6c] sm:$0xf]
      %v248 = vld [vmem:[%s1 + $0x70] sm:$0xf]
      %v249 = vld [vmem:[%s1 + $0x74] sm:$0xf]
      %v250 = vld [vmem:[%s1 + $0x78] sm:$0xf]
      %v251 = vld [vmem:[%s1 + $0x7c] sm:$0xf]
      %v252 = vld [vmem:[%s1 + $0x80] sm:$0xf]
      %v253 = vld [vmem:[%s1 + $0x84] sm:$0xf]
      %v254 = vld [vmem:[%s1 + $0x88] sm:$0xf]
      %v255 = vld [vmem:[%s1 + $0x8c] sm:$0xf]
      %v256 = vld [vmem:[%s1 + $0x90] sm:$0xf]
      %v257 = vld [vmem:[%s1 + $0x94] sm:$0xf]
      %v258 = vld [vmem:[%s1 + $0x98] sm:$0xf]
      %v259 = vld [vmem:[%s1 + $0x9c] sm:$0xf]
      %v260 = vld [vmem:[%s1 + $0xa0] sm:$0xf]
      %v261 = vld [vmem:[%s1 + $0xa4] sm:$0xf]
      %v262 = vld [vmem:[%s1 + $0xa8] sm:$0xf]
      %v263 = vld [vmem:[%s1 + $0xac] sm:$0xf]
      %v264 = vld [vmem:[%s1 + $0xb0] sm:$0xf]
      %v265 = vld [vmem:[%s1 + $0xb4] sm:$0xf]
      %v266 = vld [vmem:[%s1 + $0xb8] sm:$0xf]
      %v267 = vld [vmem:[%s1 + $0xbc] sm:$0xf]
      %v268 = vld [vmem:[%s1 + $0xc0] sm:$0xf]
      %v269 = vld [vmem:[%s1 + $0xc4] sm:$0xf]
      %v270 = vld [vmem:[%s1 + $0xc8] sm:$0xf]
      %v271 = vld [vmem:[%s1 + $0xcc] sm:$0xf]
      %v272 = vld [vmem:[%s1 + $0xd0] sm:$0xf]
      %v273 = vld [vmem:[%s1 + $0xd4] sm:$0xf]
      %v274 = vld [vmem:[%s1 + $0xd8] sm:$0xf]
      %v275 = vld [vmem:[%s1 + $0xdc] sm:$0xf]
      %v276 = vld [vmem:[%s1 + $0xe0] sm:$0xf]
      %v277 = vld [vmem:[%s1 + $0xe4] sm:$0xf]
      %v278 = vld [vmem:[%s1 + $0xe8] sm:$0xf]
      %v279 = vld [vmem:[%s1 + $0xec] sm:$0xf]
      %v280 = vld [vmem:[%s1 + $0xf0] sm:$0xf]
      %v281 = vld [vmem:[%s1 + $0xf4] sm:$0xf]
      %v282 = vld [vmem:[%s1 + $0xf8] sm:$0xf]
      %v283 = vld [vmem:[%s1 + $0xfc] sm:$0xf]
      %v284 = vld [vmem:[%s2] sm:$0x1]
      %v286 = vlaneseq
      %v287 = vshrl.u32 %v286, 7
      %v288 = vsub.s32 0, %v287
      %v289 = vrot.slane %v284, %v288
      %v295 = vunpack.c.l.b16 %v216
      %v296 = vunpack.c.h.b16 %v216
      %v297 = vunpack.c.l.b16 %v217
      %v298 = vunpack.c.h.b16 %v217
      %v299 = vunpack.c.l.b16 %v218
      %v300 = vunpack.c.h.b16 %v218
      %v301 = vunpack.c.l.b16 %v219
      %v302 = vunpack.c.h.b16 %v219
      %v303 = vpack.c.b16 %v299, %v295
      %v304 = vpack.c.b16 %v300, %v296
      %v305 = vpack.c.b16 %v301, %v297
      %v306 = vpack.c.b16 %v302, %v298
      %v375 = vunpack.c.l.b16 %v220
      %v376 = vunpack.c.l.b16 %v221
      %v377 = vunpack.c.l.b16 %v222
      %v378 = vunpack.c.l.b16 %v223
      %v379 = vunpack.c.l.b16 %v224
      %v380 = vunpack.c.l.b16 %v225
      %v381 = vunpack.c.l.b16 %v226
      %v382 = vunpack.c.l.b16 %v227
      %v383 = vunpack.c.l.b16 %v228
      %v384 = vunpack.c.l.b16 %v229
      %v385 = vunpack.c.l.b16 %v230
      %v386 = vunpack.c.l.b16 %v231
      %v387 = vunpack.c.l.b16 %v232
      %v388 = vunpack.c.l.b16 %v233
      %v389 = vunpack.c.l.b16 %v234
      %v390 = vunpack.c.l.b16 %v235
      %v391 = vunpack.c.l.b16 %v236
      %v392 = vunpack.c.l.b16 %v237
      %v393 = vunpack.c.l.b16 %v238
      %v394 = vunpack.c.l.b16 %v239
      %v395 = vunpack.c.l.b16 %v240
      %v396 = vunpack.c.l.b16 %v241
      %v397 = vunpack.c.l.b16 %v242
      %v398 = vunpack.c.l.b16 %v243
      %v399 = vunpack.c.l.b16 %v244
      %v400 = vunpack.c.l.b16 %v245
      %v401 = vunpack.c.l.b16 %v246
      %v402 = vunpack.c.l.b16 %v247
      %v403 = vunpack.c.l.b16 %v248
      %v404 = vunpack.c.l.b16 %v249
      %v405 = vunpack.c.l.b16 %v250
      %v406 = vunpack.c.l.b16 %v251
      %v407 = vunpack.c.l.b16 %v252
      %v408 = vunpack.c.l.b16 %v253
      %v409 = vunpack.c.l.b16 %v254
      %v410 = vunpack.c.l.b16 %v255
      %v411 = vunpack.c.l.b16 %v256
      %v412 = vunpack.c.l.b16 %v257
      %v413 = vunpack.c.l.b16 %v258
      %v414 = vunpack.c.l.b16 %v259
      %v415 = vunpack.c.l.b16 %v260
      %v416 = vunpack.c.l.b16 %v261
      %v417 = vunpack.c.l.b16 %v262
      %v418 = vunpack.c.l.b16 %v263
      %v419 = vunpack.c.l.b16 %v264
      %v420 = vunpack.c.l.b16 %v265
      %v421 = vunpack.c.l.b16 %v266
      %v422 = vunpack.c.l.b16 %v267
      %v423 = vunpack.c.l.b16 %v268
      %v424 = vunpack.c.l.b16 %v269
      %v425 = vunpack.c.l.b16 %v270
      %v426 = vunpack.c.l.b16 %v271
      %v427 = vunpack.c.l.b16 %v272
      %v428 = vunpack.c.l.b16 %v273
      %v429 = vunpack.c.l.b16 %v274
      %v430 = vunpack.c.l.b16 %v275
      %v431 = vunpack.c.l.b16 %v276
      %v432 = vunpack.c.l.b16 %v277
      %v433 = vunpack.c.l.b16 %v278
      %v434 = vunpack.c.l.b16 %v279
      %v435 = vunpack.c.l.b16 %v280
      %v436 = vunpack.c.l.b16 %v281
      %v437 = vunpack.c.l.b16 %v282
      %v438 = vunpack.c.l.b16 %v283
      %v439 = vpack.c.b16 %v376, %v375
      %v440 = vpack.c.b16 %v378, %v377
      %v441 = vpack.c.b16 %v380, %v379
      %v442 = vpack.c.b16 %v382, %v381
      %v443 = vpack.c.b16 %v384, %v383
      %v444 = vpack.c.b16 %v386, %v385
      %v445 = vpack.c.b16 %v388, %v387
      %v446 = vpack.c.b16 %v390, %v389
      %v447 = vpack.c.b16 %v392, %v391
      %v448 = vpack.c.b16 %v394, %v393
      %v449 = vpack.c.b16 %v396, %v395
      %v450 = vpack.c.b16 %v398, %v397
      %v451 = vpack.c.b16 %v400, %v399
      %v452 = vpack.c.b16 %v402, %v401
      %v453 = vpack.c.b16 %v404, %v403
      %v454 = vpack.c.b16 %v406, %v405
      %v455 = vpack.c.b16 %v408, %v407
      %v456 = vpack.c.b16 %v410, %v409
      %v457 = vpack.c.b16 %v412, %v411
      %v458 = vpack.c.b16 %v414, %v413
      %v459 = vpack.c.b16 %v416, %v415
      %v460 = vpack.c.b16 %v418, %v417
      %v461 = vpack.c.b16 %v420, %v419
      %v462 = vpack.c.b16 %v422, %v421
      %v463 = vpack.c.b16 %v424, %v423
      %v464 = vpack.c.b16 %v426, %v425
      %v465 = vpack.c.b16 %v428, %v427
      %v466 = vpack.c.b16 %v430, %v429
      %v467 = vpack.c.b16 %v432, %v431
      %v468 = vpack.c.b16 %v434, %v433
      %v469 = vpack.c.b16 %v436, %v435
      %v470 = vpack.c.b16 %v438, %v437
      %503 = vmatprep.subr.bf16.mxu0 0
      %504 = vmatpush1.bf16.msra.mxu0 %v439
      %505 = vmatprep.subr.bf16.mxu0 0
      %506 = vmatpush1.bf16.msra.mxu0 %v440
      %507 = vmatprep.subr.bf16.mxu0 0
      %508 = vmatpush1.bf16.msra.mxu0 %v441
      %509 = vmatprep.subr.bf16.mxu0 0
      %510 = vmatpush1.bf16.msra.mxu0 %v442
      %511 = vmatprep.subr.bf16.mxu0 0
      %512 = vmatpush1.bf16.msra.mxu0 %v443
      %513 = vmatprep.subr.bf16.mxu0 0
      %514 = vmatpush1.bf16.msra.mxu0 %v444
      %515 = vmatprep.subr.bf16.mxu0 0
      %516 = vmatpush1.bf16.msra.mxu0 %v445
      %517 = vmatprep.subr.bf16.mxu0 0
      %518 = vmatpush1.bf16.msra.mxu0 %v446
      %519 = vmatprep.subr.bf16.mxu0 0
      %520 = vmatpush1.bf16.msra.mxu0 %v447
      %521 = vmatprep.subr.bf16.mxu0 0
      %522 = vmatpush1.bf16.msra.mxu0 %v448
      %523 = vmatprep.subr.bf16.mxu0 0
      %524 = vmatpush1.bf16.msra.mxu0 %v449
      %525 = vmatprep.subr.bf16.mxu0 0
      %526 = vmatpush1.bf16.msra.mxu0 %v450
      %527 = vmatprep.subr.bf16.mxu0 0
      %528 = vmatpush1.bf16.msra.mxu0 %v451
      %529 = vmatprep.subr.bf16.mxu0 0
      %530 = vmatpush1.bf16.msra.mxu0 %v452
      %531 = vmatprep.subr.bf16.mxu0 0
      %532 = vmatpush1.bf16.msra.mxu0 %v453
      %533 = vmatprep.subr.bf16.mxu0 0
      %534 = vmatpush1.bf16.msra.mxu0 %v454
      %535 = vmatprep.mubr.bf16.mxu0 %v304
      %536 = vmatmul.mubr.bf16.gmra.mrb[0].mxu0 %v303
      %v537 = vpop.f32.mrb[0].mxu0
      %v538 = vadd.f32 %v289, %v537
      %v539 = vpop.f32.mrb[0].mxu0
      %v540 = vpop.f32.mrb[0].mxu0
      %v541 = vadd.f32 %v289, %v540
      %v542 = vpop.f32.mrb[0].mxu0
      %543 = vdwg.mxu0
      %544 = vmatprep.subr.bf16.mxu0 0
      %545 = vmatpush1.bf16.msra.mxu0 %v455
      %546 = vmatprep.subr.bf16.mxu0 0
      %547 = vmatpush1.bf16.msra.mxu0 %v456
      %548 = vmatprep.subr.bf16.mxu0 0
      %549 = vmatpush1.bf16.msra.mxu0 %v457
      %550 = vmatprep.subr.bf16.mxu0 0
      %551 = vmatpush1.bf16.msra.mxu0 %v458
      %552 = vmatprep.subr.bf16.mxu0 0
      %553 = vmatpush1.bf16.msra.mxu0 %v459
      %554 = vmatprep.subr.bf16.mxu0 0
      %555 = vmatpush1.bf16.msra.mxu0 %v460
      %556 = vmatprep.subr.bf16.mxu0 0
      %557 = vmatpush1.bf16.msra.mxu0 %v461
      %558 = vmatprep.subr.bf16.mxu0 0
      %559 = vmatpush1.bf16.msra.mxu0 %v462
      %560 = vmatprep.subr.bf16.mxu0 0
      %561 = vmatpush1.bf16.msra.mxu0 %v463
      %562 = vmatprep.subr.bf16.mxu0 0
      %563 = vmatpush1.bf16.msra.mxu0 %v464
      %564 = vmatprep.subr.bf16.mxu0 0
      %565 = vmatpush1.bf16.msra.mxu0 %v465
      %566 = vmatprep.subr.bf16.mxu0 0
      %567 = vmatpush1.bf16.msra.mxu0 %v466
      %568 = vmatprep.subr.bf16.mxu0 0
      %569 = vmatpush1.bf16.msra.mxu0 %v467
      %570 = vmatprep.subr.bf16.mxu0 0
      %571 = vmatpush1.bf16.msra.mxu0 %v468
      %572 = vmatprep.subr.bf16.mxu0 0
      %573 = vmatpush1.bf16.msra.mxu0 %v469
      %574 = vmatprep.subr.bf16.mxu0 0
      %575 = vmatpush1.bf16.msra.mxu0 %v470
      %576 = vmatprep.mubr.bf16.mxu0 %v306
      %577 = vmatmul.mubr.bf16.gmra.mrb[0].mxu0 %v305
      %v578 = vpop.f32.mrb[0].mxu0
      %v579 = vadd.f32 %v538, %v578
      %v580 = vpop.f32.mrb[0].mxu0
      %v581 = vpop.f32.mrb[0].mxu0
      %v582 = vadd.f32 %v541, %v581
      %v583 = vpop.f32.mrb[0].mxu0
      %584 = vdwg.mxu0
      %v585 = vpack.c.bf16 %v582, %v579
      %v587 = vunpack.c.l.b16 %v585
      %v588 = vunpack.c.h.b16 %v585
      %v589 = vpack.c.b16 %v587, %v587
      %v590 = vpack.c.b16 %v588, %v588
      %593 = vst [vmem:[%s209] sm:$0xf] %v589
      %594 = vst [vmem:[%s209 + $0x4] sm:$0xf] %v590
      %s595 = smul.u32 %s16, 16
      %v596 = vlaneseq
      %v597 = vshrl.u32 %v596, 7
      %v598 = vadd.s32 %v597, 8
      %v599 = vstv %s595
      %v600 = vadd.s32 %v599, %v597
      %v601 = vadd.s32 %v599, %v598
      %vm602 = vcmp.lt.s32.totalorder %v600, 32
      %vm603 = vcmp.lt.s32.totalorder %v601, 32
      %v604 = vsel %vm602, 1, 0
      %v605 = vsel %vm603, 1, 0
      %vm606 = vcmp.eq.s32.totalorder %v604, 1
      %vm607 = vcmp.eq.s32.totalorder %v605, 1
      %v608 = vsel %vm606, %v579, 0.0
      %v609 = vsel %vm607, %v582, 0.0
      %v610 = vadd.f32 %v608, %v609
      %v611 = vrot.slane %v610, 4
      %v612 = vadd.f32 %v610, %v611
      %v613 = vrot.slane %v612, 2
      %v614 = vadd.f32 %v612, %v613
      %v615 = vrot.slane %v614, 1
      %v616 = vadd.f32 %v614, %v615
      %617 = vst [vmem:[%s214] sm:$0x1] %v616
      %v618 = vmul.f32 %v608, %v608
      %v619 = vmul.f32 %v609, %v609
      %v620 = vadd.f32 %v618, %v619
      %v621 = vrot.slane %v620, 4
      %v622 = vadd.f32 %v620, %v621
      %v623 = vrot.slane %v622, 2
      %v624 = vadd.f32 %v622, %v623
      %v625 = vrot.slane %v624, 1
      %v626 = vadd.f32 %v624, %v625
      %627 = vst [vmem:[%s214 + $0x1] sm:$0x1] %v626
      %s628 = smul.u32 2, %s16
      %p629 = scmp.lt.s32.totalorder %s628, 3
      %s630 = scalar_select %p629, %s628, 3
      %s631 = smul.addr %s630, 4
      %s632 = scalar_lea.vmem %s3, %s631
      %p633 = scmp.lt.s32.totalorder %s16, 1
      %s634 = scalar_select %p633, %s16, 1
      %s635 = smul.addr %s634, 2
      %s636 = scalar_lea.vmem %s4, %s635
      // Predicated region
      $region33: #{spa_discriminator_forward.11} parent=31 // pred_check
        %p637 = pneg %p102
      $region34: #{spa_discriminator_forward.11} parent=31 // pred_check_branch
        %639 = sbr.rel (%p637) target = $region36
      $region35: #{spa_discriminator_forward.11} parent=31 // pred_region
        %s640 = smul.u32 2, %s16
      $region36: #{spa_discriminator_forward.11} parent=31 // pred_fallthru
        _
      // Predicated region
      $region37: #{spa_discriminator_forward.11} parent=31 // pred_check
        %p641 = pneg %p128
      $region38: #{spa_discriminator_forward.11} parent=31 // pred_check_branch
        %643 = sbr.rel (%p641) target = $region40
      $region39: #{spa_discriminator_forward.11} parent=31 // pred_region
        _
      $region40: #{spa_discriminator_forward.11} parent=31 // pred_fallthru
        _
    $region32: #{spa_discriminator_forward.11} parent=5 // pred_fallthru
      _
    %p644 = scmp.le.s32.totalorder 2, %s11
    // Predicated region
    $region41: #{spa_discriminator_forward.11} parent=5 // pred_check
      %p645 = pneg %p644
    $region42: #{spa_discriminator_forward.11} parent=5 // pred_check_branch
      %647 = sbr.rel (%p645) target = $region44
    $region43: #{spa_discriminator_forward.11} parent=5 // pred_region
      %s648 = ssub.s32 %s11, 2
      // Predicated region
      $region45: #{spa_discriminator_forward.11} parent=43 // pred_check
        %p649 = pneg %p108
      $region46: #{spa_discriminator_forward.11} parent=43 // pred_check_branch
        %651 = sbr.rel (%p649) target = $region48
      $region47: #{spa_discriminator_forward.11} parent=43 // pred_region
        %s652 = smul.u32 2, %s17
        %p653 = scmp.lt.s32.totalorder %s652, 3
        %s654 = scalar_select %p653, %s652, 3
        %s655 = smul.addr %s654, 4
        %s656 = scalar_lea.vmem %s3, %s655
      $region48: #{spa_discriminator_forward.11} parent=43 // pred_fallthru
        _
      // Predicated region
      $region49: #{spa_discriminator_forward.11} parent=43 // pred_check
        %p657 = pneg %p134
      $region50: #{spa_discriminator_forward.11} parent=43 // pred_check_branch
        %659 = sbr.rel (%p657) target = $region52
      $region51: #{spa_discriminator_forward.11} parent=43 // pred_region
        %p660 = scmp.lt.s32.totalorder %s17, 1
        %s661 = scalar_select %p660, %s17, 1
        %s662 = smul.addr %s661, 2
        %s663 = scalar_lea.vmem %s4, %s662
      $region52: #{spa_discriminator_forward.11} parent=43 // pred_fallthru
        _
    $region44: #{spa_discriminator_forward.11} parent=5 // pred_fallthru
      _
  $region6: #{spa_discriminator_forward.11} parent=0 // loop_footer
    %s15 = sadd.s32 1, %s11
  $region7: #{spa_discriminator_forward.11} parent=0 // loop_footer_branch
    %10 = sbr.rel target = $region3
  $region8: #{spa_discriminator_forward.11} parent=0 // loop_exit
    _

// kernel: spa_discriminator_forward.15
$region0: #{spa_discriminator_forward.15}
  #allocation0 [shape = 'u32[]', space=smem, size = 0x4, offset = 0x4, fixed_abs, tag = 'smem constant byte address 0x4 - core index']
  #allocation1 [shape = 'u32[144,128]{1,0:T(1,128)}', space=vmem, size = 0x12000, scoped, tag = 'internal scratch']
  #allocation2 [shape = 'f32[1,1]{1,0:T(1,128)S(1)}', space=vmem, size = 0x200, scoped, tag = 'scoped memory for spa_discriminator_forward.15']
  %s0 = inlined_call_operand.vmem [shape: bf16[16,2048], index: 0, kind: input, shape index: {}]
  %s1 = inlined_call_operand.vmem [shape: f32[1,2048], index: 1, kind: input, shape index: {}]
  %s2 = inlined_call_operand.<no memory space> [shape: f32[1,1], index: 2, kind: input, shape index: {}]
  %s3 = inlined_call_operand.vmem [shape: f32[16,1], index: 3, kind: output, shape index: {}]
  %s4 = sld [smem:[#allocation0]]
  $region22: #{spa_discriminator_forward.15} parent=0
    _
  %s6 = ssub.s32 1, %s4
  %s7 = scalar_select 0, %s6, %s4
  %v8 = vstv %s2
  %9 = vst [vmem:[#allocation2] sm:$0x1] %v8
  // Predicated region
  $region2: #{spa_discriminator_forward.15} parent=0 // pred_check
    _
  $region3: #{spa_discriminator_forward.15} parent=0 // pred_check_branch
    %11 = sbr.rel (0) target = $region5
  $region4: #{spa_discriminator_forward.15} parent=0 // pred_region
    _
  $region5: #{spa_discriminator_forward.15} parent=0 // pred_fallthru
    _
  // Predicated region
  $region6: #{spa_discriminator_forward.15} parent=0 // pred_check
    _
  $region7: #{spa_discriminator_forward.15} parent=0 // pred_check_branch
    %13 = sbr.rel (0) target = $region9
  $region8: #{spa_discriminator_forward.15} parent=0 // pred_region
    _
  $region9: #{spa_discriminator_forward.15} parent=0 // pred_fallthru
    _
  // Predicated region
  $region10: #{spa_discriminator_forward.15} parent=0 // pred_check
    _
  $region11: #{spa_discriminator_forward.15} parent=0 // pred_check_branch
    %15 = sbr.rel (0) target = $region13
  $region12: #{spa_discriminator_forward.15} parent=0 // pred_region
    _
  $region13: #{spa_discriminator_forward.15} parent=0 // pred_fallthru
    _
  %v16 = vld [vmem:[%s0] sm:$0xff]
  %v17 = vld [vmem:[%s0 + $0x8] sm:$0xff]
  %v18 = vld [vmem:[%s0 + $0x10] sm:$0xff]
  %v19 = vld [vmem:[%s0 + $0x18] sm:$0xff]
  %v20 = vld [vmem:[%s0 + $0x20] sm:$0xff]
  %v21 = vld [vmem:[%s0 + $0x28] sm:$0xff]
  %v22 = vld [vmem:[%s0 + $0x30] sm:$0xff]
  %v23 = vld [vmem:[%s0 + $0x38] sm:$0xff]
  %v24 = vld [vmem:[%s0 + $0x40] sm:$0xff]
  %v25 = vld [vmem:[%s0 + $0x48] sm:$0xff]
  %v26 = vld [vmem:[%s0 + $0x50] sm:$0xff]
  %v27 = vld [vmem:[%s0 + $0x58] sm:$0xff]
  %v28 = vld [vmem:[%s0 + $0x60] sm:$0xff]
  %v29 = vld [vmem:[%s0 + $0x68] sm:$0xff]
  %v30 = vld [vmem:[%s0 + $0x70] sm:$0xff]
  %v31 = vld [vmem:[%s0 + $0x78] sm:$0xff]
  %v32 = vunpack.c.l.bf16 %v16
  %v33 = vunpack.c.h.bf16 %v16
  %v34 = vunpack.c.l.bf16 %v17
  %v35 = vunpack.c.h.bf16 %v17
  %v36 = vunpack.c.l.bf16 %v18
  %v37 = vunpack.c.h.bf16 %v18
  %v38 = vunpack.c.l.bf16 %v19
  %v39 = vunpack.c.h.bf16 %v19
  %v40 = vunpack.c.l.bf16 %v20
  %v41 = vunpack.c.h.bf16 %v20
  %v42 = vunpack.c.l.bf16 %v21
  %v43 = vunpack.c.h.bf16 %v21
  %v44 = vunpack.c.l.bf16 %v22
  %v45 = vunpack.c.h.bf16 %v22
  %v46 = vunpack.c.l.bf16 %v23
  %v47 = vunpack.c.h.bf16 %v23
  %v48 = vunpack.c.l.bf16 %v24
  %v49 = vunpack.c.h.bf16 %v24
  %v50 = vunpack.c.l.bf16 %v25
  %v51 = vunpack.c.h.bf16 %v25
  %v52 = vunpack.c.l.bf16 %v26
  %v53 = vunpack.c.h.bf16 %v26
  %v54 = vunpack.c.l.bf16 %v27
  %v55 = vunpack.c.h.bf16 %v27
  %v56 = vunpack.c.l.bf16 %v28
  %v57 = vunpack.c.h.bf16 %v28
  %v58 = vunpack.c.l.bf16 %v29
  %v59 = vunpack.c.h.bf16 %v29
  %v60 = vunpack.c.l.bf16 %v30
  %v61 = vunpack.c.h.bf16 %v30
  %v62 = vunpack.c.l.bf16 %v31
  %v63 = vunpack.c.h.bf16 %v31
  %v64 = vld [vmem:[%s1] sm:$0xff]
  %v65 = vld [vmem:[%s1 + $0x8] sm:$0xff]
  %v68 = vlaneseq
  %v69 = vshrl.u32 %v68, 7
  %v70 = vsub.s32 0, %v69
  %v71 = vrot.slane %v64, %v70
  %v72 = vlaneseq
  %v73 = vshrl.u32 %v72, 7
  %v74 = vsub.s32 1, %v73
  %v75 = vrot.slane %v64, %v74
  %v76 = vlaneseq
  %v77 = vshrl.u32 %v76, 7
  %v78 = vsub.s32 2, %v77
  %v79 = vrot.slane %v64, %v78
  %v80 = vlaneseq
  %v81 = vshrl.u32 %v80, 7
  %v82 = vsub.s32 3, %v81
  %v83 = vrot.slane %v64, %v82
  %v84 = vlaneseq
  %v85 = vshrl.u32 %v84, 7
  %v86 = vsub.s32 4, %v85
  %v87 = vrot.slane %v64, %v86
  %v88 = vlaneseq
  %v89 = vshrl.u32 %v88, 7
  %v90 = vsub.s32 5, %v89
  %v91 = vrot.slane %v64, %v90
  %v92 = vlaneseq
  %v93 = vshrl.u32 %v92, 7
  %v94 = vsub.s32 6, %v93
  %v95 = vrot.slane %v64, %v94
  %v96 = vlaneseq
  %v97 = vshrl.u32 %v96, 7
  %v98 = vsub.s32 7, %v97
  %v99 = vrot.slane %v64, %v98
  %v100 = vlaneseq
  %v101 = vshrl.u32 %v100, 7
  %v102 = vsub.s32 0, %v101
  %v103 = vrot.slane %v65, %v102
  %v104 = vlaneseq
  %v105 = vshrl.u32 %v104, 7
  %v106 = vsub.s32 1, %v105
  %v107 = vrot.slane %v65, %v106
  %v108 = vlaneseq
  %v109 = vshrl.u32 %v108, 7
  %v110 = vsub.s32 2, %v109
  %v111 = vrot.slane %v65, %v110
  %v112 = vlaneseq
  %v113 = vshrl.u32 %v112, 7
  %v114 = vsub.s32 3, %v113
  %v115 = vrot.slane %v65, %v114
  %v116 = vlaneseq
  %v117 = vshrl.u32 %v116, 7
  %v118 = vsub.s32 4, %v117
  %v119 = vrot.slane %v65, %v118
  %v120 = vlaneseq
  %v121 = vshrl.u32 %v120, 7
  %v122 = vsub.s32 5, %v121
  %v123 = vrot.slane %v65, %v122
  %v124 = vlaneseq
  %v125 = vshrl.u32 %v124, 7
  %v126 = vsub.s32 6, %v125
  %v127 = vrot.slane %v65, %v126
  %v128 = vlaneseq
  %v129 = vshrl.u32 %v128, 7
  %v130 = vsub.s32 7, %v129
  %v131 = vrot.slane %v65, %v130
  %v148 = vmul.f32 %v32, %v71
  %v149 = vmul.f32 %v33, %v75
  %v150 = vmul.f32 %v34, %v79
  %v151 = vmul.f32 %v35, %v83
  %v152 = vmul.f32 %v36, %v87
  %v153 = vmul.f32 %v37, %v91
  %v154 = vmul.f32 %v38, %v95
  %v155 = vmul.f32 %v39, %v99
  %v156 = vmul.f32 %v40, %v103
  %v157 = vmul.f32 %v41, %v107
  %v158 = vmul.f32 %v42, %v111
  %v159 = vmul.f32 %v43, %v115
  %v160 = vmul.f32 %v44, %v119
  %v161 = vmul.f32 %v45, %v123
  %v162 = vmul.f32 %v46, %v127
  %v163 = vmul.f32 %v47, %v131
  %v164 = vmul.f32 %v48, %v71
  %v165 = vmul.f32 %v49, %v75
  %v166 = vmul.f32 %v50, %v79
  %v167 = vmul.f32 %v51, %v83
  %v168 = vmul.f32 %v52, %v87
  %v169 = vmul.f32 %v53, %v91
  %v170 = vmul.f32 %v54, %v95
  %v171 = vmul.f32 %v55, %v99
  %v172 = vmul.f32 %v56, %v103
  %v173 = vmul.f32 %v57, %v107
  %v174 = vmul.f32 %v58, %v111
  %v175 = vmul.f32 %v59, %v115
  %v176 = vmul.f32 %v60, %v119
  %v177 = vmul.f32 %v61, %v123
  %v178 = vmul.f32 %v62, %v127
  %v179 = vmul.f32 %v63, %v131
  %v180 = vadd.f32 %v148, %v149
  %v181 = vadd.f32 %v180, %v150
  %v182 = vadd.f32 %v181, %v151
  %v183 = vadd.f32 %v182, %v152
  %v184 = vadd.f32 %v183, %v153
  %v185 = vadd.f32 %v184, %v154
  %v186 = vadd.f32 %v185, %v155
  %v187 = vadd.f32 %v186, %v156
  %v188 = vadd.f32 %v187, %v157
  %v189 = vadd.f32 %v188, %v158
  %v190 = vadd.f32 %v189, %v159
  %v191 = vadd.f32 %v190, %v160
  %v192 = vadd.f32 %v191, %v161
  %v193 = vadd.f32 %v192, %v162
  %v194 = vadd.f32 %v193, %v163
  %195 = vadd.xlane.f32.xlu0 %v194
  %v196 = vpop.xlane.xlu0 %195
  %v197 = vadd.f32 %v164, %v165
  %v198 = vadd.f32 %v197, %v166
  %v199 = vadd.f32 %v198, %v167
  %v200 = vadd.f32 %v199, %v168
  %v201 = vadd.f32 %v200, %v169
  %v202 = vadd.f32 %v201, %v170
  %v203 = vadd.f32 %v202, %v171
  %v204 = vadd.f32 %v203, %v172
  %v205 = vadd.f32 %v204, %v173
  %v206 = vadd.f32 %v205, %v174
  %v207 = vadd.f32 %v206, %v175
  %v208 = vadd.f32 %v207, %v176
  %v209 = vadd.f32 %v208, %v177
  %v210 = vadd.f32 %v209, %v178
  %v211 = vadd.f32 %v210, %v179
  %212 = vadd.xlane.f32.xlu0 %v211
  %v213 = vpop.xlane.xlu0 %212
  %v214 = vld [vmem:[#allocation2] sm:$0x1]
  %v216 = vlaneseq
  %v217 = vshrl.u32 %v216, 7
  %v218 = vsub.s32 0, %v217
  %v219 = vrot.slane %v214, %v218
  %v221 = vadd.f32 %v196, %v219
  %v222 = vadd.f32 %v213, %v219
  %v223 = vxor.u32 %v221, 2147483648
  %v224 = vxor.u32 %v222, 2147483648
  %v225 = vmul.f32 %v223, 1.442695
  %v226 = vpow.pop %v225
  %v227 = vmul.f32 %v224, 1.442695
  %v228 = vpow.pop %v227
  %v229 = vadd.f32 %v226, 1.0
  %v230 = vadd.f32 %v228, 1.0
  %v231 = vrcp.pop %v229
  %v232 = vmul.f32 1.0, %v231
  %v233 = vrcp.pop %v230
  %v234 = vmul.f32 1.0, %v233
  %vm235 = vcmask 7168
  %236 = vst.msk [vmem:[%s3] sm:$0xff] %vm235, %v232
  %237 = vst.msk [vmem:[%s3 + $0x8] sm:$0xff] %vm235, %v234
  // Predicated region
  $region14: #{spa_discriminator_forward.15} parent=0 // pred_check
    _
  $region15: #{spa_discriminator_forward.15} parent=0 // pred_check_branch
    %239 = sbr.rel (0) target = $region17
  $region16: #{spa_discriminator_forward.15} parent=0 // pred_region
    _
  $region17: #{spa_discriminator_forward.15} parent=0 // pred_fallthru
    _
  // Predicated region
  $region18: #{spa_discriminator_forward.15} parent=0 // pred_check
    _
  $region19: #{spa_discriminator_forward.15} parent=0 // pred_check_branch
    %241 = sbr.rel (0) target = $region21
  $region20: #{spa_discriminator_forward.15} parent=0 // pred_region
    _
  $region21: #{spa_discriminator_forward.15} parent=0 // pred_fallthru
    _

// kernel: spa_discriminator_forward.13
$region0: #{spa_discriminator_forward.13}
  #allocation0 [shape = 'u32[]', space=smem, size = 0x4, offset = 0x4, fixed_abs, tag = 'smem constant byte address 0x4 - core index']
  #allocation1 [shape = 'u32[144,128]{1,0:T(1,128)}', space=vmem, size = 0x12000, scoped, tag = 'internal scratch']
  %s0 = inlined_call_operand.vmem [shape: bf16[32,1024], index: 0, kind: input, shape index: {}]
  %s1 = inlined_call_operand.vmem [shape: bf16[1024,128], index: 1, kind: input, shape index: {}]
  %s2 = inlined_call_operand.vmem [shape: f32[1,128], index: 2, kind: input, shape index: {}]
  %s3 = inlined_call_operand.vmem [shape: bf16[32,128], index: 3, kind: output, shape index: {0}]
  %s4 = inlined_call_operand.vmem [shape: f32[2,2,128], index: 4, kind: output, shape index: {1}]
  %5 = xla_tuple %s3, %s4
  %s6 = sld [smem:[#allocation0]]
  $region53: #{spa_discriminator_forward.13} parent=0
    _
  %s8 = ssub.s32 1, %s6
  %s9 = scalar_select 0, %s8, %s6
  loop: start=0, step=1, limit=4
  $region2: #{spa_discriminator_forward.13} parent=0 // loop_pre_header
    _
  $region3: #{spa_discriminator_forward.13} parent=0 // loop_header
    %s11 = sphi 0, %s15
    %p12 = scmp.ge.s32.totalorder %s11, 4
    %s21 = sphi 0, %s23
    %s24 = sphi 0, %s21
    %s25 = sphi 0, %s24
    %s41 = sphi 0, %s25
    %s45 = sphi 0, %s45
    %s47 = sphi 0, %s45
    %s48 = sphi 0, %s47
    %s62 = sphi 0, %s48
    %s66 = sphi 0, %s66
    %s68 = sphi 0, %s66
    %s69 = sphi 0, %s68
    %s83 = sphi 0, %s69
    %s89 = sphi 0, %s91
    %s92 = sphi 0, %s89
    %s93 = sphi 0, %s92
    %s109 = sphi 0, %s93
    %s115 = sphi 0, %s117
    %s118 = sphi 0, %s115
    %s119 = sphi 0, %s118
    %s135 = sphi 0, %s119
  $region4: #{spa_discriminator_forward.13} parent=0 // loop_header_branch
    %14 = sbr.rel (%p12) target = $region8
  $region5: #{spa_discriminator_forward.13} parent=0 // loop_body
    %s16 = ssub.s32 %s11, 1
    %s17 = ssub.s32 %s11, 2
    %s18 = sadd.s32 %s11, 1
    %s19 = ssub.s32 %s11, %s18
    %p20 = scmp.eq.s32.totalorder %s19, 0
    %s22 = sadd.s32 %s21, 1
    %s23 = scalar_select %p20, %s21, %s22
    %p26 = pneg %p20
    %p27 = scmp.eq.s32.totalorder %s11, 1
    %p28 = por %p26, %p27
    %p29 = scmp.ne.s32.totalorder %s21, %s24
    %p30 = scmp.eq.s32.totalorder %s11, 0
    %p31 = por %p29, %p30
    %p32 = scmp.ne.s32.totalorder %s21, %s24
    %p33 = scmp.eq.s32.totalorder %s16, 1
    %p34 = por %p32, %p33
    %p35 = scmp.ne.s32.totalorder %s24, %s25
    %p36 = scmp.eq.s32.totalorder %s16, 0
    %p37 = por %p35, %p36
    %p38 = scmp.ne.s32.totalorder %s24, %s25
    %p39 = scmp.eq.s32.totalorder %s17, 1
    %p40 = por %p38, %p39
    %p42 = scmp.ne.s32.totalorder %s25, %s41
    %p43 = scmp.eq.s32.totalorder %s17, 0
    %p44 = por %p42, %p43
    %s46 = sadd.s32 %s45, 1
    %p49 = scmp.eq.s32.totalorder %s11, 1
    %p50 = scmp.ne.s32.totalorder %s45, %s47
    %p51 = scmp.eq.s32.totalorder %s11, 0
    %p52 = por %p50, %p51
    %p53 = scmp.ne.s32.totalorder %s45, %s47
    %p54 = scmp.eq.s32.totalorder %s16, 1
    %p55 = por %p53, %p54
    %p56 = scmp.ne.s32.totalorder %s47, %s48
    %p57 = scmp.eq.s32.totalorder %s16, 0
    %p58 = por %p56, %p57
    %p59 = scmp.ne.s32.totalorder %s47, %s48
    %p60 = scmp.eq.s32.totalorder %s17, 1
    %p61 = por %p59, %p60
    %p63 = scmp.ne.s32.totalorder %s48, %s62
    %p64 = scmp.eq.s32.totalorder %s17, 0
    %p65 = por %p63, %p64
    %s67 = sadd.s32 %s66, 1
    %p70 = scmp.eq.s32.totalorder %s11, 1
    %p71 = scmp.ne.s32.totalorder %s66, %s68
    %p72 = scmp.eq.s32.totalorder %s11, 0
    %p73 = por %p71, %p72
    %p74 = scmp.ne.s32.totalorder %s66, %s68
    %p75 = scmp.eq.s32.totalorder %s16, 1
    %p76 = por %p74, %p75
    %p77 = scmp.ne.s32.totalorder %s68, %s69
    %p78 = scmp.eq.s32.totalorder %s16, 0
    %p79 = por %p77, %p78
    %p80 = scmp.ne.s32.totalorder %s68, %s69
    %p81 = scmp.eq.s32.totalorder %s17, 1
    %p82 = por %p80, %p81
    %p84 = scmp.ne.s32.totalorder %s69, %s83
    %p85 = scmp.eq.s32.totalorder %s17, 0
    %p86 = por %p84, %p85
    %s87 = ssub.s32 %s11, %s18
    %p88 = scmp.eq.s32.totalorder %s87, 0
    %s90 = sadd.s32 %s89, 1
    %s91 = scalar_select %p88, %s89, %s90
    %p94 = pneg %p88
    %p95 = scmp.eq.s32.totalorder %s11, 1
    %p96 = por %p94, %p95
    %p97 = scmp.ne.s32.totalorder %s89, %s92
    %p98 = scmp.eq.s32.totalorder %s11, 0
    %p99 = por %p97, %p98
    %p100 = scmp.ne.s32.totalorder %s89, %s92
    %p101 = scmp.eq.s32.totalorder %s16, 1
    %p102 = por %p100, %p101
    %p103 = scmp.ne.s32.totalorder %s92, %s93
    %p104 = scmp.eq.s32.totalorder %s16, 0
    %p105 = por %p103, %p104
    %p106 = scmp.ne.s32.totalorder %s92, %s93
    %p107 = scmp.eq.s32.totalorder %s17, 1
    %p108 = por %p106, %p107
    %p110 = scmp.ne.s32.totalorder %s93, %s109
    %p111 = scmp.eq.s32.totalorder %s17, 0
    %p112 = por %p110, %p111
    %s113 = ssub.s32 %s11, %s18
    %p114 = scmp.eq.s32.totalorder %s113, 0
    %s116 = sadd.s32 %s115, 1
    %s117 = scalar_select %p114, %s115, %s116
    %p120 = pneg %p114
    %p121 = scmp.eq.s32.totalorder %s11, 1
    %p122 = por %p120, %p121
    %p123 = scmp.ne.s32.totalorder %s115, %s118
    %p124 = scmp.eq.s32.totalorder %s11, 0
    %p125 = por %p123, %p124
    %p126 = scmp.ne.s32.totalorder %s115, %s118
    %p127 = scmp.eq.s32.totalorder %s16, 1
    %p128 = por %p126, %p127
    %p129 = scmp.ne.s32.totalorder %s118, %s119
    %p130 = scmp.eq.s32.totalorder %s16, 0
    %p131 = por %p129, %p130
    %p132 = scmp.ne.s32.totalorder %s118, %s119
    %p133 = scmp.eq.s32.totalorder %s17, 1
    %p134 = por %p132, %p133
    %p136 = scmp.ne.s32.totalorder %s119, %s135
    %p137 = scmp.eq.s32.totalorder %s17, 0
    %p138 = por %p136, %p137
    %p139 = scmp.le.s32.totalorder 1, %s11
    %p140 = scmp.lt.s32.totalorder %s11, 3
    %p141 = pnand %p139, %p140
    %p142 = pneg %p141
    // Predicated region
    $region9: #{spa_discriminator_forward.13} parent=5 // pred_check
      _
    $region10: #{spa_discriminator_forward.13} parent=5 // pred_check_branch
      %144 = sbr.rel (%p141) target = $region12
    $region11: #{spa_discriminator_forward.13} parent=5 // pred_region
      %s145 = ssub.s32 %s11, 1
      // Predicated region
      $region13: #{spa_discriminator_forward.13} parent=11 // pred_check
        %p146 = pneg %p58
      $region14: #{spa_discriminator_forward.13} parent=11 // pred_check_branch
        %148 = sbr.rel (%p146) target = $region16
      $region15: #{spa_discriminator_forward.13} parent=11 // pred_region
        _
      $region16: #{spa_discriminator_forward.13} parent=11 // pred_fallthru
        _
      // Predicated region
      $region17: #{spa_discriminator_forward.13} parent=11 // pred_check
        %p149 = pneg %p79
      $region18: #{spa_discriminator_forward.13} parent=11 // pred_check_branch
        %151 = sbr.rel (%p149) target = $region20
      $region19: #{spa_discriminator_forward.13} parent=11 // pred_region
        _
      $region20: #{spa_discriminator_forward.13} parent=11 // pred_fallthru
        _
    $region12: #{spa_discriminator_forward.13} parent=5 // pred_fallthru
      _
    %p152 = scmp.lt.s32.totalorder %s11, 2
    // Predicated region
    $region21: #{spa_discriminator_forward.13} parent=5 // pred_check
      %p153 = pneg %p152
    $region22: #{spa_discriminator_forward.13} parent=5 // pred_check_branch
      %155 = sbr.rel (%p153) target = $region24
    $region23: #{spa_discriminator_forward.13} parent=5 // pred_region
      // Predicated region
      $region25: #{spa_discriminator_forward.13} parent=23 // pred_check
        %p156 = pneg %p31
      $region26: #{spa_discriminator_forward.13} parent=23 // pred_check_branch
        %158 = sbr.rel (%p156) target = $region28
      $region27: #{spa_discriminator_forward.13} parent=23 // pred_region
        %s159 = smul.u32 2, %s11
        %p160 = scmp.lt.s32.totalorder %s159, 3
        %s161 = scalar_select %p160, %s159, 3
        %s162 = smul.addr %s161, 8
        %s163 = smul.addr %s162, 4
        %s164 = scalar_lea.vmem %s0, %s163
        %s165 = smul.u32 2, %s11
      $region28: #{spa_discriminator_forward.13} parent=23 // pred_fallthru
        _
    $region24: #{spa_discriminator_forward.13} parent=5 // pred_fallthru
      _
    %p166 = scmp.le.s32.totalorder 1, %s11
    %p167 = scmp.lt.s32.totalorder %s11, 3
    %p168 = pnand %p166, %p167
    %p169 = pneg %p168
    // Predicated region
    $region29: #{spa_discriminator_forward.13} parent=5 // pred_check
      _
    $region30: #{spa_discriminator_forward.13} parent=5 // pred_check_branch
      %171 = sbr.rel (%p168) target = $region32
    $region31: #{spa_discriminator_forward.13} parent=5 // pred_region
      %s172 = ssub.s32 %s11, 1
      %s173 = smul.u32 2, %s16
      %p174 = scmp.lt.s32.totalorder %s173, 3
      %s175 = scalar_select %p174, %s173, 3
      %s176 = smul.addr %s175, 8
      %s177 = smul.addr %s176, 4
      %s178 = scalar_lea.vmem %s0, %s177
      %p179 = pneg %p37
      %p180 = pneg %p34
      %p181 = pneg %p58
      %p182 = pneg %p55
      %p183 = pneg %p79
      %p184 = pneg %p76
      %p185 = pneg %p105
      %p186 = pneg %p102
      %s187 = smul.u32 2, %s16
      %p188 = scmp.lt.s32.totalorder %s187, 3
      %s189 = scalar_select %p188, %s187, 3
      %s190 = smul.addr %s189, 4
      %s191 = scalar_lea.vmem %s3, %s190
      %p192 = pneg %p131
      %p193 = pneg %p128
      %p194 = scmp.lt.s32.totalorder %s16, 1
      %s195 = scalar_select %p194, %s16, 1
      %s196 = smul.addr %s195, 2
      %s197 = scalar_lea.vmem %s4, %s196
      %s198 = smul.u32 2, %s16
      %p199 = scmp.lt.s32.totalorder %s198, 3
      %s200 = scalar_select %p199, %s198, 3
      %s201 = smul.addr %s200, 8
      %s202 = smul.addr %s201, 4
      %s203 = scalar_lea.vmem %s0, %s202
      %s204 = smul.u32 2, %s16
      %s205 = smul.u32 2, %s16
      %p206 = scmp.lt.s32.totalorder %s205, 3
      %s207 = scalar_select %p206, %s205, 3
      %s208 = smul.addr %s207, 4
      %s209 = scalar_lea.vmem %s3, %s208
      %s210 = smul.u32 2, %s16
      %p211 = scmp.lt.s32.totalorder %s16, 1
      %s212 = scalar_select %p211, %s16, 1
      %s213 = smul.addr %s212, 2
      %s214 = scalar_lea.vmem %s4, %s213
      %v216 = vld [vmem:[%s203] sm:$0xff]
      %v217 = vld [vmem:[%s203 + $0x8] sm:$0xff]
      %v218 = vld [vmem:[%s203 + $0x10] sm:$0xff]
      %v219 = vld [vmem:[%s203 + $0x18] sm:$0xff]
      %v220 = vld [vmem:[%s203 + $0x20] sm:$0xff]
      %v221 = vld [vmem:[%s203 + $0x28] sm:$0xff]
      %v222 = vld [vmem:[%s203 + $0x30] sm:$0xff]
      %v223 = vld [vmem:[%s203 + $0x38] sm:$0xff]
      %v224 = vld [vmem:[%s1] sm:$0xf]
      %v225 = vld [vmem:[%s1 + $0x4] sm:$0xf]
      %v226 = vld [vmem:[%s1 + $0x8] sm:$0xf]
      %v227 = vld [vmem:[%s1 + $0xc] sm:$0xf]
      %v228 = vld [vmem:[%s1 + $0x10] sm:$0xf]
      %v229 = vld [vmem:[%s1 + $0x14] sm:$0xf]
      %v230 = vld [vmem:[%s1 + $0x18] sm:$0xf]
      %v231 = vld [vmem:[%s1 + $0x1c] sm:$0xf]
      %v232 = vld [vmem:[%s1 + $0x20] sm:$0xf]
      %v233 = vld [vmem:[%s1 + $0x24] sm:$0xf]
      %v234 = vld [vmem:[%s1 + $0x28] sm:$0xf]
      %v235 = vld [vmem:[%s1 + $0x2c] sm:$0xf]
      %v236 = vld [vmem:[%s1 + $0x30] sm:$0xf]
      %v237 = vld [vmem:[%s1 + $0x34] sm:$0xf]
      %v238 = vld [vmem:[%s1 + $0x38] sm:$0xf]
      %v239 = vld [vmem:[%s1 + $0x3c] sm:$0xf]
      %v240 = vld [vmem:[%s1 + $0x40] sm:$0xf]
      %v241 = vld [vmem:[%s1 + $0x44] sm:$0xf]
      %v242 = vld [vmem:[%s1 + $0x48] sm:$0xf]
      %v243 = vld [vmem:[%s1 + $0x4c] sm:$0xf]
      %v244 = vld [vmem:[%s1 + $0x50] sm:$0xf]
      %v245 = vld [vmem:[%s1 + $0x54] sm:$0xf]
      %v246 = vld [vmem:[%s1 + $0x58] sm:$0xf]
      %v247 = vld [vmem:[%s1 + $0x5c] sm:$0xf]
      %v248 = vld [vmem:[%s1 + $0x60] sm:$0xf]
      %v249 = vld [vmem:[%s1 + $0x64] sm:$0xf]
      %v250 = vld [vmem:[%s1 + $0x68] sm:$0xf]
      %v251 = vld [vmem:[%s1 + $0x6c] sm:$0xf]
      %v252 = vld [vmem:[%s1 + $0x70] sm:$0xf]
      %v253 = vld [vmem:[%s1 + $0x74] sm:$0xf]
      %v254 = vld [vmem:[%s1 + $0x78] sm:$0xf]
      %v255 = vld [vmem:[%s1 + $0x7c] sm:$0xf]
      %v256 = vld [vmem:[%s1 + $0x80] sm:$0xf]
      %v257 = vld [vmem:[%s1 + $0x84] sm:$0xf]
      %v258 = vld [vmem:[%s1 + $0x88] sm:$0xf]
      %v259 = vld [vmem:[%s1 + $0x8c] sm:$0xf]
      %v260 = vld [vmem:[%s1 + $0x90] sm:$0xf]
      %v261 = vld [vmem:[%s1 + $0x94] sm:$0xf]
      %v262 = vld [vmem:[%s1 + $0x98] sm:$0xf]
      %v263 = vld [vmem:[%s1 + $0x9c] sm:$0xf]
      %v264 = vld [vmem:[%s1 + $0xa0] sm:$0xf]
      %v265 = vld [vmem:[%s1 + $0xa4] sm:$0xf]
      %v266 = vld [vmem:[%s1 + $0xa8] sm:$0xf]
      %v267 = vld [vmem:[%s1 + $0xac] sm:$0xf]
      %v268 = vld [vmem:[%s1 + $0xb0] sm:$0xf]
      %v269 = vld [vmem:[%s1 + $0xb4] sm:$0xf]
      %v270 = vld [vmem:[%s1 + $0xb8] sm:$0xf]
      %v271 = vld [vmem:[%s1 + $0xbc] sm:$0xf]
      %v272 = vld [vmem:[%s1 + $0xc0] sm:$0xf]
      %v273 = vld [vmem:[%s1 + $0xc4] sm:$0xf]
      %v274 = vld [vmem:[%s1 + $0xc8] sm:$0xf]
      %v275 = vld [vmem:[%s1 + $0xcc] sm:$0xf]
      %v276 = vld [vmem:[%s1 + $0xd0] sm:$0xf]
      %v277 = vld [vmem:[%s1 + $0xd4] sm:$0xf]
      %v278 = vld [vmem:[%s1 + $0xd8] sm:$0xf]
      %v279 = vld [vmem:[%s1 + $0xdc] sm:$0xf]
      %v280 = vld [vmem:[%s1 + $0xe0] sm:$0xf]
      %v281 = vld [vmem:[%s1 + $0xe4] sm:$0xf]
      %v282 = vld [vmem:[%s1 + $0xe8] sm:$0xf]
      %v283 = vld [vmem:[%s1 + $0xec] sm:$0xf]
      %v284 = vld [vmem:[%s1 + $0xf0] sm:$0xf]
      %v285 = vld [vmem:[%s1 + $0xf4] sm:$0xf]
      %v286 = vld [vmem:[%s1 + $0xf8] sm:$0xf]
      %v287 = vld [vmem:[%s1 + $0xfc] sm:$0xf]
      %v288 = vld [vmem:[%s1 + $0x100] sm:$0xf]
      %v289 = vld [vmem:[%s1 + $0x104] sm:$0xf]
      %v290 = vld [vmem:[%s1 + $0x108] sm:$0xf]
      %v291 = vld [vmem:[%s1 + $0x10c] sm:$0xf]
      %v292 = vld [vmem:[%s1 + $0x110] sm:$0xf]
      %v293 = vld [vmem:[%s1 + $0x114] sm:$0xf]
      %v294 = vld [vmem:[%s1 + $0x118] sm:$0xf]
      %v295 = vld [vmem:[%s1 + $0x11c] sm:$0xf]
      %v296 = vld [vmem:[%s1 + $0x120] sm:$0xf]
      %v297 = vld [vmem:[%s1 + $0x124] sm:$0xf]
      %v298 = vld [vmem:[%s1 + $0x128] sm:$0xf]
      %v299 = vld [vmem:[%s1 + $0x12c] sm:$0xf]
      %v300 = vld [vmem:[%s1 + $0x130] sm:$0xf]
      %v301 = vld [vmem:[%s1 + $0x134] sm:$0xf]
      %v302 = vld [vmem:[%s1 + $0x138] sm:$0xf]
      %v303 = vld [vmem:[%s1 + $0x13c] sm:$0xf]
      %v304 = vld [vmem:[%s1 + $0x140] sm:$0xf]
      %v305 = vld [vmem:[%s1 + $0x144] sm:$0xf]
      %v306 = vld [vmem:[%s1 + $0x148] sm:$0xf]
      %v307 = vld [vmem:[%s1 + $0x14c] sm:$0xf]
      %v308 = vld [vmem:[%s1 + $0x150] sm:$0xf]
      %v309 = vld [vmem:[%s1 + $0x154] sm:$0xf]
      %v310 = vld [vmem:[%s1 + $0x158] sm:$0xf]
      %v311 = vld [vmem:[%s1 + $0x15c] sm:$0xf]
      %v312 = vld [vmem:[%s1 + $0x160] sm:$0xf]
      %v313 = vld [vmem:[%s1 + $0x164] sm:$0xf]
      %v314 = vld [vmem:[%s1 + $0x168] sm:$0xf]
      %v315 = vld [vmem:[%s1 + $0x16c] sm:$0xf]
      %v316 = vld [vmem:[%s1 + $0x170] sm:$0xf]
      %v317 = vld [vmem:[%s1 + $0x174] sm:$0xf]
      %v318 = vld [vmem:[%s1 + $0x178] sm:$0xf]
      %v319 = vld [vmem:[%s1 + $0x17c] sm:$0xf]
      %v320 = vld [vmem:[%s1 + $0x180] sm:$0xf]
      %v321 = vld [vmem:[%s1 + $0x184] sm:$0xf]
      %v322 = vld [vmem:[%s1 + $0x188] sm:$0xf]
      %v323 = vld [vmem:[%s1 + $0x18c] sm:$0xf]
      %v324 = vld [vmem:[%s1 + $0x190] sm:$0xf]
      %v325 = vld [vmem:[%s1 + $0x194] sm:$0xf]
      %v326 = vld [vmem:[%s1 + $0x198] sm:$0xf]
      %v327 = vld [vmem:[%s1 + $0x19c] sm:$0xf]
      %v328 = vld [vmem:[%s1 + $0x1a0] sm:$0xf]
      %v329 = vld [vmem:[%s1 + $0x1a4] sm:$0xf]
      %v330 = vld [vmem:[%s1 + $0x1a8] sm:$0xf]
      %v331 = vld [vmem:[%s1 + $0x1ac] sm:$0xf]
      %v332 = vld [vmem:[%s1 + $0x1b0] sm:$0xf]
      %v333 = vld [vmem:[%s1 + $0x1b4] sm:$0xf]
      %v334 = vld [vmem:[%s1 + $0x1b8] sm:$0xf]
      %v335 = vld [vmem:[%s1 + $0x1bc] sm:$0xf]
      %v336 = vld [vmem:[%s1 + $0x1c0] sm:$0xf]
      %v337 = vld [vmem:[%s1 + $0x1c4] sm:$0xf]
      %v338 = vld [vmem:[%s1 + $0x1c8] sm:$0xf]
      %v339 = vld [vmem:[%s1 + $0x1cc] sm:$0xf]
      %v340 = vld [vmem:[%s1 + $0x1d0] sm:$0xf]
      %v341 = vld [vmem:[%s1 + $0x1d4] sm:$0xf]
      %v342 = vld [vmem:[%s1 + $0x1d8] sm:$0xf]
      %v343 = vld [vmem:[%s1 + $0x1dc] sm:$0xf]
      %v344 = vld [vmem:[%s1 + $0x1e0] sm:$0xf]
      %v345 = vld [vmem:[%s1 + $0x1e4] sm:$0xf]
      %v346 = vld [vmem:[%s1 + $0x1e8] sm:$0xf]
      %v347 = vld [vmem:[%s1 + $0x1ec] sm:$0xf]
      %v348 = vld [vmem:[%s1 + $0x1f0] sm:$0xf]
      %v349 = vld [vmem:[%s1 + $0x1f4] sm:$0xf]
      %v350 = vld [vmem:[%s1 + $0x1f8] sm:$0xf]
      %v351 = vld [vmem:[%s1 + $0x1fc] sm:$0xf]
      %v352 = vld [vmem:[%s2] sm:$0x1]
      %v354 = vlaneseq
      %v355 = vshrl.u32 %v354, 7
      %v356 = vsub.s32 0, %v355
      %v357 = vrot.slane %v352, %v356
      %v367 = vunpack.c.l.b16 %v216
      %v368 = vunpack.c.h.b16 %v216
      %v369 = vunpack.c.l.b16 %v217
      %v370 = vunpack.c.h.b16 %v217
      %v371 = vunpack.c.l.b16 %v218
      %v372 = vunpack.c.h.b16 %v218
      %v373 = vunpack.c.l.b16 %v219
      %v374 = vunpack.c.h.b16 %v219
      %v375 = vunpack.c.l.b16 %v220
      %v376 = vunpack.c.h.b16 %v220
      %v377 = vunpack.c.l.b16 %v221
      %v378 = vunpack.c.h.b16 %v221
      %v379 = vunpack.c.l.b16 %v222
      %v380 = vunpack.c.h.b16 %v222
      %v381 = vunpack.c.l.b16 %v223
      %v382 = vunpack.c.h.b16 %v223
      %v383 = vpack.c.b16 %v375, %v367
      %v384 = vpack.c.b16 %v376, %v368
      %v385 = vpack.c.b16 %v377, %v369
      %v386 = vpack.c.b16 %v378, %v370
      %v387 = vpack.c.b16 %v379, %v371
      %v388 = vpack.c.b16 %v380, %v372
      %v389 = vpack.c.b16 %v381, %v373
      %v390 = vpack.c.b16 %v382, %v374
      %v527 = vunpack.c.l.b16 %v224
      %v528 = vunpack.c.l.b16 %v225
      %v529 = vunpack.c.l.b16 %v226
      %v530 = vunpack.c.l.b16 %v227
      %v531 = vunpack.c.l.b16 %v228
      %v532 = vunpack.c.l.b16 %v229
      %v533 = vunpack.c.l.b16 %v230
      %v534 = vunpack.c.l.b16 %v231
      %v535 = vunpack.c.l.b16 %v232
      %v536 = vunpack.c.l.b16 %v233
      %v537 = vunpack.c.l.b16 %v234
      %v538 = vunpack.c.l.b16 %v235
      %v539 = vunpack.c.l.b16 %v236
      %v540 = vunpack.c.l.b16 %v237
      %v541 = vunpack.c.l.b16 %v238
      %v542 = vunpack.c.l.b16 %v239
      %v543 = vunpack.c.l.b16 %v240
      %v544 = vunpack.c.l.b16 %v241
      %v545 = vunpack.c.l.b16 %v242
      %v546 = vunpack.c.l.b16 %v243
      %v547 = vunpack.c.l.b16 %v244
      %v548 = vunpack.c.l.b16 %v245
      %v549 = vunpack.c.l.b16 %v246
      %v550 = vunpack.c.l.b16 %v247
      %v551 = vunpack.c.l.b16 %v248
      %v552 = vunpack.c.l.b16 %v249
      %v553 = vunpack.c.l.b16 %v250
      %v554 = vunpack.c.l.b16 %v251
      %v555 = vunpack.c.l.b16 %v252
      %v556 = vunpack.c.l.b16 %v253
      %v557 = vunpack.c.l.b16 %v254
      %v558 = vunpack.c.l.b16 %v255
      %v559 = vunpack.c.l.b16 %v256
      %v560 = vunpack.c.l.b16 %v257
      %v561 = vunpack.c.l.b16 %v258
      %v562 = vunpack.c.l.b16 %v259
      %v563 = vunpack.c.l.b16 %v260
      %v564 = vunpack.c.l.b16 %v261
      %v565 = vunpack.c.l.b16 %v262
      %v566 = vunpack.c.l.b16 %v263
      %v567 = vunpack.c.l.b16 %v264
      %v568 = vunpack.c.l.b16 %v265
      %v569 = vunpack.c.l.b16 %v266
      %v570 = vunpack.c.l.b16 %v267
      %v571 = vunpack.c.l.b16 %v268
      %v572 = vunpack.c.l.b16 %v269
      %v573 = vunpack.c.l.b16 %v270
      %v574 = vunpack.c.l.b16 %v271
      %v575 = vunpack.c.l.b16 %v272
      %v576 = vunpack.c.l.b16 %v273
      %v577 = vunpack.c.l.b16 %v274
      %v578 = vunpack.c.l.b16 %v275
      %v579 = vunpack.c.l.b16 %v276
      %v580 = vunpack.c.l.b16 %v277
      %v581 = vunpack.c.l.b16 %v278
      %v582 = vunpack.c.l.b16 %v279
      %v583 = vunpack.c.l.b16 %v280
      %v584 = vunpack.c.l.b16 %v281
      %v585 = vunpack.c.l.b16 %v282
      %v586 = vunpack.c.l.b16 %v283
      %v587 = vunpack.c.l.b16 %v284
      %v588 = vunpack.c.l.b16 %v285
      %v589 = vunpack.c.l.b16 %v286
      %v590 = vunpack.c.l.b16 %v287
      %v591 = vunpack.c.l.b16 %v288
      %v592 = vunpack.c.l.b16 %v289
      %v593 = vunpack.c.l.b16 %v290
      %v594 = vunpack.c.l.b16 %v291
      %v595 = vunpack.c.l.b16 %v292
      %v596 = vunpack.c.l.b16 %v293
      %v597 = vunpack.c.l.b16 %v294
      %v598 = vunpack.c.l.b16 %v295
      %v599 = vunpack.c.l.b16 %v296
      %v600 = vunpack.c.l.b16 %v297
      %v601 = vunpack.c.l.b16 %v298
      %v602 = vunpack.c.l.b16 %v299
      %v603 = vunpack.c.l.b16 %v300
      %v604 = vunpack.c.l.b16 %v301
      %v605 = vunpack.c.l.b16 %v302
      %v606 = vunpack.c.l.b16 %v303
      %v607 = vunpack.c.l.b16 %v304
      %v608 = vunpack.c.l.b16 %v305
      %v609 = vunpack.c.l.b16 %v306
      %v610 = vunpack.c.l.b16 %v307
      %v611 = vunpack.c.l.b16 %v308
      %v612 = vunpack.c.l.b16 %v309
      %v613 = vunpack.c.l.b16 %v310
      %v614 = vunpack.c.l.b16 %v311
      %v615 = vunpack.c.l.b16 %v312
      %v616 = vunpack.c.l.b16 %v313
      %v617 = vunpack.c.l.b16 %v314
      %v618 = vunpack.c.l.b16 %v315
      %v619 = vunpack.c.l.b16 %v316
      %v620 = vunpack.c.l.b16 %v317
      %v621 = vunpack.c.l.b16 %v318
      %v622 = vunpack.c.l.b16 %v319
      %v623 = vunpack.c.l.b16 %v320
      %v624 = vunpack.c.l.b16 %v321
      %v625 = vunpack.c.l.b16 %v322
      %v626 = vunpack.c.l.b16 %v323
      %v627 = vunpack.c.l.b16 %v324
      %v628 = vunpack.c.l.b16 %v325
      %v629 = vunpack.c.l.b16 %v326
      %v630 = vunpack.c.l.b16 %v327
      %v631 = vunpack.c.l.b16 %v328
      %v632 = vunpack.c.l.b16 %v329
      %v633 = vunpack.c.l.b16 %v330
      %v634 = vunpack.c.l.b16 %v331
      %v635 = vunpack.c.l.b16 %v332
      %v636 = vunpack.c.l.b16 %v333
      %v637 = vunpack.c.l.b16 %v334
      %v638 = vunpack.c.l.b16 %v335
      %v639 = vunpack.c.l.b16 %v336
      %v640 = vunpack.c.l.b16 %v337
      %v641 = vunpack.c.l.b16 %v338
      %v642 = vunpack.c.l.b16 %v339
      %v643 = vunpack.c.l.b16 %v340
      %v644 = vunpack.c.l.b16 %v341
      %v645 = vunpack.c.l.b16 %v342
      %v646 = vunpack.c.l.b16 %v343
      %v647 = vunpack.c.l.b16 %v344
      %v648 = vunpack.c.l.b16 %v345
      %v649 = vunpack.c.l.b16 %v346
      %v650 = vunpack.c.l.b16 %v347
      %v651 = vunpack.c.l.b16 %v348
      %v652 = vunpack.c.l.b16 %v349
      %v653 = vunpack.c.l.b16 %v350
      %v654 = vunpack.c.l.b16 %v351
      %v655 = vpack.c.b16 %v528, %v527
      %v656 = vpack.c.b16 %v530, %v529
      %v657 = vpack.c.b16 %v532, %v531
      %v658 = vpack.c.b16 %v534, %v533
      %v659 = vpack.c.b16 %v536, %v535
      %v660 = vpack.c.b16 %v538, %v537
      %v661 = vpack.c.b16 %v540, %v539
      %v662 = vpack.c.b16 %v542, %v541
      %v663 = vpack.c.b16 %v544, %v543
      %v664 = vpack.c.b16 %v546, %v545
      %v665 = vpack.c.b16 %v548, %v547
      %v666 = vpack.c.b16 %v550, %v549
      %v667 = vpack.c.b16 %v552, %v551
      %v668 = vpack.c.b16 %v554, %v553
      %v669 = vpack.c.b16 %v556, %v555
      %v670 = vpack.c.b16 %v558, %v557
      %v671 = vpack.c.b16 %v560, %v559
      %v672 = vpack.c.b16 %v562, %v561
      %v673 = vpack.c.b16 %v564, %v563
      %v674 = vpack.c.b16 %v566, %v565
      %v675 = vpack.c.b16 %v568, %v567
      %v676 = vpack.c.b16 %v570, %v569
      %v677 = vpack.c.b16 %v572, %v571
      %v678 = vpack.c.b16 %v574, %v573
      %v679 = vpack.c.b16 %v576, %v575
      %v680 = vpack.c.b16 %v578, %v577
      %v681 = vpack.c.b16 %v580, %v579
      %v682 = vpack.c.b16 %v582, %v581
      %v683 = vpack.c.b16 %v584, %v583
      %v684 = vpack.c.b16 %v586, %v585
      %v685 = vpack.c.b16 %v588, %v587
      %v686 = vpack.c.b16 %v590, %v589
      %v687 = vpack.c.b16 %v592, %v591
      %v688 = vpack.c.b16 %v594, %v593
      %v689 = vpack.c.b16 %v596, %v595
      %v690 = vpack.c.b16 %v598, %v597
      %v691 = vpack.c.b16 %v600, %v599
      %v692 = vpack.c.b16 %v602, %v601
      %v693 = vpack.c.b16 %v604, %v603
      %v694 = vpack.c.b16 %v606, %v605
      %v695 = vpack.c.b16 %v608, %v607
      %v696 = vpack.c.b16 %v610, %v609
      %v697 = vpack.c.b16 %v612, %v611
      %v698 = vpack.c.b16 %v614, %v613
      %v699 = vpack.c.b16 %v616, %v615
      %v700 = vpack.c.b16 %v618, %v617
      %v701 = vpack.c.b16 %v620, %v619
      %v702 = vpack.c.b16 %v622, %v621
      %v703 = vpack.c.b16 %v624, %v623
      %v704 = vpack.c.b16 %v626, %v625
      %v705 = vpack.c.b16 %v628, %v627
      %v706 = vpack.c.b16 %v630, %v629
      %v707 = vpack.c.b16 %v632, %v631
      %v708 = vpack.c.b16 %v634, %v633
      %v709 = vpack.c.b16 %v636, %v635
      %v710 = vpack.c.b16 %v638, %v637
      %v711 = vpack.c.b16 %v640, %v639
      %v712 = vpack.c.b16 %v642, %v641
      %v713 = vpack.c.b16 %v644, %v643
      %v714 = vpack.c.b16 %v646, %v645
      %v715 = vpack.c.b16 %v648, %v647
      %v716 = vpack.c.b16 %v650, %v649
      %v717 = vpack.c.b16 %v652, %v651
      %v718 = vpack.c.b16 %v654, %v653
      %783 = vmatprep.subr.bf16.mxu0 0
      %784 = vmatpush1.bf16.msra.mxu0 %v655
      %785 = vmatprep.subr.bf16.mxu0 0
      %786 = vmatpush1.bf16.msra.mxu0 %v656
      %787 = vmatprep.subr.bf16.mxu0 0
      %788 = vmatpush1.bf16.msra.mxu0 %v657
      %789 = vmatprep.subr.bf16.mxu0 0
      %790 = vmatpush1.bf16.msra.mxu0 %v658
      %791 = vmatprep.subr.bf16.mxu0 0
      %792 = vmatpush1.bf16.msra.mxu0 %v659
      %793 = vmatprep.subr.bf16.mxu0 0
      %794 = vmatpush1.bf16.msra.mxu0 %v660
      %795 = vmatprep.subr.bf16.mxu0 0
      %796 = vmatpush1.bf16.msra.mxu0 %v661
      %797 = vmatprep.subr.bf16.mxu0 0
      %798 = vmatpush1.bf16.msra.mxu0 %v662
      %799 = vmatprep.subr.bf16.mxu0 0
      %800 = vmatpush1.bf16.msra.mxu0 %v663
      %801 = vmatprep.subr.bf16.mxu0 0
      %802 = vmatpush1.bf16.msra.mxu0 %v664
      %803 = vmatprep.subr.bf16.mxu0 0
      %804 = vmatpush1.bf16.msra.mxu0 %v665
      %805 = vmatprep.subr.bf16.mxu0 0
      %806 = vmatpush1.bf16.msra.mxu0 %v666
      %807 = vmatprep.subr.bf16.mxu0 0
      %808 = vmatpush1.bf16.msra.mxu0 %v667
      %809 = vmatprep.subr.bf16.mxu0 0
      %810 = vmatpush1.bf16.msra.mxu0 %v668
      %811 = vmatprep.subr.bf16.mxu0 0
      %812 = vmatpush1.bf16.msra.mxu0 %v669
      %813 = vmatprep.subr.bf16.mxu0 0
      %814 = vmatpush1.bf16.msra.mxu0 %v670
      %815 = vmatprep.mubr.bf16.mxu0 %v384
      %816 = vmatmul.mubr.bf16.gmra.mrb[0].mxu0 %v383
      %v817 = vpop.f32.mrb[0].mxu0
      %v818 = vadd.f32 %v357, %v817
      %v819 = vpop.f32.mrb[0].mxu0
      %v820 = vpop.f32.mrb[0].mxu0
      %v821 = vadd.f32 %v357, %v820
      %v822 = vpop.f32.mrb[0].mxu0
      %823 = vdwg.mxu0
      %824 = vmatprep.subr.bf16.mxu0 0
      %825 = vmatpush1.bf16.msra.mxu0 %v671
      %826 = vmatprep.subr.bf16.mxu0 0
      %827 = vmatpush1.bf16.msra.mxu0 %v672
      %828 = vmatprep.subr.bf16.mxu0 0
      %829 = vmatpush1.bf16.msra.mxu0 %v673
      %830 = vmatprep.subr.bf16.mxu0 0
      %831 = vmatpush1.bf16.msra.mxu0 %v674
      %832 = vmatprep.subr.bf16.mxu0 0
      %833 = vmatpush1.bf16.msra.mxu0 %v675
      %834 = vmatprep.subr.bf16.mxu0 0
      %835 = vmatpush1.bf16.msra.mxu0 %v676
      %836 = vmatprep.subr.bf16.mxu0 0
      %837 = vmatpush1.bf16.msra.mxu0 %v677
      %838 = vmatprep.subr.bf16.mxu0 0
      %839 = vmatpush1.bf16.msra.mxu0 %v678
      %840 = vmatprep.subr.bf16.mxu0 0
      %841 = vmatpush1.bf16.msra.mxu0 %v679
      %842 = vmatprep.subr.bf16.mxu0 0
      %843 = vmatpush1.bf16.msra.mxu0 %v680
      %844 = vmatprep.subr.bf16.mxu0 0
      %845 = vmatpush1.bf16.msra.mxu0 %v681
      %846 = vmatprep.subr.bf16.mxu0 0
      %847 = vmatpush1.bf16.msra.mxu0 %v682
      %848 = vmatprep.subr.bf16.mxu0 0
      %849 = vmatpush1.bf16.msra.mxu0 %v683
      %850 = vmatprep.subr.bf16.mxu0 0
      %851 = vmatpush1.bf16.msra.mxu0 %v684
      %852 = vmatprep.subr.bf16.mxu0 0
      %853 = vmatpush1.bf16.msra.mxu0 %v685
      %854 = vmatprep.subr.bf16.mxu0 0
      %855 = vmatpush1.bf16.msra.mxu0 %v686
      %856 = vmatprep.mubr.bf16.mxu0 %v386
      %857 = vmatmul.mubr.bf16.gmra.mrb[0].mxu0 %v385
      %v858 = vpop.f32.mrb[0].mxu0
      %v859 = vadd.f32 %v818, %v858
      %v860 = vpop.f32.mrb[0].mxu0
      %v861 = vpop.f32.mrb[0].mxu0
      %v862 = vadd.f32 %v821, %v861
      %v863 = vpop.f32.mrb[0].mxu0
      %864 = vdwg.mxu0
      %865 = vmatprep.subr.bf16.mxu0 0
      %866 = vmatpush1.bf16.msra.mxu0 %v687
      %867 = vmatprep.subr.bf16.mxu0 0
      %868 = vmatpush1.bf16.msra.mxu0 %v688
      %869 = vmatprep.subr.bf16.mxu0 0
      %870 = vmatpush1.bf16.msra.mxu0 %v689
      %871 = vmatprep.subr.bf16.mxu0 0
      %872 = vmatpush1.bf16.msra.mxu0 %v690
      %873 = vmatprep.subr.bf16.mxu0 0
      %874 = vmatpush1.bf16.msra.mxu0 %v691
      %875 = vmatprep.subr.bf16.mxu0 0
      %876 = vmatpush1.bf16.msra.mxu0 %v692
      %877 = vmatprep.subr.bf16.mxu0 0
      %878 = vmatpush1.bf16.msra.mxu0 %v693
      %879 = vmatprep.subr.bf16.mxu0 0
      %880 = vmatpush1.bf16.msra.mxu0 %v694
      %881 = vmatprep.subr.bf16.mxu0 0
      %882 = vmatpush1.bf16.msra.mxu0 %v695
      %883 = vmatprep.subr.bf16.mxu0 0
      %884 = vmatpush1.bf16.msra.mxu0 %v696
      %885 = vmatprep.subr.bf16.mxu0 0
      %886 = vmatpush1.bf16.msra.mxu0 %v697
      %887 = vmatprep.subr.bf16.mxu0 0
      %888 = vmatpush1.bf16.msra.mxu0 %v698
      %889 = vmatprep.subr.bf16.mxu0 0
      %890 = vmatpush1.bf16.msra.mxu0 %v699
      %891 = vmatprep.subr.bf16.mxu0 0
      %892 = vmatpush1.bf16.msra.mxu0 %v700
      %893 = vmatprep.subr.bf16.mxu0 0
      %894 = vmatpush1.bf16.msra.mxu0 %v701
      %895 = vmatprep.subr.bf16.mxu0 0
      %896 = vmatpush1.bf16.msra.mxu0 %v702
      %897 = vmatprep.mubr.bf16.mxu0 %v388
      %898 = vmatmul.mubr.bf16.gmra.mrb[0].mxu0 %v387
      %v899 = vpop.f32.mrb[0].mxu0
      %v900 = vadd.f32 %v859, %v899
      %v901 = vpop.f32.mrb[0].mxu0
      %v902 = vpop.f32.mrb[0].mxu0
      %v903 = vadd.f32 %v862, %v902
      %v904 = vpop.f32.mrb[0].mxu0
      %905 = vdwg.mxu0
      %906 = vmatprep.subr.bf16.mxu0 0
      %907 = vmatpush1.bf16.msra.mxu0 %v703
      %908 = vmatprep.subr.bf16.mxu0 0
      %909 = vmatpush1.bf16.msra.mxu0 %v704
      %910 = vmatprep.subr.bf16.mxu0 0
      %911 = vmatpush1.bf16.msra.mxu0 %v705
      %912 = vmatprep.subr.bf16.mxu0 0
      %913 = vmatpush1.bf16.msra.mxu0 %v706
      %914 = vmatprep.subr.bf16.mxu0 0
      %915 = vmatpush1.bf16.msra.mxu0 %v707
      %916 = vmatprep.subr.bf16.mxu0 0
      %917 = vmatpush1.bf16.msra.mxu0 %v708
      %918 = vmatprep.subr.bf16.mxu0 0
      %919 = vmatpush1.bf16.msra.mxu0 %v709
      %920 = vmatprep.subr.bf16.mxu0 0
      %921 = vmatpush1.bf16.msra.mxu0 %v710
      %922 = vmatprep.subr.bf16.mxu0 0
      %923 = vmatpush1.bf16.msra.mxu0 %v711
      %924 = vmatprep.subr.bf16.mxu0 0
      %925 = vmatpush1.bf16.msra.mxu0 %v712
      %926 = vmatprep.subr.bf16.mxu0 0
      %927 = vmatpush1.bf16.msra.mxu0 %v713
      %928 = vmatprep.subr.bf16.mxu0 0
      %929 = vmatpush1.bf16.msra.mxu0 %v714
      %930 = vmatprep.subr.bf16.mxu0 0
      %931 = vmatpush1.bf16.msra.mxu0 %v715
      %932 = vmatprep.subr.bf16.mxu0 0
      %933 = vmatpush1.bf16.msra.mxu0 %v716
      %934 = vmatprep.subr.bf16.mxu0 0
      %935 = vmatpush1.bf16.msra.mxu0 %v717
      %936 = vmatprep.subr.bf16.mxu0 0
      %937 = vmatpush1.bf16.msra.mxu0 %v718
      %938 = vmatprep.mubr.bf16.mxu0 %v390
      %939 = vmatmul.mubr.bf16.gmra.mrb[0].mxu0 %v389
      %v940 = vpop.f32.mrb[0].mxu0
      %v941 = vadd.f32 %v900, %v940
      %v942 = vpop.f32.mrb[0].mxu0
      %v943 = vpop.f32.mrb[0].mxu0
      %v944 = vadd.f32 %v903, %v943
      %v945 = vpop.f32.mrb[0].mxu0
      %946 = vdwg.mxu0
      %v947 = vpack.c.bf16 %v944, %v941
      %v949 = vunpack.c.l.b16 %v947
      %v950 = vunpack.c.h.b16 %v947
      %v951 = vpack.c.b16 %v949, %v949
      %v952 = vpack.c.b16 %v950, %v950
      %955 = vst [vmem:[%s209] sm:$0xf] %v951
      %956 = vst [vmem:[%s209 + $0x4] sm:$0xf] %v952
      %s957 = smul.u32 %s16, 16
      %v958 = vlaneseq
      %v959 = vshrl.u32 %v958, 7
      %v960 = vadd.s32 %v959, 8
      %v961 = vstv %s957
      %v962 = vadd.s32 %v961, %v959
      %v963 = vadd.s32 %v961, %v960
      %vm964 = vcmp.lt.s32.totalorder %v962, 18
      %vm965 = vcmp.lt.s32.totalorder %v963, 18
      %v966 = vsel %vm964, 1, 0
      %v967 = vsel %vm965, 1, 0
      %vm968 = vcmp.eq.s32.totalorder %v966, 1
      %vm969 = vcmp.eq.s32.totalorder %v967, 1
      %v970 = vsel %vm968, %v941, 0.0
      %v971 = vsel %vm969, %v944, 0.0
      %v972 = vadd.f32 %v970, %v971
      %v973 = vrot.slane %v972, 4
      %v974 = vadd.f32 %v972, %v973
      %v975 = vrot.slane %v974, 2
      %v976 = vadd.f32 %v974, %v975
      %v977 = vrot.slane %v976, 1
      %v978 = vadd.f32 %v976, %v977
      %979 = vst [vmem:[%s214] sm:$0x1] %v978
      %v980 = vmul.f32 %v970, %v970
      %v981 = vmul.f32 %v971, %v971
      %v982 = vadd.f32 %v980, %v981
      %v983 = vrot.slane %v982, 4
      %v984 = vadd.f32 %v982, %v983
      %v985 = vrot.slane %v984, 2
      %v986 = vadd.f32 %v984, %v985
      %v987 = vrot.slane %v986, 1
      %v988 = vadd.f32 %v986, %v987
      %989 = vst [vmem:[%s214 + $0x1] sm:$0x1] %v988
      %s990 = smul.u32 2, %s16
      %p991 = scmp.lt.s32.totalorder %s990, 3
      %s992 = scalar_select %p991, %s990, 3
      %s993 = smul.addr %s992, 4
      %s994 = scalar_lea.vmem %s3, %s993
      %p995 = scmp.lt.s32.totalorder %s16, 1
      %s996 = scalar_select %p995, %s16, 1
      %s997 = smul.addr %s996, 2
      %s998 = scalar_lea.vmem %s4, %s997
      // Predicated region
      $region33: #{spa_discriminator_forward.13} parent=31 // pred_check
        %p999 = pneg %p102
      $region34: #{spa_discriminator_forward.13} parent=31 // pred_check_branch
        %1001 = sbr.rel (%p999) target = $region36
      $region35: #{spa_discriminator_forward.13} parent=31 // pred_region
        %s1002 = smul.u32 2, %s16
      $region36: #{spa_discriminator_forward.13} parent=31 // pred_fallthru
        _
      // Predicated region
      $region37: #{spa_discriminator_forward.13} parent=31 // pred_check
        %p1003 = pneg %p128
      $region38: #{spa_discriminator_forward.13} parent=31 // pred_check_branch
        %1005 = sbr.rel (%p1003) target = $region40
      $region39: #{spa_discriminator_forward.13} parent=31 // pred_region
        _
      $region40: #{spa_discriminator_forward.13} parent=31 // pred_fallthru
        _
    $region32: #{spa_discriminator_forward.13} parent=5 // pred_fallthru
      _
    %p1006 = scmp.le.s32.totalorder 2, %s11
    // Predicated region
    $region41: #{spa_discriminator_forward.13} parent=5 // pred_check
      %p1007 = pneg %p1006
    $region42: #{spa_discriminator_forward.13} parent=5 // pred_check_branch
      %1009 = sbr.rel (%p1007) target = $region44
    $region43: #{spa_discriminator_forward.13} parent=5 // pred_region
      %s1010 = ssub.s32 %s11, 2
      // Predicated region
      $region45: #{spa_discriminator_forward.13} parent=43 // pred_check
        %p1011 = pneg %p108
      $region46: #{spa_discriminator_forward.13} parent=43 // pred_check_branch
        %1013 = sbr.rel (%p1011) target = $region48
      $region47: #{spa_discriminator_forward.13} parent=43 // pred_region
        %s1014 = smul.u32 2, %s17
        %p1015 = scmp.lt.s32.totalorder %s1014, 3
        %s1016 = scalar_select %p1015, %s1014, 3
        %s1017 = smul.addr %s1016, 4
        %s1018 = scalar_lea.vmem %s3, %s1017
      $region48: #{spa_discriminator_forward.13} parent=43 // pred_fallthru
        _
      // Predicated region
      $region49: #{spa_discriminator_forward.13} parent=43 // pred_check
        %p1019 = pneg %p134
      $region50: #{spa_discriminator_forward.13} parent=43 // pred_check_branch
        %1021 = sbr.rel (%p1019) target = $region52
      $region51: #{spa_discriminator_forward.13} parent=43 // pred_region
        %p1022 = scmp.lt.s32.totalorder %s17, 1
        %s1023 = scalar_select %p1022, %s17, 1
        %s1024 = smul.addr %s1023, 2
        %s1025 = scalar_lea.vmem %s4, %s1024
      $region52: #{spa_discriminator_forward.13} parent=43 // pred_fallthru
        _
    $region44: #{spa_discriminator_forward.13} parent=5 // pred_fallthru
      _
  $region6: #{spa_discriminator_forward.13} parent=0 // loop_footer
    %s15 = sadd.s32 1, %s11
  $region7: #{spa_discriminator_forward.13} parent=0 // loop_footer_branch
    %10 = sbr.rel target = $region3
  $region8: #{spa_discriminator_forward.13} parent=0 // loop_exit
    _

</llo_original>
